<compile_context>
chip_gen: v7x
topology: tpu7x:2x2x1
jax: 0.10.0
libtpu: 0.0.40
codegen_flags: <defaults>
</compile_context>

<pallas_src>
import jax
import jax.numpy as jnp
import numpy as np
from jax.experimental import pallas as pl
from jax.experimental.pallas import tpu as pltpu


_CONST_KEYS = ("w1b", "b1t", "sh1a", "sh1b", "sw1a", "sw1b",
               "shift2", "w2b", "b2t", "sh2a", "sh2b", "sw2a", "sw2b",
               "pick", "fw1", "fb1", "fw2", "fb2", "fw3", "fb3")


# ------------------------------ fused kernel --------------------------------

def _lenet_kernel(band_ref, w1b_ref, b1t_ref, sh1a_ref, sh1b_ref, sw1a_ref,
                  sw1b_ref, shift2_ref, w2b_ref, b2t_ref, sh2a_ref, sh2b_ref,
                  sw2a_ref, sw2b_ref, pick_ref, fw1_ref, fb1_ref, fw2_ref,
                  fb2_ref, fw3_ref, fb3_ref, o_ref):
    """Whole TwoLayerConv forward for a tile of TB images (grid axis = batch)."""

    def dot(a, b):
        return jnp.dot(a, b, preferred_element_type=jnp.float32)

    # conv1 + bias + ReLU: one matmul for the whole batch tile.
    c1 = jnp.maximum(dot(band_ref[...], w1b_ref[...]) + b1t_ref[...], 0.0)   # (TB*32, 168)

    # 2x2 max pool: H via row-selection matmuls, W via lane-selection matmuls.
    h1 = jnp.maximum(dot(sh1a_ref[...], c1), dot(sh1b_ref[...], c1))         # (TB*14, 168)
    p1 = jnp.maximum(dot(h1, sw1a_ref[...]), dot(h1, sw1b_ref[...]))         # (TB*14, 84)

    # conv2: build the 5-row band with shift matmuls, then one matmul.
    band2 = jnp.concatenate([dot(shift2_ref[k], p1) for k in range(5)],
                            axis=-1)                                          # (TB*10, 420)
    c2 = jnp.maximum(dot(band2, w2b_ref[...]) + b2t_ref[...], 0.0)           # (TB*10, 160)

    h2 = jnp.maximum(dot(sh2a_ref[...], c2), dot(sh2b_ref[...], c2))         # (TB*5, 160)
    p2 = jnp.maximum(dot(h2, sw2a_ref[...]), dot(h2, sw2b_ref[...]))         # (TB*5, 80)

    # Flatten to (TB, 400) in (h, w, c) order; fc1 rows are pre-permuted to match.
    flat = jnp.concatenate([dot(pick_ref[k], p2) for k in range(5)], axis=-1)  # (TB, 400)

    z = jnp.maximum(dot(flat, fw1_ref[...]) + fb1_ref[...], 0.0)
    z = jnp.maximum(dot(z, fw2_ref[...]) + fb2_ref[...], 0.0)
    o_ref[...] = dot(z, fw3_ref[...]) + fb3_ref[...]                          # (TB, 128)


# ------------------------------ wrapper --------------------------------------

def two_layer_conv(kparams, x_nchw, tb=8):
    """Forward pass equivalent to TwoLayerConv.forward; input is NCHW (torch)."""
    x = jnp.transpose(x_nchw, (0, 2, 3, 1)).astype(jnp.float32)      # NHWC
    n, H, W, C = x.shape
    K = 5
    Ho = H - K + 1                                                   # 28

    # Pad batch to a multiple of the tile so the last block stays in range.
    n_pad = ((n + tb - 1) // tb) * tb
    if n_pad != n:
        x = jnp.pad(x, ((0, n_pad - n), (0, 0), (0, 0), (0, 0)))

    # conv1 "row band" built lane-dense in XLA:
    #   band[n, ho, ki*W*C + wi*C + ci] = x[n, ho+ki, wi, ci]
    x2 = x.reshape(n_pad, H, W * C)
    band = jnp.concatenate([x2[:, k:k + Ho, :] for k in range(K)], axis=-1)
    band = jnp.pad(band, ((0, 0), (0, H - Ho), (0, 0)))              # pad 28 -> 32 rows
    band = band.reshape(n_pad * H, K * W * C)                        # (N*32, 480)

    consts = tuple(kparams[k] for k in _CONST_KEYS)

    def _const_spec(a):
        nd = a.ndim
        return pl.BlockSpec(a.shape, lambda i, _nd=nd: (0,) * _nd)

    in_specs = [pl.BlockSpec((tb * H, K * W * C), lambda i: (i, 0))]
    in_specs += [_const_spec(a) for a in consts]

    out = pl.pallas_call(
        _lenet_kernel,
        grid=(n_pad // tb,),
        out_shape=jax.ShapeDtypeStruct((n_pad, 128), jnp.float32),
        in_specs=in_specs,
        out_specs=pl.BlockSpec((tb, 128), lambda i: (i, 0)),
        compiler_params=pltpu.CompilerParams(
            dimension_semantics=("parallel",),          # megacore split on v7x
            vmem_limit_bytes=32 * 1024 * 1024),
    )(band, *consts)
    return out[:n, :10]                                              # drop zero padding


# ------------------------------ params ---------------------------------------

def init_params(key):
    """Deterministic init; shapes follow the PyTorch module (torch layout).
    Linear weights stored as (in, out) so y = x @ W."""
    def u(k, shape, fan_in):
        bound = 1.0 / (fan_in ** 0.5)
        return jax.random.uniform(k, shape, jnp.float32, -bound, bound)

    ks = jax.random.split(key, 10)
    return {
        "w1": u(ks[0], (6, 3, 5, 5), 3 * 5 * 5),
        "b1": u(ks[1], (6,), 3 * 5 * 5),
        "w2": u(ks[2], (16, 6, 5, 5), 6 * 5 * 5),
        "b2": u(ks[3], (16,), 6 * 5 * 5),
        "fw1": u(ks[4], (16 * 5 * 5, 120), 16 * 5 * 5),
        "fb1": u(ks[5], (120,), 16 * 5 * 5),
        "fw2": u(ks[6], (120, 84), 120),
        "fb2": u(ks[7], (84,), 120),
        "fw3": u(ks[8], (84, 10), 84),
        "fb3": u(ks[9], (10,), 84),
    }


def prepare_params(p, tb):
    """One-time host-side prep: band conv weights, tiled biases, pooling /
    shift / pick selection matrices (0/1), permuted+padded FC weights."""

    def conv_band_weight(w, w_in):
        # torch OIHW -> (K*w_in*Cin, (w_in-K+1)*Cout) "row band" matmul weight.
        w = np.asarray(w, np.float32)                       # (Cout, Cin, K, K)
        cout, cin, k, _ = w.shape
        wo_n = w_in - k + 1
        m = np.zeros((k, w_in, cin, wo_n, cout), np.float32)
        for ki in range(k):
            for kj in range(k):
                for wo in range(wo_n):
                    m[ki, wo + kj, :, wo, :] = w[:, :, ki, kj].T
        return m.reshape(k * w_in * cin, wo_n * cout)

    def bias_tile(b, wo_n):
        return np.tile(np.asarray(b, np.float32), wo_n)[None, :]

    def sel_rows(rows_in, rows_out, off):
        # (tb*rows_out, tb*rows_in): picks row b*rows_in + 2*i + off.
        m = np.zeros((tb * rows_out, tb * rows_in), np.float32)
        for b in range(tb):
            for i in range(rows_out):
                m[b * rows_out + i, b * rows_in + 2 * i + off] = 1.0
        return m

    def sel_lanes(wo_n, c, off):
        # (wo_n*c, (wo_n//2)*c): picks lane (2*j+off)*c + ch.
        jn = wo_n // 2
        m = np.zeros((wo_n * c, jn * c), np.float32)
        for j in range(jn):
            for ch in range(c):
                m[(2 * j + off) * c + ch, j * c + ch] = 1.0
        return m

    def shift_rows(rows_in, rows_out, k):
        m = np.zeros((k, tb * rows_out, tb * rows_in), np.float32)
        for kk in range(k):
            for b in range(tb):
                for h in range(rows_out):
                    m[kk, b * rows_out + h, b * rows_in + h + kk] = 1.0
        return m

    def pick_rows(rows_in, k):
        m = np.zeros((k, tb, tb * rows_in), np.float32)
        for kk in range(k):
            for b in range(tb):
                m[kk, b, b * rows_in + kk] = 1.0
        return m

    def pad_w(w, rows, cols):
        w = np.asarray(w, np.float32)
        return np.pad(w, ((0, rows - w.shape[0]), (0, cols - w.shape[1])))

    def pad_b(b, cols):
        b = np.asarray(b, np.float32)
        return np.pad(b, (0, cols - b.shape[0]))[None, :]

    # fc1 consumes torch.flatten(NCHW) = (c, h, w); kernel flatten is (h, w, c).
    c, hh, ww = 16, 5, 5
    perm = np.array([ci * (hh * ww) + hi * ww + wi
                     for hi in range(hh) for wi in range(ww) for ci in range(c)])
    fw1 = np.asarray(p["fw1"], np.float32)[perm, :]

    consts = dict(
        w1b=conv_band_weight(p["w1"], 32), b1t=bias_tile(p["b1"], 28),
        sh1a=sel_rows(32, 14, 0), sh1b=sel_rows(32, 14, 1),
        sw1a=sel_lanes(28, 6, 0), sw1b=sel_lanes(28, 6, 1),
        shift2=shift_rows(14, 10, 5),
        w2b=conv_band_weight(p["w2"], 14), b2t=bias_tile(p["b2"], 10),
        sh2a=sel_rows(10, 5, 0), sh2b=sel_rows(10, 5, 1),
        sw2a=sel_lanes(10, 16, 0), sw2b=sel_lanes(10, 16, 1),
        pick=pick_rows(5, 5),
        fw1=pad_w(fw1, 400, 128), fb1=pad_b(p["fb1"], 128),
        fw2=pad_w(p["fw2"], 128, 128), fb2=pad_b(p["fb2"], 128),
        fw3=pad_w(p["fw3"], 128, 128), fb3=pad_b(p["fb3"], 128),
    )
    return {k: jnp.asarray(v) for k, v in consts.items()}


# ------------------------------ reference ------------------------------------

def reference(params, x_nchw):
    """Independent pure-JAX reference (lax.conv / reduce_window) for checking."""
    dn = ("NCHW", "OIHW", "NCHW")
    y = jax.lax.conv_general_dilated(x_nchw, params["w1"], (1, 1), "VALID",
                                     dimension_numbers=dn)
    y = jax.nn.relu(y + params["b1"][None, :, None, None])
    y = jax.lax.reduce_window(y, -jnp.inf, jax.lax.max,
                              (1, 1, 2, 2), (1, 1, 2, 2), "VALID")
    y = jax.lax.conv_general_dilated(y, params["w2"], (1, 1), "VALID",
                                     dimension_numbers=dn)
    y = jax.nn.relu(y + params["b2"][None, :, None, None])
    y = jax.lax.reduce_window(y, -jnp.inf, jax.lax.max,
                              (1, 1, 2, 2), (1, 1, 2, 2), "VALID")
    y = y.reshape(y.shape[0], -1)
    y = jax.nn.relu(y @ params["fw1"] + params["fb1"])
    y = jax.nn.relu(y @ params["fw2"] + params["fb2"])
    return y @ params["fw3"] + params["fb3"]


if __name__ == "__main__":
    key = jax.random.PRNGKey(0)
    pkey, xkey = jax.random.split(key)
    params = init_params(pkey)          # torch-layout params (used by reference)
    TB = 8                              # images per grid step (16 imgs -> 2 steps)
    kparams = prepare_params(params, TB)
    # LeNet-style input: 32x32x3 is required by the 16*5*5 fc1.
    x = jax.random.normal(xkey, (16, 3, 32, 32), jnp.float32)        # NCHW

    out = jax.block_until_ready(two_layer_conv(kparams, x, tb=TB))
    assert out.shape == (16, 10), out.shape

    ref = reference(params, x)
    assert jnp.allclose(out, ref, atol=2e-3, rtol=2e-3), \
        float(jnp.max(jnp.abs(out - ref)))

    print("KERNEL_OK")
</pallas_src>

<mosaic_0001>
module attributes {stable_mosaic.version = 11 : i64} {
  func.func @_lenet_kernel(%arg0: i32, %arg1: memref<256x480xf32, #tpu.memory_space<vmem>>, %arg2: memref<480x168xf32, #tpu.memory_space<vmem>>, %arg3: memref<1x168xf32, #tpu.memory_space<vmem>>, %arg4: memref<112x256xf32, #tpu.memory_space<vmem>>, %arg5: memref<112x256xf32, #tpu.memory_space<vmem>>, %arg6: memref<168x84xf32, #tpu.memory_space<vmem>>, %arg7: memref<168x84xf32, #tpu.memory_space<vmem>>, %arg8: memref<5x80x112xf32, #tpu.memory_space<vmem>>, %arg9: memref<420x160xf32, #tpu.memory_space<vmem>>, %arg10: memref<1x160xf32, #tpu.memory_space<vmem>>, %arg11: memref<40x80xf32, #tpu.memory_space<vmem>>, %arg12: memref<40x80xf32, #tpu.memory_space<vmem>>, %arg13: memref<160x80xf32, #tpu.memory_space<vmem>>, %arg14: memref<160x80xf32, #tpu.memory_space<vmem>>, %arg15: memref<5x8x40xf32, #tpu.memory_space<vmem>>, %arg16: memref<400x128xf32, #tpu.memory_space<vmem>>, %arg17: memref<1x128xf32, #tpu.memory_space<vmem>>, %arg18: memref<128x128xf32, #tpu.memory_space<vmem>>, %arg19: memref<1x128xf32, #tpu.memory_space<vmem>>, %arg20: memref<128x128xf32, #tpu.memory_space<vmem>>, %arg21: memref<1x128xf32, #tpu.memory_space<vmem>>, %arg22: memref<8x128xf32, #tpu.memory_space<vmem>>) attributes {dimension_semantics = [#tpu.dimension_semantics<parallel>], iteration_bounds = array<i64: 2>, scalar_prefetch = 0 : i64, scratch_operands = 0 : i64, tpu.core_type = #tpu.core_type<tc>, window_params = [{transform_indices = @transform_0, window_bounds = array<i64: 256, 480>}, {pipeline_mode = #tpu.pipeline_mode<synchronous>, transform_indices = @transform_1, window_bounds = array<i64: 480, 168>}, {pipeline_mode = #tpu.pipeline_mode<synchronous>, transform_indices = @transform_2, window_bounds = array<i64: 1, 168>}, {pipeline_mode = #tpu.pipeline_mode<synchronous>, transform_indices = @transform_3, window_bounds = array<i64: 112, 256>}, {pipeline_mode = #tpu.pipeline_mode<synchronous>, transform_indices = @transform_4, window_bounds = array<i64: 112, 256>}, {pipeline_mode = #tpu.pipeline_mode<synchronous>, transform_indices = @transform_5, window_bounds = array<i64: 168, 84>}, {pipeline_mode = #tpu.pipeline_mode<synchronous>, transform_indices = @transform_6, window_bounds = array<i64: 168, 84>}, {pipeline_mode = #tpu.pipeline_mode<synchronous>, transform_indices = @transform_7, window_bounds = array<i64: 5, 80, 112>}, {pipeline_mode = #tpu.pipeline_mode<synchronous>, transform_indices = @transform_8, window_bounds = array<i64: 420, 160>}, {pipeline_mode = #tpu.pipeline_mode<synchronous>, transform_indices = @transform_9, window_bounds = array<i64: 1, 160>}, {pipeline_mode = #tpu.pipeline_mode<synchronous>, transform_indices = @transform_10, window_bounds = array<i64: 40, 80>}, {pipeline_mode = #tpu.pipeline_mode<synchronous>, transform_indices = @transform_11, window_bounds = array<i64: 40, 80>}, {pipeline_mode = #tpu.pipeline_mode<synchronous>, transform_indices = @transform_12, window_bounds = array<i64: 160, 80>}, {pipeline_mode = #tpu.pipeline_mode<synchronous>, transform_indices = @transform_13, window_bounds = array<i64: 160, 80>}, {pipeline_mode = #tpu.pipeline_mode<synchronous>, transform_indices = @transform_14, window_bounds = array<i64: 5, 8, 40>}, {pipeline_mode = #tpu.pipeline_mode<synchronous>, transform_indices = @transform_15, window_bounds = array<i64: 400, 128>}, {pipeline_mode = #tpu.pipeline_mode<synchronous>, transform_indices = @transform_16, window_bounds = array<i64: 1, 128>}, {pipeline_mode = #tpu.pipeline_mode<synchronous>, transform_indices = @transform_17, window_bounds = array<i64: 128, 128>}, {pipeline_mode = #tpu.pipeline_mode<synchronous>, transform_indices = @transform_18, window_bounds = array<i64: 1, 128>}, {pipeline_mode = #tpu.pipeline_mode<synchronous>, transform_indices = @transform_19, window_bounds = array<i64: 128, 128>}, {pipeline_mode = #tpu.pipeline_mode<synchronous>, transform_indices = @transform_20, window_bounds = array<i64: 1, 128>}, {transform_indices = @transform_21, window_bounds = array<i64: 8, 128>}]} {
    %c0 = arith.constant 0 : index
    %c0_0 = arith.constant 0 : index
    %0 = vector.load %arg1[%c0, %c0_0] : memref<256x480xf32, #tpu.memory_space<vmem>>, vector<256x480xf32>
    %c0_1 = arith.constant 0 : index
    %c0_2 = arith.constant 0 : index
    %1 = vector.load %arg2[%c0_1, %c0_2] : memref<480x168xf32, #tpu.memory_space<vmem>>, vector<480x168xf32>
    %cst = arith.constant dense<0.000000e+00> : vector<256x168xf32>
    %2 = tpu.matmul %0, %1, %cst {dimension_numbers = #tpu.dot_dimension_numbers<[1], [0], [0], [1], [0, 0, 1, 1], [], []>} : vector<256x480xf32>, vector<480x168xf32>, vector<256x168xf32> -> vector<256x168xf32>
    %c0_3 = arith.constant 0 : index
    %c0_4 = arith.constant 0 : index
    %3 = vector.load %arg3[%c0_3, %c0_4] : memref<1x168xf32, #tpu.memory_space<vmem>>, vector<1x168xf32>
    %4 = vector.broadcast %3 : vector<1x168xf32> to vector<256x168xf32>
    %5 = arith.addf %2, %4 : vector<256x168xf32>
    %cst_5 = arith.constant 0.000000e+00 : f32
    %6 = vector.broadcast %cst_5 : f32 to vector<256x168xf32>
    %7 = arith.maximumf %5, %6 : vector<256x168xf32>
    %c0_6 = arith.constant 0 : index
    %c0_7 = arith.constant 0 : index
    %8 = vector.load %arg4[%c0_6, %c0_7] : memref<112x256xf32, #tpu.memory_space<vmem>>, vector<112x256xf32>
    %cst_8 = arith.constant dense<0.000000e+00> : vector<112x168xf32>
    %9 = tpu.matmul %8, %7, %cst_8 {dimension_numbers = #tpu.dot_dimension_numbers<[1], [0], [0], [1], [0, 0, 1, 1], [], []>} : vector<112x256xf32>, vector<256x168xf32>, vector<112x168xf32> -> vector<112x168xf32>
    %c0_9 = arith.constant 0 : index
    %c0_10 = arith.constant 0 : index
    %10 = vector.load %arg5[%c0_9, %c0_10] : memref<112x256xf32, #tpu.memory_space<vmem>>, vector<112x256xf32>
    %cst_11 = arith.constant dense<0.000000e+00> : vector<112x168xf32>
    %11 = tpu.matmul %10, %7, %cst_11 {dimension_numbers = #tpu.dot_dimension_numbers<[1], [0], [0], [1], [0, 0, 1, 1], [], []>} : vector<112x256xf32>, vector<256x168xf32>, vector<112x168xf32> -> vector<112x168xf32>
    %12 = arith.maximumf %9, %11 : vector<112x168xf32>
    %c0_12 = arith.constant 0 : index
    %c0_13 = arith.constant 0 : index
    %13 = vector.load %arg6[%c0_12, %c0_13] : memref<168x84xf32, #tpu.memory_space<vmem>>, vector<168x84xf32>
    %cst_14 = arith.constant dense<0.000000e+00> : vector<112x84xf32>
    %14 = tpu.matmul %12, %13, %cst_14 {dimension_numbers = #tpu.dot_dimension_numbers<[1], [0], [0], [1], [0, 0, 1, 1], [], []>} : vector<112x168xf32>, vector<168x84xf32>, vector<112x84xf32> -> vector<112x84xf32>
    %c0_15 = arith.constant 0 : index
    %c0_16 = arith.constant 0 : index
    %15 = vector.load %arg7[%c0_15, %c0_16] : memref<168x84xf32, #tpu.memory_space<vmem>>, vector<168x84xf32>
    %cst_17 = arith.constant dense<0.000000e+00> : vector<112x84xf32>
    %16 = tpu.matmul %12, %15, %cst_17 {dimension_numbers = #tpu.dot_dimension_numbers<[1], [0], [0], [1], [0, 0, 1, 1], [], []>} : vector<112x168xf32>, vector<168x84xf32>, vector<112x84xf32> -> vector<112x84xf32>
    %17 = arith.maximumf %14, %16 : vector<112x84xf32>
    %c0_18 = arith.constant 0 : index
    %c0_19 = arith.constant 0 : index
    %c0_20 = arith.constant 0 : index
    %18 = vector.load %arg8[%c0_18, %c0_19, %c0_20] : memref<5x80x112xf32, #tpu.memory_space<vmem>>, vector<1x80x112xf32>
    %19 = vector.shape_cast %18 : vector<1x80x112xf32> to vector<80x112xf32>
    %cst_21 = arith.constant dense<0.000000e+00> : vector<80x84xf32>
    %20 = tpu.matmul %19, %17, %cst_21 {dimension_numbers = #tpu.dot_dimension_numbers<[1], [0], [0], [1], [0, 0, 1, 1], [], []>} : vector<80x112xf32>, vector<112x84xf32>, vector<80x84xf32> -> vector<80x84xf32>
    %c1 = arith.constant 1 : index
    %c0_22 = arith.constant 0 : index
    %c0_23 = arith.constant 0 : index
    %21 = vector.load %arg8[%c1, %c0_22, %c0_23] : memref<5x80x112xf32, #tpu.memory_space<vmem>>, vector<1x80x112xf32>
    %22 = vector.shape_cast %21 : vector<1x80x112xf32> to vector<80x112xf32>
    %cst_24 = arith.constant dense<0.000000e+00> : vector<80x84xf32>
    %23 = tpu.matmul %22, %17, %cst_24 {dimension_numbers = #tpu.dot_dimension_numbers<[1], [0], [0], [1], [0, 0, 1, 1], [], []>} : vector<80x112xf32>, vector<112x84xf32>, vector<80x84xf32> -> vector<80x84xf32>
    %c2 = arith.constant 2 : index
    %c0_25 = arith.constant 0 : index
    %c0_26 = arith.constant 0 : index
    %24 = vector.load %arg8[%c2, %c0_25, %c0_26] : memref<5x80x112xf32, #tpu.memory_space<vmem>>, vector<1x80x112xf32>
    %25 = vector.shape_cast %24 : vector<1x80x112xf32> to vector<80x112xf32>
    %cst_27 = arith.constant dense<0.000000e+00> : vector<80x84xf32>
    %26 = tpu.matmul %25, %17, %cst_27 {dimension_numbers = #tpu.dot_dimension_numbers<[1], [0], [0], [1], [0, 0, 1, 1], [], []>} : vector<80x112xf32>, vector<112x84xf32>, vector<80x84xf32> -> vector<80x84xf32>
    %c3 = arith.constant 3 : index
    %c0_28 = arith.constant 0 : index
    %c0_29 = arith.constant 0 : index
    %27 = vector.load %arg8[%c3, %c0_28, %c0_29] : memref<5x80x112xf32, #tpu.memory_space<vmem>>, vector<1x80x112xf32>
    %28 = vector.shape_cast %27 : vector<1x80x112xf32> to vector<80x112xf32>
    %cst_30 = arith.constant dense<0.000000e+00> : vector<80x84xf32>
    %29 = tpu.matmul %28, %17, %cst_30 {dimension_numbers = #tpu.dot_dimension_numbers<[1], [0], [0], [1], [0, 0, 1, 1], [], []>} : vector<80x112xf32>, vector<112x84xf32>, vector<80x84xf32> -> vector<80x84xf32>
    %c4 = arith.constant 4 : index
    %c0_31 = arith.constant 0 : index
    %c0_32 = arith.constant 0 : index
    %30 = vector.load %arg8[%c4, %c0_31, %c0_32] : memref<5x80x112xf32, #tpu.memory_space<vmem>>, vector<1x80x112xf32>
    %31 = vector.shape_cast %30 : vector<1x80x112xf32> to vector<80x112xf32>
    %cst_33 = arith.constant dense<0.000000e+00> : vector<80x84xf32>
    %32 = tpu.matmul %31, %17, %cst_33 {dimension_numbers = #tpu.dot_dimension_numbers<[1], [0], [0], [1], [0, 0, 1, 1], [], []>} : vector<80x112xf32>, vector<112x84xf32>, vector<80x84xf32> -> vector<80x84xf32>
    %33 = tpu.concatenate %20, %23, %26, %29, %32 in 1 : vector<80x84xf32>, vector<80x84xf32>, vector<80x84xf32>, vector<80x84xf32>, vector<80x84xf32> -> vector<80x420xf32>
    %c0_34 = arith.constant 0 : index
    %c0_35 = arith.constant 0 : index
    %34 = vector.load %arg9[%c0_34, %c0_35] : memref<420x160xf32, #tpu.memory_space<vmem>>, vector<420x160xf32>
    %cst_36 = arith.constant dense<0.000000e+00> : vector<80x160xf32>
    %35 = tpu.matmul %33, %34, %cst_36 {dimension_numbers = #tpu.dot_dimension_numbers<[1], [0], [0], [1], [0, 0, 1, 1], [], []>} : vector<80x420xf32>, vector<420x160xf32>, vector<80x160xf32> -> vector<80x160xf32>
    %c0_37 = arith.constant 0 : index
    %c0_38 = arith.constant 0 : index
    %36 = vector.load %arg10[%c0_37, %c0_38] : memref<1x160xf32, #tpu.memory_space<vmem>>, vector<1x160xf32>
    %37 = vector.broadcast %36 : vector<1x160xf32> to vector<80x160xf32>
    %38 = arith.addf %35, %37 : vector<80x160xf32>
    %cst_39 = arith.constant 0.000000e+00 : f32
    %39 = vector.broadcast %cst_39 : f32 to vector<80x160xf32>
    %40 = arith.maximumf %38, %39 : vector<80x160xf32>
    %c0_40 = arith.constant 0 : index
    %c0_41 = arith.constant 0 : index
    %41 = vector.load %arg11[%c0_40, %c0_41] : memref<40x80xf32, #tpu.memory_space<vmem>>, vector<40x80xf32>
    %cst_42 = arith.constant dense<0.000000e+00> : vector<40x160xf32>
    %42 = tpu.matmul %41, %40, %cst_42 {dimension_numbers = #tpu.dot_dimension_numbers<[1], [0], [0], [1], [0, 0, 1, 1], [], []>} : vector<40x80xf32>, vector<80x160xf32>, vector<40x160xf32> -> vector<40x160xf32>
    %c0_43 = arith.constant 0 : index
    %c0_44 = arith.constant 0 : index
    %43 = vector.load %arg12[%c0_43, %c0_44] : memref<40x80xf32, #tpu.memory_space<vmem>>, vector<40x80xf32>
    %cst_45 = arith.constant dense<0.000000e+00> : vector<40x160xf32>
    %44 = tpu.matmul %43, %40, %cst_45 {dimension_numbers = #tpu.dot_dimension_numbers<[1], [0], [0], [1], [0, 0, 1, 1], [], []>} : vector<40x80xf32>, vector<80x160xf32>, vector<40x160xf32> -> vector<40x160xf32>
    %45 = arith.maximumf %42, %44 : vector<40x160xf32>
    %c0_46 = arith.constant 0 : index
    %c0_47 = arith.constant 0 : index
    %46 = vector.load %arg13[%c0_46, %c0_47] : memref<160x80xf32, #tpu.memory_space<vmem>>, vector<160x80xf32>
    %cst_48 = arith.constant dense<0.000000e+00> : vector<40x80xf32>
    %47 = tpu.matmul %45, %46, %cst_48 {dimension_numbers = #tpu.dot_dimension_numbers<[1], [0], [0], [1], [0, 0, 1, 1], [], []>} : vector<40x160xf32>, vector<160x80xf32>, vector<40x80xf32> -> vector<40x80xf32>
    %c0_49 = arith.constant 0 : index
    %c0_50 = arith.constant 0 : index
    %48 = vector.load %arg14[%c0_49, %c0_50] : memref<160x80xf32, #tpu.memory_space<vmem>>, vector<160x80xf32>
    %cst_51 = arith.constant dense<0.000000e+00> : vector<40x80xf32>
    %49 = tpu.matmul %45, %48, %cst_51 {dimension_numbers = #tpu.dot_dimension_numbers<[1], [0], [0], [1], [0, 0, 1, 1], [], []>} : vector<40x160xf32>, vector<160x80xf32>, vector<40x80xf32> -> vector<40x80xf32>
    %50 = arith.maximumf %47, %49 : vector<40x80xf32>
    %c0_52 = arith.constant 0 : index
    %c0_53 = arith.constant 0 : index
    %c0_54 = arith.constant 0 : index
    %51 = vector.load %arg15[%c0_52, %c0_53, %c0_54] : memref<5x8x40xf32, #tpu.memory_space<vmem>>, vector<1x8x40xf32>
    %52 = vector.shape_cast %51 : vector<1x8x40xf32> to vector<8x40xf32>
    %cst_55 = arith.constant dense<0.000000e+00> : vector<8x80xf32>
    %53 = tpu.matmul %52, %50, %cst_55 {dimension_numbers = #tpu.dot_dimension_numbers<[1], [0], [0], [1], [0, 0, 1, 1], [], []>} : vector<8x40xf32>, vector<40x80xf32>, vector<8x80xf32> -> vector<8x80xf32>
    %c1_56 = arith.constant 1 : index
    %c0_57 = arith.constant 0 : index
    %c0_58 = arith.constant 0 : index
    %54 = vector.load %arg15[%c1_56, %c0_57, %c0_58] : memref<5x8x40xf32, #tpu.memory_space<vmem>>, vector<1x8x40xf32>
    %55 = vector.shape_cast %54 : vector<1x8x40xf32> to vector<8x40xf32>
    %cst_59 = arith.constant dense<0.000000e+00> : vector<8x80xf32>
    %56 = tpu.matmul %55, %50, %cst_59 {dimension_numbers = #tpu.dot_dimension_numbers<[1], [0], [0], [1], [0, 0, 1, 1], [], []>} : vector<8x40xf32>, vector<40x80xf32>, vector<8x80xf32> -> vector<8x80xf32>
    %c2_60 = arith.constant 2 : index
    %c0_61 = arith.constant 0 : index
    %c0_62 = arith.constant 0 : index
    %57 = vector.load %arg15[%c2_60, %c0_61, %c0_62] : memref<5x8x40xf32, #tpu.memory_space<vmem>>, vector<1x8x40xf32>
    %58 = vector.shape_cast %57 : vector<1x8x40xf32> to vector<8x40xf32>
    %cst_63 = arith.constant dense<0.000000e+00> : vector<8x80xf32>
    %59 = tpu.matmul %58, %50, %cst_63 {dimension_numbers = #tpu.dot_dimension_numbers<[1], [0], [0], [1], [0, 0, 1, 1], [], []>} : vector<8x40xf32>, vector<40x80xf32>, vector<8x80xf32> -> vector<8x80xf32>
    %c3_64 = arith.constant 3 : index
    %c0_65 = arith.constant 0 : index
    %c0_66 = arith.constant 0 : index
    %60 = vector.load %arg15[%c3_64, %c0_65, %c0_66] : memref<5x8x40xf32, #tpu.memory_space<vmem>>, vector<1x8x40xf32>
    %61 = vector.shape_cast %60 : vector<1x8x40xf32> to vector<8x40xf32>
    %cst_67 = arith.constant dense<0.000000e+00> : vector<8x80xf32>
    %62 = tpu.matmul %61, %50, %cst_67 {dimension_numbers = #tpu.dot_dimension_numbers<[1], [0], [0], [1], [0, 0, 1, 1], [], []>} : vector<8x40xf32>, vector<40x80xf32>, vector<8x80xf32> -> vector<8x80xf32>
    %c4_68 = arith.constant 4 : index
    %c0_69 = arith.constant 0 : index
    %c0_70 = arith.constant 0 : index
    %63 = vector.load %arg15[%c4_68, %c0_69, %c0_70] : memref<5x8x40xf32, #tpu.memory_space<vmem>>, vector<1x8x40xf32>
    %64 = vector.shape_cast %63 : vector<1x8x40xf32> to vector<8x40xf32>
    %cst_71 = arith.constant dense<0.000000e+00> : vector<8x80xf32>
    %65 = tpu.matmul %64, %50, %cst_71 {dimension_numbers = #tpu.dot_dimension_numbers<[1], [0], [0], [1], [0, 0, 1, 1], [], []>} : vector<8x40xf32>, vector<40x80xf32>, vector<8x80xf32> -> vector<8x80xf32>
    %66 = tpu.concatenate %53, %56, %59, %62, %65 in 1 : vector<8x80xf32>, vector<8x80xf32>, vector<8x80xf32>, vector<8x80xf32>, vector<8x80xf32> -> vector<8x400xf32>
    %c0_72 = arith.constant 0 : index
    %c0_73 = arith.constant 0 : index
    %67 = vector.load %arg16[%c0_72, %c0_73] : memref<400x128xf32, #tpu.memory_space<vmem>>, vector<400x128xf32>
    %cst_74 = arith.constant dense<0.000000e+00> : vector<8x128xf32>
    %68 = tpu.matmul %66, %67, %cst_74 {dimension_numbers = #tpu.dot_dimension_numbers<[1], [0], [0], [1], [0, 0, 1, 1], [], []>} : vector<8x400xf32>, vector<400x128xf32>, vector<8x128xf32> -> vector<8x128xf32>
    %c0_75 = arith.constant 0 : index
    %c0_76 = arith.constant 0 : index
    %69 = vector.load %arg17[%c0_75, %c0_76] : memref<1x128xf32, #tpu.memory_space<vmem>>, vector<1x128xf32>
    %70 = vector.broadcast %69 : vector<1x128xf32> to vector<8x128xf32>
    %71 = arith.addf %68, %70 : vector<8x128xf32>
    %cst_77 = arith.constant 0.000000e+00 : f32
    %72 = vector.broadcast %cst_77 : f32 to vector<8x128xf32>
    %73 = arith.maximumf %71, %72 : vector<8x128xf32>
    %c0_78 = arith.constant 0 : index
    %c0_79 = arith.constant 0 : index
    %74 = vector.load %arg18[%c0_78, %c0_79] : memref<128x128xf32, #tpu.memory_space<vmem>>, vector<128x128xf32>
    %cst_80 = arith.constant dense<0.000000e+00> : vector<8x128xf32>
    %75 = tpu.matmul %73, %74, %cst_80 {dimension_numbers = #tpu.dot_dimension_numbers<[1], [0], [0], [1], [0, 0, 1, 1], [], []>} : vector<8x128xf32>, vector<128x128xf32>, vector<8x128xf32> -> vector<8x128xf32>
    %c0_81 = arith.constant 0 : index
    %c0_82 = arith.constant 0 : index
    %76 = vector.load %arg19[%c0_81, %c0_82] : memref<1x128xf32, #tpu.memory_space<vmem>>, vector<1x128xf32>
    %77 = vector.broadcast %76 : vector<1x128xf32> to vector<8x128xf32>
    %78 = arith.addf %75, %77 : vector<8x128xf32>
    %cst_83 = arith.constant 0.000000e+00 : f32
    %79 = vector.broadcast %cst_83 : f32 to vector<8x128xf32>
    %80 = arith.maximumf %78, %79 : vector<8x128xf32>
    %c0_84 = arith.constant 0 : index
    %c0_85 = arith.constant 0 : index
    %81 = vector.load %arg20[%c0_84, %c0_85] : memref<128x128xf32, #tpu.memory_space<vmem>>, vector<128x128xf32>
    %cst_86 = arith.constant dense<0.000000e+00> : vector<8x128xf32>
    %82 = tpu.matmul %80, %81, %cst_86 {dimension_numbers = #tpu.dot_dimension_numbers<[1], [0], [0], [1], [0, 0, 1, 1], [], []>} : vector<8x128xf32>, vector<128x128xf32>, vector<8x128xf32> -> vector<8x128xf32>
    %c0_87 = arith.constant 0 : index
    %c0_88 = arith.constant 0 : index
    %83 = vector.load %arg21[%c0_87, %c0_88] : memref<1x128xf32, #tpu.memory_space<vmem>>, vector<1x128xf32>
    %84 = vector.broadcast %83 : vector<1x128xf32> to vector<8x128xf32>
    %85 = arith.addf %82, %84 : vector<8x128xf32>
    %c0_89 = arith.constant 0 : index
    %c0_90 = arith.constant 0 : index
    %86 = vector.load %arg22[%c0_89, %c0_90] : memref<8x128xf32, #tpu.memory_space<vmem>>, vector<8x128xf32>
    tpu.vector_store %arg22[%c0_89, %c0_90], %85 {strides = array<i32>} : memref<8x128xf32, #tpu.memory_space<vmem>>, vector<8x128xf32>,
    return
  }
  func.func @transform_0(%arg0: i32) -> (i32, i32) {
    %c0_i32 = arith.constant 0 : i32
    %c0_i32_0 = arith.constant 0 : i32
    return %arg0, %c0_i32 : i32, i32
  }
  func.func @transform_1(%arg0: i32) -> (i32, i32) {
    %c0_i32 = arith.constant 0 : i32
    %c0_i32_0 = arith.constant 0 : i32
    %c0_i32_1 = arith.constant 0 : i32
    return %c0_i32, %c0_i32_0 : i32, i32
  }
  func.func @transform_2(%arg0: i32) -> (i32, i32) {
    %c0_i32 = arith.constant 0 : i32
    %c0_i32_0 = arith.constant 0 : i32
    %c0_i32_1 = arith.constant 0 : i32
    return %c0_i32, %c0_i32_0 : i32, i32
  }
  func.func @transform_3(%arg0: i32) -> (i32, i32) {
    %c0_i32 = arith.constant 0 : i32
    %c0_i32_0 = arith.constant 0 : i32
    %c0_i32_1 = arith.constant 0 : i32
    return %c0_i32, %c0_i32_0 : i32, i32
  }
  func.func @transform_4(%arg0: i32) -> (i32, i32) {
    %c0_i32 = arith.constant 0 : i32
    %c0_i32_0 = arith.constant 0 : i32
    %c0_i32_1 = arith.constant 0 : i32
    return %c0_i32, %c0_i32_0 : i32, i32
  }
  func.func @transform_5(%arg0: i32) -> (i32, i32) {
    %c0_i32 = arith.constant 0 : i32
    %c0_i32_0 = arith.constant 0 : i32
    %c0_i32_1 = arith.constant 0 : i32
    return %c0_i32, %c0_i32_0 : i32, i32
  }
  func.func @transform_6(%arg0: i32) -> (i32, i32) {
    %c0_i32 = arith.constant 0 : i32
    %c0_i32_0 = arith.constant 0 : i32
    %c0_i32_1 = arith.constant 0 : i32
    return %c0_i32, %c0_i32_0 : i32, i32
  }
  func.func @transform_7(%arg0: i32) -> (i32, i32, i32) {
    %c0_i32 = arith.constant 0 : i32
    %c0_i32_0 = arith.constant 0 : i32
    %c0_i32_1 = arith.constant 0 : i32
    %c0_i32_2 = arith.constant 0 : i32
    return %c0_i32, %c0_i32_0, %c0_i32_1 : i32, i32, i32
  }
  func.func @transform_8(%arg0: i32) -> (i32, i32) {
    %c0_i32 = arith.constant 0 : i32
    %c0_i32_0 = arith.constant 0 : i32
    %c0_i32_1 = arith.constant 0 : i32
    return %c0_i32, %c0_i32_0 : i32, i32
  }
  func.func @transform_9(%arg0: i32) -> (i32, i32) {
    %c0_i32 = arith.constant 0 : i32
    %c0_i32_0 = arith.constant 0 : i32
    %c0_i32_1 = arith.constant 0 : i32
    return %c0_i32, %c0_i32_0 : i32, i32
  }
  func.func @transform_10(%arg0: i32) -> (i32, i32) {
    %c0_i32 = arith.constant 0 : i32
    %c0_i32_0 = arith.constant 0 : i32
    %c0_i32_1 = arith.constant 0 : i32
    return %c0_i32, %c0_i32_0 : i32, i32
  }
  func.func @transform_11(%arg0: i32) -> (i32, i32) {
    %c0_i32 = arith.constant 0 : i32
    %c0_i32_0 = arith.constant 0 : i32
    %c0_i32_1 = arith.constant 0 : i32
    return %c0_i32, %c0_i32_0 : i32, i32
  }
  func.func @transform_12(%arg0: i32) -> (i32, i32) {
    %c0_i32 = arith.constant 0 : i32
    %c0_i32_0 = arith.constant 0 : i32
    %c0_i32_1 = arith.constant 0 : i32
    return %c0_i32, %c0_i32_0 : i32, i32
  }
  func.func @transform_13(%arg0: i32) -> (i32, i32) {
    %c0_i32 = arith.constant 0 : i32
    %c0_i32_0 = arith.constant 0 : i32
    %c0_i32_1 = arith.constant 0 : i32
    return %c0_i32, %c0_i32_0 : i32, i32
  }
  func.func @transform_14(%arg0: i32) -> (i32, i32, i32) {
    %c0_i32 = arith.constant 0 : i32
    %c0_i32_0 = arith.constant 0 : i32
    %c0_i32_1 = arith.constant 0 : i32
    %c0_i32_2 = arith.constant 0 : i32
    return %c0_i32, %c0_i32_0, %c0_i32_1 : i32, i32, i32
  }
  func.func @transform_15(%arg0: i32) -> (i32, i32) {
    %c0_i32 = arith.constant 0 : i32
    %c0_i32_0 = arith.constant 0 : i32
    %c0_i32_1 = arith.constant 0 : i32
    return %c0_i32, %c0_i32_0 : i32, i32
  }
  func.func @transform_16(%arg0: i32) -> (i32, i32) {
    %c0_i32 = arith.constant 0 : i32
    %c0_i32_0 = arith.constant 0 : i32
    %c0_i32_1 = arith.constant 0 : i32
    return %c0_i32, %c0_i32_0 : i32, i32
  }
  func.func @transform_17(%arg0: i32) -> (i32, i32) {
    %c0_i32 = arith.constant 0 : i32
    %c0_i32_0 = arith.constant 0 : i32
    %c0_i32_1 = arith.constant 0 : i32
    return %c0_i32, %c0_i32_0 : i32, i32
  }
  func.func @transform_18(%arg0: i32) -> (i32, i32) {
    %c0_i32 = arith.constant 0 : i32
    %c0_i32_0 = arith.constant 0 : i32
    %c0_i32_1 = arith.constant 0 : i32
    return %c0_i32, %c0_i32_0 : i32, i32
  }
  func.func @transform_19(%arg0: i32) -> (i32, i32) {
    %c0_i32 = arith.constant 0 : i32
    %c0_i32_0 = arith.constant 0 : i32
    %c0_i32_1 = arith.constant 0 : i32
    return %c0_i32, %c0_i32_0 : i32, i32
  }
  func.func @transform_20(%arg0: i32) -> (i32, i32) {
    %c0_i32 = arith.constant 0 : i32
    %c0_i32_0 = arith.constant 0 : i32
    %c0_i32_1 = arith.constant 0 : i32
    return %c0_i32, %c0_i32_0 : i32, i32
  }
  func.func @transform_21(%arg0: i32) -> (i32, i32) {
    %c0_i32 = arith.constant 0 : i32
    %c0_i32_0 = arith.constant 0 : i32
    return %arg0, %c0_i32 : i32, i32
  }
}

</mosaic_0001>

<llo_original>
// kernel: tpu_custom_call.1
$region0: #{tpu_custom_call.1}
  #allocation0 [shape = 'u32[]', space=smem, size = 0x4, offset = 0x4, fixed_abs, tag = 'smem constant byte address 0x4 - core index']
  #allocation1 [shape = 'u32[144,128]{1,0:T(1,128)}', space=vmem, size = 0x12000, scoped, tag = 'internal scratch']
  %s0 = inlined_call_operand.vmem [shape: f32[512,480], index: 0, kind: input, shape index: {}]
  %s1 = inlined_call_operand.vmem [shape: f32[480,168], index: 1, kind: input, shape index: {}]
  %s2 = inlined_call_operand.vmem [shape: f32[1,168], index: 2, kind: input, shape index: {}]
  %s3 = inlined_call_operand.vmem [shape: f32[112,256], index: 3, kind: input, shape index: {}]
  %s4 = inlined_call_operand.vmem [shape: f32[112,256], index: 4, kind: input, shape index: {}]
  %s5 = inlined_call_operand.vmem [shape: f32[168,84], index: 5, kind: input, shape index: {}]
  %s6 = inlined_call_operand.vmem [shape: f32[168,84], index: 6, kind: input, shape index: {}]
  %s7 = inlined_call_operand.vmem [shape: f32[5,80,112], index: 7, kind: input, shape index: {}]
  %s8 = inlined_call_operand.vmem [shape: f32[420,160], index: 8, kind: input, shape index: {}]
  %s9 = inlined_call_operand.vmem [shape: f32[1,160], index: 9, kind: input, shape index: {}]
  %s10 = inlined_call_operand.vmem [shape: f32[40,80], index: 10, kind: input, shape index: {}]
  %s11 = inlined_call_operand.vmem [shape: f32[40,80], index: 11, kind: input, shape index: {}]
  %s12 = inlined_call_operand.vmem [shape: f32[160,80], index: 12, kind: input, shape index: {}]
  %s13 = inlined_call_operand.vmem [shape: f32[160,80], index: 13, kind: input, shape index: {}]
  %s14 = inlined_call_operand.vmem [shape: f32[5,8,40], index: 14, kind: input, shape index: {}]
  %s15 = inlined_call_operand.vmem [shape: f32[400,128], index: 15, kind: input, shape index: {}]
  %s16 = inlined_call_operand.vmem [shape: f32[1,128], index: 16, kind: input, shape index: {}]
  %s17 = inlined_call_operand.vmem [shape: f32[128,128], index: 17, kind: input, shape index: {}]
  %s18 = inlined_call_operand.vmem [shape: f32[1,128], index: 18, kind: input, shape index: {}]
  %s19 = inlined_call_operand.vmem [shape: f32[128,128], index: 19, kind: input, shape index: {}]
  %s20 = inlined_call_operand.vmem [shape: f32[1,128], index: 20, kind: input, shape index: {}]
  %s21 = inlined_call_operand.hbm [shape: f32[16,128], index: 21, kind: output, shape index: {}]
  %s22 = sld [smem:[#allocation0]]
  $region117: #{tpu_custom_call.1} parent=0
    _
  %s24 = ssub.s32 1, %s22
  %s25 = scalar_select 0, %s24, %s22
  $region1: #{tpu_custom_call.1} parent=0
    #allocation2 [shape = 'u8[8192]{0}', space=vmem, size = 0x2000, scoped, tag = 'output window, operand 0']
    #allocation3 [shape = 's32[2]{0}', space=sflag, size = 0x8, scoped, tag = 'scoped memory for tpu_custom_call.1']
    %26 = vsyncpa [#allocation3], 0
    %s27 = scalar_lea.sflag [#allocation3], 1
    %28 = vsyncpa %s27, 0
    loop: start=0, step=1, limit=4
    $region2: #{tpu_custom_call.1} parent=1 // loop_pre_header
      _
    $region3: #{tpu_custom_call.1} parent=1 // loop_header
      %s30 = sphi 0, %s34
      %p31 = scmp.ge.s32.totalorder %s30, 4
      %s40 = sphi 0, %s42
      %s43 = sphi 0, %s40
      %s44 = sphi 0, %s43
      %s60 = sphi 0, %s44
      %s64 = sphi 0, %s64
      %s66 = sphi 0, %s64
      %s67 = sphi 0, %s66
      %s81 = sphi 0, %s67
      %s85 = sphi 0, %s85
      %s87 = sphi 0, %s85
      %s88 = sphi 0, %s87
      %s102 = sphi 0, %s88
      %s106 = sphi 0, %s106
      %s108 = sphi 0, %s106
      %s109 = sphi 0, %s108
      %s123 = sphi 0, %s109
      %s127 = sphi 0, %s127
      %s129 = sphi 0, %s127
      %s130 = sphi 0, %s129
      %s144 = sphi 0, %s130
      %s148 = sphi 0, %s148
      %s150 = sphi 0, %s148
      %s151 = sphi 0, %s150
      %s165 = sphi 0, %s151
      %s169 = sphi 0, %s169
      %s171 = sphi 0, %s169
      %s172 = sphi 0, %s171
      %s186 = sphi 0, %s172
      %s190 = sphi 0, %s190
      %s192 = sphi 0, %s190
      %s193 = sphi 0, %s192
      %s207 = sphi 0, %s193
      %s211 = sphi 0, %s211
      %s213 = sphi 0, %s211
      %s214 = sphi 0, %s213
      %s228 = sphi 0, %s214
      %s232 = sphi 0, %s232
      %s234 = sphi 0, %s232
      %s235 = sphi 0, %s234
      %s249 = sphi 0, %s235
      %s253 = sphi 0, %s253
      %s255 = sphi 0, %s253
      %s256 = sphi 0, %s255
      %s270 = sphi 0, %s256
      %s274 = sphi 0, %s274
      %s276 = sphi 0, %s274
      %s277 = sphi 0, %s276
      %s291 = sphi 0, %s277
      %s295 = sphi 0, %s295
      %s297 = sphi 0, %s295
      %s298 = sphi 0, %s297
      %s312 = sphi 0, %s298
      %s316 = sphi 0, %s316
      %s318 = sphi 0, %s316
      %s319 = sphi 0, %s318
      %s333 = sphi 0, %s319
      %s337 = sphi 0, %s337
      %s339 = sphi 0, %s337
      %s340 = sphi 0, %s339
      %s354 = sphi 0, %s340
      %s358 = sphi 0, %s358
      %s360 = sphi 0, %s358
      %s361 = sphi 0, %s360
      %s375 = sphi 0, %s361
      %s379 = sphi 0, %s379
      %s381 = sphi 0, %s379
      %s382 = sphi 0, %s381
      %s396 = sphi 0, %s382
      %s400 = sphi 0, %s400
      %s402 = sphi 0, %s400
      %s403 = sphi 0, %s402
      %s417 = sphi 0, %s403
      %s421 = sphi 0, %s421
      %s423 = sphi 0, %s421
      %s424 = sphi 0, %s423
      %s438 = sphi 0, %s424
      %s442 = sphi 0, %s442
      %s444 = sphi 0, %s442
      %s445 = sphi 0, %s444
      %s459 = sphi 0, %s445
      %s463 = sphi 0, %s463
      %s465 = sphi 0, %s463
      %s466 = sphi 0, %s465
      %s480 = sphi 0, %s466
      %s486 = sphi 0, %s488
      %s489 = sphi 0, %s486
      %s490 = sphi 0, %s489
      %s506 = sphi 0, %s490
    $region4: #{tpu_custom_call.1} parent=1 // loop_header_branch
      %33 = sbr.rel (%p31) target = $region8
    $region5: #{tpu_custom_call.1} parent=1 // loop_body
      %s35 = ssub.s32 %s30, 1
      %s36 = ssub.s32 %s30, 2
      %s37 = sadd.s32 %s30, 1
      %s38 = ssub.s32 %s30, %s37
      %p39 = scmp.eq.s32.totalorder %s38, 0
      %s41 = sadd.s32 %s40, 1
      %s42 = scalar_select %p39, %s40, %s41
      %p45 = pneg %p39
      %p46 = scmp.eq.s32.totalorder %s30, 1
      %p47 = por %p45, %p46
      %p48 = scmp.ne.s32.totalorder %s40, %s43
      %p49 = scmp.eq.s32.totalorder %s30, 0
      %p50 = por %p48, %p49
      %p51 = scmp.ne.s32.totalorder %s40, %s43
      %p52 = scmp.eq.s32.totalorder %s35, 1
      %p53 = por %p51, %p52
      %p54 = scmp.ne.s32.totalorder %s43, %s44
      %p55 = scmp.eq.s32.totalorder %s35, 0
      %p56 = por %p54, %p55
      %p57 = scmp.ne.s32.totalorder %s43, %s44
      %p58 = scmp.eq.s32.totalorder %s36, 1
      %p59 = por %p57, %p58
      %p61 = scmp.ne.s32.totalorder %s44, %s60
      %p62 = scmp.eq.s32.totalorder %s36, 0
      %p63 = por %p61, %p62
      %s65 = sadd.s32 %s64, 1
      %p68 = scmp.eq.s32.totalorder %s30, 1
      %p69 = scmp.ne.s32.totalorder %s64, %s66
      %p70 = scmp.eq.s32.totalorder %s30, 0
      %p71 = por %p69, %p70
      %p72 = scmp.ne.s32.totalorder %s64, %s66
      %p73 = scmp.eq.s32.totalorder %s35, 1
      %p74 = por %p72, %p73
      %p75 = scmp.ne.s32.totalorder %s66, %s67
      %p76 = scmp.eq.s32.totalorder %s35, 0
      %p77 = por %p75, %p76
      %p78 = scmp.ne.s32.totalorder %s66, %s67
      %p79 = scmp.eq.s32.totalorder %s36, 1
      %p80 = por %p78, %p79
      %p82 = scmp.ne.s32.totalorder %s67, %s81
      %p83 = scmp.eq.s32.totalorder %s36, 0
      %p84 = por %p82, %p83
      %s86 = sadd.s32 %s85, 1
      %p89 = scmp.eq.s32.totalorder %s30, 1
      %p90 = scmp.ne.s32.totalorder %s85, %s87
      %p91 = scmp.eq.s32.totalorder %s30, 0
      %p92 = por %p90, %p91
      %p93 = scmp.ne.s32.totalorder %s85, %s87
      %p94 = scmp.eq.s32.totalorder %s35, 1
      %p95 = por %p93, %p94
      %p96 = scmp.ne.s32.totalorder %s87, %s88
      %p97 = scmp.eq.s32.totalorder %s35, 0
      %p98 = por %p96, %p97
      %p99 = scmp.ne.s32.totalorder %s87, %s88
      %p100 = scmp.eq.s32.totalorder %s36, 1
      %p101 = por %p99, %p100
      %p103 = scmp.ne.s32.totalorder %s88, %s102
      %p104 = scmp.eq.s32.totalorder %s36, 0
      %p105 = por %p103, %p104
      %s107 = sadd.s32 %s106, 1
      %p110 = scmp.eq.s32.totalorder %s30, 1
      %p111 = scmp.ne.s32.totalorder %s106, %s108
      %p112 = scmp.eq.s32.totalorder %s30, 0
      %p113 = por %p111, %p112
      %p114 = scmp.ne.s32.totalorder %s106, %s108
      %p115 = scmp.eq.s32.totalorder %s35, 1
      %p116 = por %p114, %p115
      %p117 = scmp.ne.s32.totalorder %s108, %s109
      %p118 = scmp.eq.s32.totalorder %s35, 0
      %p119 = por %p117, %p118
      %p120 = scmp.ne.s32.totalorder %s108, %s109
      %p121 = scmp.eq.s32.totalorder %s36, 1
      %p122 = por %p120, %p121
      %p124 = scmp.ne.s32.totalorder %s109, %s123
      %p125 = scmp.eq.s32.totalorder %s36, 0
      %p126 = por %p124, %p125
      %s128 = sadd.s32 %s127, 1
      %p131 = scmp.eq.s32.totalorder %s30, 1
      %p132 = scmp.ne.s32.totalorder %s127, %s129
      %p133 = scmp.eq.s32.totalorder %s30, 0
      %p134 = por %p132, %p133
      %p135 = scmp.ne.s32.totalorder %s127, %s129
      %p136 = scmp.eq.s32.totalorder %s35, 1
      %p137 = por %p135, %p136
      %p138 = scmp.ne.s32.totalorder %s129, %s130
      %p139 = scmp.eq.s32.totalorder %s35, 0
      %p140 = por %p138, %p139
      %p141 = scmp.ne.s32.totalorder %s129, %s130
      %p142 = scmp.eq.s32.totalorder %s36, 1
      %p143 = por %p141, %p142
      %p145 = scmp.ne.s32.totalorder %s130, %s144
      %p146 = scmp.eq.s32.totalorder %s36, 0
      %p147 = por %p145, %p146
      %s149 = sadd.s32 %s148, 1
      %p152 = scmp.eq.s32.totalorder %s30, 1
      %p153 = scmp.ne.s32.totalorder %s148, %s150
      %p154 = scmp.eq.s32.totalorder %s30, 0
      %p155 = por %p153, %p154
      %p156 = scmp.ne.s32.totalorder %s148, %s150
      %p157 = scmp.eq.s32.totalorder %s35, 1
      %p158 = por %p156, %p157
      %p159 = scmp.ne.s32.totalorder %s150, %s151
      %p160 = scmp.eq.s32.totalorder %s35, 0
      %p161 = por %p159, %p160
      %p162 = scmp.ne.s32.totalorder %s150, %s151
      %p163 = scmp.eq.s32.totalorder %s36, 1
      %p164 = por %p162, %p163
      %p166 = scmp.ne.s32.totalorder %s151, %s165
      %p167 = scmp.eq.s32.totalorder %s36, 0
      %p168 = por %p166, %p167
      %s170 = sadd.s32 %s169, 1
      %p173 = scmp.eq.s32.totalorder %s30, 1
      %p174 = scmp.ne.s32.totalorder %s169, %s171
      %p175 = scmp.eq.s32.totalorder %s30, 0
      %p176 = por %p174, %p175
      %p177 = scmp.ne.s32.totalorder %s169, %s171
      %p178 = scmp.eq.s32.totalorder %s35, 1
      %p179 = por %p177, %p178
      %p180 = scmp.ne.s32.totalorder %s171, %s172
      %p181 = scmp.eq.s32.totalorder %s35, 0
      %p182 = por %p180, %p181
      %p183 = scmp.ne.s32.totalorder %s171, %s172
      %p184 = scmp.eq.s32.totalorder %s36, 1
      %p185 = por %p183, %p184
      %p187 = scmp.ne.s32.totalorder %s172, %s186
      %p188 = scmp.eq.s32.totalorder %s36, 0
      %p189 = por %p187, %p188
      %s191 = sadd.s32 %s190, 1
      %p194 = scmp.eq.s32.totalorder %s30, 1
      %p195 = scmp.ne.s32.totalorder %s190, %s192
      %p196 = scmp.eq.s32.totalorder %s30, 0
      %p197 = por %p195, %p196
      %p198 = scmp.ne.s32.totalorder %s190, %s192
      %p199 = scmp.eq.s32.totalorder %s35, 1
      %p200 = por %p198, %p199
      %p201 = scmp.ne.s32.totalorder %s192, %s193
      %p202 = scmp.eq.s32.totalorder %s35, 0
      %p203 = por %p201, %p202
      %p204 = scmp.ne.s32.totalorder %s192, %s193
      %p205 = scmp.eq.s32.totalorder %s36, 1
      %p206 = por %p204, %p205
      %p208 = scmp.ne.s32.totalorder %s193, %s207
      %p209 = scmp.eq.s32.totalorder %s36, 0
      %p210 = por %p208, %p209
      %s212 = sadd.s32 %s211, 1
      %p215 = scmp.eq.s32.totalorder %s30, 1
      %p216 = scmp.ne.s32.totalorder %s211, %s213
      %p217 = scmp.eq.s32.totalorder %s30, 0
      %p218 = por %p216, %p217
      %p219 = scmp.ne.s32.totalorder %s211, %s213
      %p220 = scmp.eq.s32.totalorder %s35, 1
      %p221 = por %p219, %p220
      %p222 = scmp.ne.s32.totalorder %s213, %s214
      %p223 = scmp.eq.s32.totalorder %s35, 0
      %p224 = por %p222, %p223
      %p225 = scmp.ne.s32.totalorder %s213, %s214
      %p226 = scmp.eq.s32.totalorder %s36, 1
      %p227 = por %p225, %p226
      %p229 = scmp.ne.s32.totalorder %s214, %s228
      %p230 = scmp.eq.s32.totalorder %s36, 0
      %p231 = por %p229, %p230
      %s233 = sadd.s32 %s232, 1
      %p236 = scmp.eq.s32.totalorder %s30, 1
      %p237 = scmp.ne.s32.totalorder %s232, %s234
      %p238 = scmp.eq.s32.totalorder %s30, 0
      %p239 = por %p237, %p238
      %p240 = scmp.ne.s32.totalorder %s232, %s234
      %p241 = scmp.eq.s32.totalorder %s35, 1
      %p242 = por %p240, %p241
      %p243 = scmp.ne.s32.totalorder %s234, %s235
      %p244 = scmp.eq.s32.totalorder %s35, 0
      %p245 = por %p243, %p244
      %p246 = scmp.ne.s32.totalorder %s234, %s235
      %p247 = scmp.eq.s32.totalorder %s36, 1
      %p248 = por %p246, %p247
      %p250 = scmp.ne.s32.totalorder %s235, %s249
      %p251 = scmp.eq.s32.totalorder %s36, 0
      %p252 = por %p250, %p251
      %s254 = sadd.s32 %s253, 1
      %p257 = scmp.eq.s32.totalorder %s30, 1
      %p258 = scmp.ne.s32.totalorder %s253, %s255
      %p259 = scmp.eq.s32.totalorder %s30, 0
      %p260 = por %p258, %p259
      %p261 = scmp.ne.s32.totalorder %s253, %s255
      %p262 = scmp.eq.s32.totalorder %s35, 1
      %p263 = por %p261, %p262
      %p264 = scmp.ne.s32.totalorder %s255, %s256
      %p265 = scmp.eq.s32.totalorder %s35, 0
      %p266 = por %p264, %p265
      %p267 = scmp.ne.s32.totalorder %s255, %s256
      %p268 = scmp.eq.s32.totalorder %s36, 1
      %p269 = por %p267, %p268
      %p271 = scmp.ne.s32.totalorder %s256, %s270
      %p272 = scmp.eq.s32.totalorder %s36, 0
      %p273 = por %p271, %p272
      %s275 = sadd.s32 %s274, 1
      %p278 = scmp.eq.s32.totalorder %s30, 1
      %p279 = scmp.ne.s32.totalorder %s274, %s276
      %p280 = scmp.eq.s32.totalorder %s30, 0
      %p281 = por %p279, %p280
      %p282 = scmp.ne.s32.totalorder %s274, %s276
      %p283 = scmp.eq.s32.totalorder %s35, 1
      %p284 = por %p282, %p283
      %p285 = scmp.ne.s32.totalorder %s276, %s277
      %p286 = scmp.eq.s32.totalorder %s35, 0
      %p287 = por %p285, %p286
      %p288 = scmp.ne.s32.totalorder %s276, %s277
      %p289 = scmp.eq.s32.totalorder %s36, 1
      %p290 = por %p288, %p289
      %p292 = scmp.ne.s32.totalorder %s277, %s291
      %p293 = scmp.eq.s32.totalorder %s36, 0
      %p294 = por %p292, %p293
      %s296 = sadd.s32 %s295, 1
      %p299 = scmp.eq.s32.totalorder %s30, 1
      %p300 = scmp.ne.s32.totalorder %s295, %s297
      %p301 = scmp.eq.s32.totalorder %s30, 0
      %p302 = por %p300, %p301
      %p303 = scmp.ne.s32.totalorder %s295, %s297
      %p304 = scmp.eq.s32.totalorder %s35, 1
      %p305 = por %p303, %p304
      %p306 = scmp.ne.s32.totalorder %s297, %s298
      %p307 = scmp.eq.s32.totalorder %s35, 0
      %p308 = por %p306, %p307
      %p309 = scmp.ne.s32.totalorder %s297, %s298
      %p310 = scmp.eq.s32.totalorder %s36, 1
      %p311 = por %p309, %p310
      %p313 = scmp.ne.s32.totalorder %s298, %s312
      %p314 = scmp.eq.s32.totalorder %s36, 0
      %p315 = por %p313, %p314
      %s317 = sadd.s32 %s316, 1
      %p320 = scmp.eq.s32.totalorder %s30, 1
      %p321 = scmp.ne.s32.totalorder %s316, %s318
      %p322 = scmp.eq.s32.totalorder %s30, 0
      %p323 = por %p321, %p322
      %p324 = scmp.ne.s32.totalorder %s316, %s318
      %p325 = scmp.eq.s32.totalorder %s35, 1
      %p326 = por %p324, %p325
      %p327 = scmp.ne.s32.totalorder %s318, %s319
      %p328 = scmp.eq.s32.totalorder %s35, 0
      %p329 = por %p327, %p328
      %p330 = scmp.ne.s32.totalorder %s318, %s319
      %p331 = scmp.eq.s32.totalorder %s36, 1
      %p332 = por %p330, %p331
      %p334 = scmp.ne.s32.totalorder %s319, %s333
      %p335 = scmp.eq.s32.totalorder %s36, 0
      %p336 = por %p334, %p335
      %s338 = sadd.s32 %s337, 1
      %p341 = scmp.eq.s32.totalorder %s30, 1
      %p342 = scmp.ne.s32.totalorder %s337, %s339
      %p343 = scmp.eq.s32.totalorder %s30, 0
      %p344 = por %p342, %p343
      %p345 = scmp.ne.s32.totalorder %s337, %s339
      %p346 = scmp.eq.s32.totalorder %s35, 1
      %p347 = por %p345, %p346
      %p348 = scmp.ne.s32.totalorder %s339, %s340
      %p349 = scmp.eq.s32.totalorder %s35, 0
      %p350 = por %p348, %p349
      %p351 = scmp.ne.s32.totalorder %s339, %s340
      %p352 = scmp.eq.s32.totalorder %s36, 1
      %p353 = por %p351, %p352
      %p355 = scmp.ne.s32.totalorder %s340, %s354
      %p356 = scmp.eq.s32.totalorder %s36, 0
      %p357 = por %p355, %p356
      %s359 = sadd.s32 %s358, 1
      %p362 = scmp.eq.s32.totalorder %s30, 1
      %p363 = scmp.ne.s32.totalorder %s358, %s360
      %p364 = scmp.eq.s32.totalorder %s30, 0
      %p365 = por %p363, %p364
      %p366 = scmp.ne.s32.totalorder %s358, %s360
      %p367 = scmp.eq.s32.totalorder %s35, 1
      %p368 = por %p366, %p367
      %p369 = scmp.ne.s32.totalorder %s360, %s361
      %p370 = scmp.eq.s32.totalorder %s35, 0
      %p371 = por %p369, %p370
      %p372 = scmp.ne.s32.totalorder %s360, %s361
      %p373 = scmp.eq.s32.totalorder %s36, 1
      %p374 = por %p372, %p373
      %p376 = scmp.ne.s32.totalorder %s361, %s375
      %p377 = scmp.eq.s32.totalorder %s36, 0
      %p378 = por %p376, %p377
      %s380 = sadd.s32 %s379, 1
      %p383 = scmp.eq.s32.totalorder %s30, 1
      %p384 = scmp.ne.s32.totalorder %s379, %s381
      %p385 = scmp.eq.s32.totalorder %s30, 0
      %p386 = por %p384, %p385
      %p387 = scmp.ne.s32.totalorder %s379, %s381
      %p388 = scmp.eq.s32.totalorder %s35, 1
      %p389 = por %p387, %p388
      %p390 = scmp.ne.s32.totalorder %s381, %s382
      %p391 = scmp.eq.s32.totalorder %s35, 0
      %p392 = por %p390, %p391
      %p393 = scmp.ne.s32.totalorder %s381, %s382
      %p394 = scmp.eq.s32.totalorder %s36, 1
      %p395 = por %p393, %p394
      %p397 = scmp.ne.s32.totalorder %s382, %s396
      %p398 = scmp.eq.s32.totalorder %s36, 0
      %p399 = por %p397, %p398
      %s401 = sadd.s32 %s400, 1
      %p404 = scmp.eq.s32.totalorder %s30, 1
      %p405 = scmp.ne.s32.totalorder %s400, %s402
      %p406 = scmp.eq.s32.totalorder %s30, 0
      %p407 = por %p405, %p406
      %p408 = scmp.ne.s32.totalorder %s400, %s402
      %p409 = scmp.eq.s32.totalorder %s35, 1
      %p410 = por %p408, %p409
      %p411 = scmp.ne.s32.totalorder %s402, %s403
      %p412 = scmp.eq.s32.totalorder %s35, 0
      %p413 = por %p411, %p412
      %p414 = scmp.ne.s32.totalorder %s402, %s403
      %p415 = scmp.eq.s32.totalorder %s36, 1
      %p416 = por %p414, %p415
      %p418 = scmp.ne.s32.totalorder %s403, %s417
      %p419 = scmp.eq.s32.totalorder %s36, 0
      %p420 = por %p418, %p419
      %s422 = sadd.s32 %s421, 1
      %p425 = scmp.eq.s32.totalorder %s30, 1
      %p426 = scmp.ne.s32.totalorder %s421, %s423
      %p427 = scmp.eq.s32.totalorder %s30, 0
      %p428 = por %p426, %p427
      %p429 = scmp.ne.s32.totalorder %s421, %s423
      %p430 = scmp.eq.s32.totalorder %s35, 1
      %p431 = por %p429, %p430
      %p432 = scmp.ne.s32.totalorder %s423, %s424
      %p433 = scmp.eq.s32.totalorder %s35, 0
      %p434 = por %p432, %p433
      %p435 = scmp.ne.s32.totalorder %s423, %s424
      %p436 = scmp.eq.s32.totalorder %s36, 1
      %p437 = por %p435, %p436
      %p439 = scmp.ne.s32.totalorder %s424, %s438
      %p440 = scmp.eq.s32.totalorder %s36, 0
      %p441 = por %p439, %p440
      %s443 = sadd.s32 %s442, 1
      %p446 = scmp.eq.s32.totalorder %s30, 1
      %p447 = scmp.ne.s32.totalorder %s442, %s444
      %p448 = scmp.eq.s32.totalorder %s30, 0
      %p449 = por %p447, %p448
      %p450 = scmp.ne.s32.totalorder %s442, %s444
      %p451 = scmp.eq.s32.totalorder %s35, 1
      %p452 = por %p450, %p451
      %p453 = scmp.ne.s32.totalorder %s444, %s445
      %p454 = scmp.eq.s32.totalorder %s35, 0
      %p455 = por %p453, %p454
      %p456 = scmp.ne.s32.totalorder %s444, %s445
      %p457 = scmp.eq.s32.totalorder %s36, 1
      %p458 = por %p456, %p457
      %p460 = scmp.ne.s32.totalorder %s445, %s459
      %p461 = scmp.eq.s32.totalorder %s36, 0
      %p462 = por %p460, %p461
      %s464 = sadd.s32 %s463, 1
      %p467 = scmp.eq.s32.totalorder %s30, 1
      %p468 = scmp.ne.s32.totalorder %s463, %s465
      %p469 = scmp.eq.s32.totalorder %s30, 0
      %p470 = por %p468, %p469
      %p471 = scmp.ne.s32.totalorder %s463, %s465
      %p472 = scmp.eq.s32.totalorder %s35, 1
      %p473 = por %p471, %p472
      %p474 = scmp.ne.s32.totalorder %s465, %s466
      %p475 = scmp.eq.s32.totalorder %s35, 0
      %p476 = por %p474, %p475
      %p477 = scmp.ne.s32.totalorder %s465, %s466
      %p478 = scmp.eq.s32.totalorder %s36, 1
      %p479 = por %p477, %p478
      %p481 = scmp.ne.s32.totalorder %s466, %s480
      %p482 = scmp.eq.s32.totalorder %s36, 0
      %p483 = por %p481, %p482
      %s484 = ssub.s32 %s30, %s37
      %p485 = scmp.eq.s32.totalorder %s484, 0
      %s487 = sadd.s32 %s486, 1
      %s488 = scalar_select %p485, %s486, %s487
      %p491 = pneg %p485
      %p492 = scmp.eq.s32.totalorder %s30, 1
      %p493 = por %p491, %p492
      %p494 = scmp.ne.s32.totalorder %s486, %s489
      %p495 = scmp.eq.s32.totalorder %s30, 0
      %p496 = por %p494, %p495
      %p497 = scmp.ne.s32.totalorder %s486, %s489
      %p498 = scmp.eq.s32.totalorder %s35, 1
      %p499 = por %p497, %p498
      %p500 = scmp.ne.s32.totalorder %s489, %s490
      %p501 = scmp.eq.s32.totalorder %s35, 0
      %p502 = por %p500, %p501
      %p503 = scmp.ne.s32.totalorder %s489, %s490
      %p504 = scmp.eq.s32.totalorder %s36, 1
      %p505 = por %p503, %p504
      %p507 = scmp.ne.s32.totalorder %s490, %s506
      %p508 = scmp.eq.s32.totalorder %s36, 0
      %p509 = por %p507, %p508
      %p510 = scmp.le.s32.totalorder 1, %s30
      %p511 = scmp.lt.s32.totalorder %s30, 3
      %p512 = pnand %p510, %p511
      %p513 = pneg %p512
      // Predicated region
      $region9: #{tpu_custom_call.1} parent=5 // pred_check
        _
      $region10: #{tpu_custom_call.1} parent=5 // pred_check_branch
        %515 = sbr.rel (%p512) target = $region12
      $region11: #{tpu_custom_call.1} parent=5 // pred_region
        %s516 = ssub.s32 %s30, 1
        // Predicated region
        $region13: #{tpu_custom_call.1} parent=11 // pred_check
          %p517 = pneg %p77
        $region14: #{tpu_custom_call.1} parent=11 // pred_check_branch
          %519 = sbr.rel (%p517) target = $region16
        $region15: #{tpu_custom_call.1} parent=11 // pred_region
          _
        $region16: #{tpu_custom_call.1} parent=11 // pred_fallthru
          _
        // Predicated region
        $region17: #{tpu_custom_call.1} parent=11 // pred_check
          %p520 = pneg %p98
        $region18: #{tpu_custom_call.1} parent=11 // pred_check_branch
          %522 = sbr.rel (%p520) target = $region20
        $region19: #{tpu_custom_call.1} parent=11 // pred_region
          _
        $region20: #{tpu_custom_call.1} parent=11 // pred_fallthru
          _
        // Predicated region
        $region21: #{tpu_custom_call.1} parent=11 // pred_check
          %p523 = pneg %p119
        $region22: #{tpu_custom_call.1} parent=11 // pred_check_branch
          %525 = sbr.rel (%p523) target = $region24
        $region23: #{tpu_custom_call.1} parent=11 // pred_region
          _
        $region24: #{tpu_custom_call.1} parent=11 // pred_fallthru
          _
        // Predicated region
        $region25: #{tpu_custom_call.1} parent=11 // pred_check
          %p526 = pneg %p140
        $region26: #{tpu_custom_call.1} parent=11 // pred_check_branch
          %528 = sbr.rel (%p526) target = $region28
        $region27: #{tpu_custom_call.1} parent=11 // pred_region
          _
        $region28: #{tpu_custom_call.1} parent=11 // pred_fallthru
          _
        // Predicated region
        $region29: #{tpu_custom_call.1} parent=11 // pred_check
          %p529 = pneg %p161
        $region30: #{tpu_custom_call.1} parent=11 // pred_check_branch
          %531 = sbr.rel (%p529) target = $region32
        $region31: #{tpu_custom_call.1} parent=11 // pred_region
          _
        $region32: #{tpu_custom_call.1} parent=11 // pred_fallthru
          _
        // Predicated region
        $region33: #{tpu_custom_call.1} parent=11 // pred_check
          %p532 = pneg %p182
        $region34: #{tpu_custom_call.1} parent=11 // pred_check_branch
          %534 = sbr.rel (%p532) target = $region36
        $region35: #{tpu_custom_call.1} parent=11 // pred_region
          _
        $region36: #{tpu_custom_call.1} parent=11 // pred_fallthru
          _
        // Predicated region
        $region37: #{tpu_custom_call.1} parent=11 // pred_check
          %p535 = pneg %p203
        $region38: #{tpu_custom_call.1} parent=11 // pred_check_branch
          %537 = sbr.rel (%p535) target = $region40
        $region39: #{tpu_custom_call.1} parent=11 // pred_region
          _
        $region40: #{tpu_custom_call.1} parent=11 // pred_fallthru
          _
        // Predicated region
        $region41: #{tpu_custom_call.1} parent=11 // pred_check
          %p538 = pneg %p224
        $region42: #{tpu_custom_call.1} parent=11 // pred_check_branch
          %540 = sbr.rel (%p538) target = $region44
        $region43: #{tpu_custom_call.1} parent=11 // pred_region
          _
        $region44: #{tpu_custom_call.1} parent=11 // pred_fallthru
          _
        // Predicated region
        $region45: #{tpu_custom_call.1} parent=11 // pred_check
          %p541 = pneg %p245
        $region46: #{tpu_custom_call.1} parent=11 // pred_check_branch
          %543 = sbr.rel (%p541) target = $region48
        $region47: #{tpu_custom_call.1} parent=11 // pred_region
          _
        $region48: #{tpu_custom_call.1} parent=11 // pred_fallthru
          _
        // Predicated region
        $region49: #{tpu_custom_call.1} parent=11 // pred_check
          %p544 = pneg %p266
        $region50: #{tpu_custom_call.1} parent=11 // pred_check_branch
          %546 = sbr.rel (%p544) target = $region52
        $region51: #{tpu_custom_call.1} parent=11 // pred_region
          _
        $region52: #{tpu_custom_call.1} parent=11 // pred_fallthru
          _
        // Predicated region
        $region53: #{tpu_custom_call.1} parent=11 // pred_check
          %p547 = pneg %p287
        $region54: #{tpu_custom_call.1} parent=11 // pred_check_branch
          %549 = sbr.rel (%p547) target = $region56
        $region55: #{tpu_custom_call.1} parent=11 // pred_region
          _
        $region56: #{tpu_custom_call.1} parent=11 // pred_fallthru
          _
        // Predicated region
        $region57: #{tpu_custom_call.1} parent=11 // pred_check
          %p550 = pneg %p308
        $region58: #{tpu_custom_call.1} parent=11 // pred_check_branch
          %552 = sbr.rel (%p550) target = $region60
        $region59: #{tpu_custom_call.1} parent=11 // pred_region
          _
        $region60: #{tpu_custom_call.1} parent=11 // pred_fallthru
          _
        // Predicated region
        $region61: #{tpu_custom_call.1} parent=11 // pred_check
          %p553 = pneg %p329
        $region62: #{tpu_custom_call.1} parent=11 // pred_check_branch
          %555 = sbr.rel (%p553) target = $region64
        $region63: #{tpu_custom_call.1} parent=11 // pred_region
          _
        $region64: #{tpu_custom_call.1} parent=11 // pred_fallthru
          _
        // Predicated region
        $region65: #{tpu_custom_call.1} parent=11 // pred_check
          %p556 = pneg %p350
        $region66: #{tpu_custom_call.1} parent=11 // pred_check_branch
          %558 = sbr.rel (%p556) target = $region68
        $region67: #{tpu_custom_call.1} parent=11 // pred_region
          _
        $region68: #{tpu_custom_call.1} parent=11 // pred_fallthru
          _
        // Predicated region
        $region69: #{tpu_custom_call.1} parent=11 // pred_check
          %p559 = pneg %p371
        $region70: #{tpu_custom_call.1} parent=11 // pred_check_branch
          %561 = sbr.rel (%p559) target = $region72
        $region71: #{tpu_custom_call.1} parent=11 // pred_region
          _
        $region72: #{tpu_custom_call.1} parent=11 // pred_fallthru
          _
        // Predicated region
        $region73: #{tpu_custom_call.1} parent=11 // pred_check
          %p562 = pneg %p392
        $region74: #{tpu_custom_call.1} parent=11 // pred_check_branch
          %564 = sbr.rel (%p562) target = $region76
        $region75: #{tpu_custom_call.1} parent=11 // pred_region
          _
        $region76: #{tpu_custom_call.1} parent=11 // pred_fallthru
          _
        // Predicated region
        $region77: #{tpu_custom_call.1} parent=11 // pred_check
          %p565 = pneg %p413
        $region78: #{tpu_custom_call.1} parent=11 // pred_check_branch
          %567 = sbr.rel (%p565) target = $region80
        $region79: #{tpu_custom_call.1} parent=11 // pred_region
          _
        $region80: #{tpu_custom_call.1} parent=11 // pred_fallthru
          _
        // Predicated region
        $region81: #{tpu_custom_call.1} parent=11 // pred_check
          %p568 = pneg %p434
        $region82: #{tpu_custom_call.1} parent=11 // pred_check_branch
          %570 = sbr.rel (%p568) target = $region84
        $region83: #{tpu_custom_call.1} parent=11 // pred_region
          _
        $region84: #{tpu_custom_call.1} parent=11 // pred_fallthru
          _
        // Predicated region
        $region85: #{tpu_custom_call.1} parent=11 // pred_check
          %p571 = pneg %p455
        $region86: #{tpu_custom_call.1} parent=11 // pred_check_branch
          %573 = sbr.rel (%p571) target = $region88
        $region87: #{tpu_custom_call.1} parent=11 // pred_region
          _
        $region88: #{tpu_custom_call.1} parent=11 // pred_fallthru
          _
        // Predicated region
        $region89: #{tpu_custom_call.1} parent=11 // pred_check
          %p574 = pneg %p476
        $region90: #{tpu_custom_call.1} parent=11 // pred_check_branch
          %576 = sbr.rel (%p574) target = $region92
        $region91: #{tpu_custom_call.1} parent=11 // pred_region
          _
        $region92: #{tpu_custom_call.1} parent=11 // pred_fallthru
          _
      $region12: #{tpu_custom_call.1} parent=5 // pred_fallthru
        _
      %p577 = scmp.lt.s32.totalorder %s30, 2
      // Predicated region
      $region93: #{tpu_custom_call.1} parent=5 // pred_check
        %p578 = pneg %p577
      $region94: #{tpu_custom_call.1} parent=5 // pred_check_branch
        %580 = sbr.rel (%p578) target = $region96
      $region95: #{tpu_custom_call.1} parent=5 // pred_region
        // Predicated region
        $region97: #{tpu_custom_call.1} parent=95 // pred_check
          %p581 = pneg %p50
        $region98: #{tpu_custom_call.1} parent=95 // pred_check_branch
          %583 = sbr.rel (%p581) target = $region100
        $region99: #{tpu_custom_call.1} parent=95 // pred_region
          %s584 = smul.u32 32, %s30
          %p585 = scmp.lt.s32.totalorder %s584, 63
          %s586 = scalar_select %p585, %s584, 63
          %s587 = smul.addr %s586, 4
          %s588 = smul.addr %s587, 8
          %s589 = scalar_lea.vmem %s0, %s588
          %s590 = smul.u32 32, %s30
        $region100: #{tpu_custom_call.1} parent=95 // pred_fallthru
          _
      $region96: #{tpu_custom_call.1} parent=5 // pred_fallthru
        _
      %p591 = scmp.le.s32.totalorder 1, %s30
      %p592 = scmp.lt.s32.totalorder %s30, 3
      %p593 = pnand %p591, %p592
      %p594 = pneg %p593
      // Predicated region
      $region101: #{tpu_custom_call.1} parent=5 // pred_check
        _
      $region102: #{tpu_custom_call.1} parent=5 // pred_check_branch
        %596 = sbr.rel (%p593) target = $region104
      $region103: #{tpu_custom_call.1} parent=5 // pred_region
        %s597 = ssub.s32 %s30, 1
        %s598 = smul.u32 32, %s35
        %p599 = scmp.lt.s32.totalorder %s598, 63
        %s600 = scalar_select %p599, %s598, 63
        %s601 = smul.addr %s600, 4
        %s602 = smul.addr %s601, 8
        %s603 = scalar_lea.vmem %s0, %s602
        %p604 = pneg %p56
        %p605 = pneg %p53
        %p606 = pneg %p77
        %p607 = pneg %p74
        %p608 = pneg %p98
        %p609 = pneg %p95
        %p610 = pneg %p119
        %p611 = pneg %p116
        %p612 = pneg %p140
        %p613 = pneg %p137
        %p614 = pneg %p161
        %p615 = pneg %p158
        %p616 = pneg %p182
        %p617 = pneg %p179
        %p618 = pneg %p203
        %p619 = pneg %p200
        %p620 = pneg %p224
        %p621 = pneg %p221
        %p622 = pneg %p245
        %p623 = pneg %p242
        %p624 = pneg %p266
        %p625 = pneg %p263
        %p626 = pneg %p287
        %p627 = pneg %p284
        %p628 = pneg %p308
        %p629 = pneg %p305
        %p630 = pneg %p329
        %p631 = pneg %p326
        %p632 = pneg %p350
        %p633 = pneg %p347
        %p634 = pneg %p371
        %p635 = pneg %p368
        %p636 = pneg %p392
        %p637 = pneg %p389
        %p638 = pneg %p413
        %p639 = pneg %p410
        %p640 = pneg %p434
        %p641 = pneg %p431
        %p642 = pneg %p455
        %p643 = pneg %p452
        %p644 = pneg %p476
        %p645 = pneg %p473
        %p646 = pneg %p502
        %p647 = pneg %p499
        %s648 = sand.u32 %s489, 1
        %s649 = scalar_lea.sflag [#allocation3], %s648
        %s650 = sand.u32 %s489, 1
        %s651 = smul.addr %s650, 8
        %s652 = scalar_lea.vmem [#allocation2], %s651
        %s653 = smul.u32 32, %s35
        %p654 = scmp.lt.s32.totalorder %s653, 63
        %s655 = scalar_select %p654, %s653, 63
        %s656 = smul.addr %s655, 4
        %s657 = smul.addr %s656, 8
        %s658 = scalar_lea.vmem %s0, %s657
        %s659 = smul.u32 32, %s35
        %v660 = vld [vmem:[%s658] sm:$0xff]
        %v661 = vld [vmem:[%s658 + $0x8] sm:$0xff]
        %v662 = vld [vmem:[%s658 + $0x10] sm:$0xff]
        %v663 = vld [vmem:[%s658 + $0x18] sm:$0xff]
        %v664 = vld [vmem:[%s658 + $0x20] sm:$0xff]
        %v665 = vld [vmem:[%s658 + $0x28] sm:$0xff]
        %v666 = vld [vmem:[%s658 + $0x30] sm:$0xff]
        %v667 = vld [vmem:[%s658 + $0x38] sm:$0xff]
        %v668 = vld [vmem:[%s658 + $0x40] sm:$0xff]
        %v669 = vld [vmem:[%s658 + $0x48] sm:$0xff]
        %v670 = vld [vmem:[%s658 + $0x50] sm:$0xff]
        %v671 = vld [vmem:[%s658 + $0x58] sm:$0xff]
        %v672 = vld [vmem:[%s658 + $0x60] sm:$0xff]
        %v673 = vld [vmem:[%s658 + $0x68] sm:$0xff]
        %v674 = vld [vmem:[%s658 + $0x70] sm:$0xff]
        %v675 = vld [vmem:[%s658 + $0x78] sm:$0xff]
        %v676 = vld [vmem:[%s658 + $0x80] sm:$0xff]
        %v677 = vld [vmem:[%s658 + $0x88] sm:$0xff]
        %v678 = vld [vmem:[%s658 + $0x90] sm:$0xff]
        %v679 = vld [vmem:[%s658 + $0x98] sm:$0xff]
        %v680 = vld [vmem:[%s658 + $0xa0] sm:$0xff]
        %v681 = vld [vmem:[%s658 + $0xa8] sm:$0xff]
        %v682 = vld [vmem:[%s658 + $0xb0] sm:$0xff]
        %v683 = vld [vmem:[%s658 + $0xb8] sm:$0xff]
        %v684 = vld [vmem:[%s658 + $0xc0] sm:$0xff]
        %v685 = vld [vmem:[%s658 + $0xc8] sm:$0xff]
        %v686 = vld [vmem:[%s658 + $0xd0] sm:$0xff]
        %v687 = vld [vmem:[%s658 + $0xd8] sm:$0xff]
        %v688 = vld [vmem:[%s658 + $0xe0] sm:$0xff]
        %v689 = vld [vmem:[%s658 + $0xe8] sm:$0xff]
        %v690 = vld [vmem:[%s658 + $0xf0] sm:$0xff]
        %v691 = vld [vmem:[%s658 + $0xf8] sm:$0xff]
        %v692 = vld [vmem:[%s658 + $0x100] sm:$0xff]
        %v693 = vld [vmem:[%s658 + $0x108] sm:$0xff]
        %v694 = vld [vmem:[%s658 + $0x110] sm:$0xff]
        %v695 = vld [vmem:[%s658 + $0x118] sm:$0xff]
        %v696 = vld [vmem:[%s658 + $0x120] sm:$0xff]
        %v697 = vld [vmem:[%s658 + $0x128] sm:$0xff]
        %v698 = vld [vmem:[%s658 + $0x130] sm:$0xff]
        %v699 = vld [vmem:[%s658 + $0x138] sm:$0xff]
        %v700 = vld [vmem:[%s658 + $0x140] sm:$0xff]
        %v701 = vld [vmem:[%s658 + $0x148] sm:$0xff]
        %v702 = vld [vmem:[%s658 + $0x150] sm:$0xff]
        %v703 = vld [vmem:[%s658 + $0x158] sm:$0xff]
        %v704 = vld [vmem:[%s658 + $0x160] sm:$0xff]
        %v705 = vld [vmem:[%s658 + $0x168] sm:$0xff]
        %v706 = vld [vmem:[%s658 + $0x170] sm:$0xff]
        %v707 = vld [vmem:[%s658 + $0x178] sm:$0xff]
        %v708 = vld [vmem:[%s658 + $0x180] sm:$0xff]
        %v709 = vld [vmem:[%s658 + $0x188] sm:$0xff]
        %v710 = vld [vmem:[%s658 + $0x190] sm:$0xff]
        %v711 = vld [vmem:[%s658 + $0x198] sm:$0xff]
        %v712 = vld [vmem:[%s658 + $0x1a0] sm:$0xff]
        %v713 = vld [vmem:[%s658 + $0x1a8] sm:$0xff]
        %v714 = vld [vmem:[%s658 + $0x1b0] sm:$0xff]
        %v715 = vld [vmem:[%s658 + $0x1b8] sm:$0xff]
        %v716 = vld [vmem:[%s658 + $0x1c0] sm:$0xff]
        %v717 = vld [vmem:[%s658 + $0x1c8] sm:$0xff]
        %v718 = vld [vmem:[%s658 + $0x1d0] sm:$0xff]
        %v719 = vld [vmem:[%s658 + $0x1d8] sm:$0xff]
        %v720 = vld [vmem:[%s658 + $0x1e0] sm:$0xff]
        %v721 = vld [vmem:[%s658 + $0x1e8] sm:$0xff]
        %v722 = vld [vmem:[%s658 + $0x1f0] sm:$0xff]
        %v723 = vld [vmem:[%s658 + $0x1f8] sm:$0xff]
        %v724 = vld [vmem:[%s658 + $0x200] sm:$0xff]
        %v725 = vld [vmem:[%s658 + $0x208] sm:$0xff]
        %v726 = vld [vmem:[%s658 + $0x210] sm:$0xff]
        %v727 = vld [vmem:[%s658 + $0x218] sm:$0xff]
        %v728 = vld [vmem:[%s658 + $0x220] sm:$0xff]
        %v729 = vld [vmem:[%s658 + $0x228] sm:$0xff]
        %v730 = vld [vmem:[%s658 + $0x230] sm:$0xff]
        %v731 = vld [vmem:[%s658 + $0x238] sm:$0xff]
        %v732 = vld [vmem:[%s658 + $0x240] sm:$0xff]
        %v733 = vld [vmem:[%s658 + $0x248] sm:$0xff]
        %v734 = vld [vmem:[%s658 + $0x250] sm:$0xff]
        %v735 = vld [vmem:[%s658 + $0x258] sm:$0xff]
        %v736 = vld [vmem:[%s658 + $0x260] sm:$0xff]
        %v737 = vld [vmem:[%s658 + $0x268] sm:$0xff]
        %v738 = vld [vmem:[%s658 + $0x270] sm:$0xff]
        %v739 = vld [vmem:[%s658 + $0x278] sm:$0xff]
        %v740 = vld [vmem:[%s658 + $0x280] sm:$0xff]
        %v741 = vld [vmem:[%s658 + $0x288] sm:$0xff]
        %v742 = vld [vmem:[%s658 + $0x290] sm:$0xff]
        %v743 = vld [vmem:[%s658 + $0x298] sm:$0xff]
        %v744 = vld [vmem:[%s658 + $0x2a0] sm:$0xff]
        %v745 = vld [vmem:[%s658 + $0x2a8] sm:$0xff]
        %v746 = vld [vmem:[%s658 + $0x2b0] sm:$0xff]
        %v747 = vld [vmem:[%s658 + $0x2b8] sm:$0xff]
        %v748 = vld [vmem:[%s658 + $0x2c0] sm:$0xff]
        %v749 = vld [vmem:[%s658 + $0x2c8] sm:$0xff]
        %v750 = vld [vmem:[%s658 + $0x2d0] sm:$0xff]
        %v751 = vld [vmem:[%s658 + $0x2d8] sm:$0xff]
        %v752 = vld [vmem:[%s658 + $0x2e0] sm:$0xff]
        %v753 = vld [vmem:[%s658 + $0x2e8] sm:$0xff]
        %v754 = vld [vmem:[%s658 + $0x2f0] sm:$0xff]
        %v755 = vld [vmem:[%s658 + $0x2f8] sm:$0xff]
        %v756 = vld [vmem:[%s658 + $0x300] sm:$0xff]
        %v757 = vld [vmem:[%s658 + $0x308] sm:$0xff]
        %v758 = vld [vmem:[%s658 + $0x310] sm:$0xff]
        %v759 = vld [vmem:[%s658 + $0x318] sm:$0xff]
        %v760 = vld [vmem:[%s658 + $0x320] sm:$0xff]
        %v761 = vld [vmem:[%s658 + $0x328] sm:$0xff]
        %v762 = vld [vmem:[%s658 + $0x330] sm:$0xff]
        %v763 = vld [vmem:[%s658 + $0x338] sm:$0xff]
        %v764 = vld [vmem:[%s658 + $0x340] sm:$0xff]
        %v765 = vld [vmem:[%s658 + $0x348] sm:$0xff]
        %v766 = vld [vmem:[%s658 + $0x350] sm:$0xff]
        %v767 = vld [vmem:[%s658 + $0x358] sm:$0xff]
        %v768 = vld [vmem:[%s658 + $0x360] sm:$0xff]
        %v769 = vld [vmem:[%s658 + $0x368] sm:$0xff]
        %v770 = vld [vmem:[%s658 + $0x370] sm:$0xff]
        %v771 = vld [vmem:[%s658 + $0x378] sm:$0xff]
        %v772 = vld [vmem:[%s658 + $0x380] sm:$0xff]
        %v773 = vld [vmem:[%s658 + $0x388] sm:$0xff]
        %v774 = vld [vmem:[%s658 + $0x390] sm:$0xff]
        %v775 = vld [vmem:[%s658 + $0x398] sm:$0xff]
        %v776 = vld [vmem:[%s658 + $0x3a0] sm:$0xff]
        %v777 = vld [vmem:[%s658 + $0x3a8] sm:$0xff]
        %v778 = vld [vmem:[%s658 + $0x3b0] sm:$0xff]
        %v779 = vld [vmem:[%s658 + $0x3b8] sm:$0xff]
        %v780 = vld [vmem:[%s658 + $0x3c0] sm:$0xff]
        %v781 = vld [vmem:[%s658 + $0x3c8] sm:$0xff]
        %v782 = vld [vmem:[%s658 + $0x3d0] sm:$0xff]
        %v783 = vld [vmem:[%s658 + $0x3d8] sm:$0xff]
        %v784 = vld [vmem:[%s658 + $0x3e0] sm:$0xff]
        %v785 = vld [vmem:[%s658 + $0x3e8] sm:$0xff]
        %v786 = vld [vmem:[%s658 + $0x3f0] sm:$0xff]
        %v787 = vld [vmem:[%s658 + $0x3f8] sm:$0xff]
        %v788 = vld [vmem:[%s1] sm:$0xff]
        %v789 = vld [vmem:[%s1 + $0x8] sm:$0xff]
        %v790 = vld [vmem:[%s1 + $0x10] sm:$0xff]
        %v791 = vld [vmem:[%s1 + $0x18] sm:$0xff]
        %v792 = vld [vmem:[%s1 + $0x20] sm:$0xff]
        %v793 = vld [vmem:[%s1 + $0x28] sm:$0xff]
        %v794 = vld [vmem:[%s1 + $0x30] sm:$0xff]
        %v795 = vld [vmem:[%s1 + $0x38] sm:$0xff]
        %v796 = vld [vmem:[%s1 + $0x40] sm:$0xff]
        %v797 = vld [vmem:[%s1 + $0x48] sm:$0xff]
        %v798 = vld [vmem:[%s1 + $0x50] sm:$0xff]
        %v799 = vld [vmem:[%s1 + $0x58] sm:$0xff]
        %v800 = vld [vmem:[%s1 + $0x60] sm:$0xff]
        %v801 = vld [vmem:[%s1 + $0x68] sm:$0xff]
        %v802 = vld [vmem:[%s1 + $0x70] sm:$0xff]
        %v803 = vld [vmem:[%s1 + $0x78] sm:$0xff]
        %v804 = vld [vmem:[%s1 + $0x80] sm:$0xff]
        %v805 = vld [vmem:[%s1 + $0x88] sm:$0xff]
        %v806 = vld [vmem:[%s1 + $0x90] sm:$0xff]
        %v807 = vld [vmem:[%s1 + $0x98] sm:$0xff]
        %v808 = vld [vmem:[%s1 + $0xa0] sm:$0xff]
        %v809 = vld [vmem:[%s1 + $0xa8] sm:$0xff]
        %v810 = vld [vmem:[%s1 + $0xb0] sm:$0xff]
        %v811 = vld [vmem:[%s1 + $0xb8] sm:$0xff]
        %v812 = vld [vmem:[%s1 + $0xc0] sm:$0xff]
        %v813 = vld [vmem:[%s1 + $0xc8] sm:$0xff]
        %v814 = vld [vmem:[%s1 + $0xd0] sm:$0xff]
        %v815 = vld [vmem:[%s1 + $0xd8] sm:$0xff]
        %v816 = vld [vmem:[%s1 + $0xe0] sm:$0xff]
        %v817 = vld [vmem:[%s1 + $0xe8] sm:$0xff]
        %v818 = vld [vmem:[%s1 + $0xf0] sm:$0xff]
        %v819 = vld [vmem:[%s1 + $0xf8] sm:$0xff]
        %v820 = vld [vmem:[%s1 + $0x100] sm:$0xff]
        %v821 = vld [vmem:[%s1 + $0x108] sm:$0xff]
        %v822 = vld [vmem:[%s1 + $0x110] sm:$0xff]
        %v823 = vld [vmem:[%s1 + $0x118] sm:$0xff]
        %v824 = vld [vmem:[%s1 + $0x120] sm:$0xff]
        %v825 = vld [vmem:[%s1 + $0x128] sm:$0xff]
        %v826 = vld [vmem:[%s1 + $0x130] sm:$0xff]
        %v827 = vld [vmem:[%s1 + $0x138] sm:$0xff]
        %v828 = vld [vmem:[%s1 + $0x140] sm:$0xff]
        %v829 = vld [vmem:[%s1 + $0x148] sm:$0xff]
        %v830 = vld [vmem:[%s1 + $0x150] sm:$0xff]
        %v831 = vld [vmem:[%s1 + $0x158] sm:$0xff]
        %v832 = vld [vmem:[%s1 + $0x160] sm:$0xff]
        %v833 = vld [vmem:[%s1 + $0x168] sm:$0xff]
        %v834 = vld [vmem:[%s1 + $0x170] sm:$0xff]
        %v835 = vld [vmem:[%s1 + $0x178] sm:$0xff]
        %v836 = vld [vmem:[%s1 + $0x180] sm:$0xff]
        %v837 = vld [vmem:[%s1 + $0x188] sm:$0xff]
        %v838 = vld [vmem:[%s1 + $0x190] sm:$0xff]
        %v839 = vld [vmem:[%s1 + $0x198] sm:$0xff]
        %v840 = vld [vmem:[%s1 + $0x1a0] sm:$0xff]
        %v841 = vld [vmem:[%s1 + $0x1a8] sm:$0xff]
        %v842 = vld [vmem:[%s1 + $0x1b0] sm:$0xff]
        %v843 = vld [vmem:[%s1 + $0x1b8] sm:$0xff]
        %v844 = vld [vmem:[%s1 + $0x1c0] sm:$0xff]
        %v845 = vld [vmem:[%s1 + $0x1c8] sm:$0xff]
        %v846 = vld [vmem:[%s1 + $0x1d0] sm:$0xff]
        %v847 = vld [vmem:[%s1 + $0x1d8] sm:$0xff]
        %v848 = vld [vmem:[%s1 + $0x1e0] sm:$0xff]
        %v849 = vld [vmem:[%s1 + $0x1e8] sm:$0xff]
        %v850 = vld [vmem:[%s1 + $0x1f0] sm:$0xff]
        %v851 = vld [vmem:[%s1 + $0x1f8] sm:$0xff]
        %v852 = vld [vmem:[%s1 + $0x200] sm:$0xff]
        %v853 = vld [vmem:[%s1 + $0x208] sm:$0xff]
        %v854 = vld [vmem:[%s1 + $0x210] sm:$0xff]
        %v855 = vld [vmem:[%s1 + $0x218] sm:$0xff]
        %v856 = vld [vmem:[%s1 + $0x220] sm:$0xff]
        %v857 = vld [vmem:[%s1 + $0x228] sm:$0xff]
        %v858 = vld [vmem:[%s1 + $0x230] sm:$0xff]
        %v859 = vld [vmem:[%s1 + $0x238] sm:$0xff]
        %v860 = vld [vmem:[%s1 + $0x240] sm:$0xff]
        %v861 = vld [vmem:[%s1 + $0x248] sm:$0xff]
        %v862 = vld [vmem:[%s1 + $0x250] sm:$0xff]
        %v863 = vld [vmem:[%s1 + $0x258] sm:$0xff]
        %v864 = vld [vmem:[%s1 + $0x260] sm:$0xff]
        %v865 = vld [vmem:[%s1 + $0x268] sm:$0xff]
        %v866 = vld [vmem:[%s1 + $0x270] sm:$0xff]
        %v867 = vld [vmem:[%s1 + $0x278] sm:$0xff]
        %v868 = vld [vmem:[%s1 + $0x280] sm:$0xff]
        %v869 = vld [vmem:[%s1 + $0x288] sm:$0xff]
        %v870 = vld [vmem:[%s1 + $0x290] sm:$0xff]
        %v871 = vld [vmem:[%s1 + $0x298] sm:$0xff]
        %v872 = vld [vmem:[%s1 + $0x2a0] sm:$0xff]
        %v873 = vld [vmem:[%s1 + $0x2a8] sm:$0xff]
        %v874 = vld [vmem:[%s1 + $0x2b0] sm:$0xff]
        %v875 = vld [vmem:[%s1 + $0x2b8] sm:$0xff]
        %v876 = vld [vmem:[%s1 + $0x2c0] sm:$0xff]
        %v877 = vld [vmem:[%s1 + $0x2c8] sm:$0xff]
        %v878 = vld [vmem:[%s1 + $0x2d0] sm:$0xff]
        %v879 = vld [vmem:[%s1 + $0x2d8] sm:$0xff]
        %v880 = vld [vmem:[%s1 + $0x2e0] sm:$0xff]
        %v881 = vld [vmem:[%s1 + $0x2e8] sm:$0xff]
        %v882 = vld [vmem:[%s1 + $0x2f0] sm:$0xff]
        %v883 = vld [vmem:[%s1 + $0x2f8] sm:$0xff]
        %v884 = vld [vmem:[%s1 + $0x300] sm:$0xff]
        %v885 = vld [vmem:[%s1 + $0x308] sm:$0xff]
        %v886 = vld [vmem:[%s1 + $0x310] sm:$0xff]
        %v887 = vld [vmem:[%s1 + $0x318] sm:$0xff]
        %v888 = vld [vmem:[%s1 + $0x320] sm:$0xff]
        %v889 = vld [vmem:[%s1 + $0x328] sm:$0xff]
        %v890 = vld [vmem:[%s1 + $0x330] sm:$0xff]
        %v891 = vld [vmem:[%s1 + $0x338] sm:$0xff]
        %v892 = vld [vmem:[%s1 + $0x340] sm:$0xff]
        %v893 = vld [vmem:[%s1 + $0x348] sm:$0xff]
        %v894 = vld [vmem:[%s1 + $0x350] sm:$0xff]
        %v895 = vld [vmem:[%s1 + $0x358] sm:$0xff]
        %v896 = vld [vmem:[%s1 + $0x360] sm:$0xff]
        %v897 = vld [vmem:[%s1 + $0x368] sm:$0xff]
        %v898 = vld [vmem:[%s1 + $0x370] sm:$0xff]
        %v899 = vld [vmem:[%s1 + $0x378] sm:$0xff]
        %v900 = vld [vmem:[%s1 + $0x380] sm:$0xff]
        %v901 = vld [vmem:[%s1 + $0x388] sm:$0xff]
        %v902 = vld [vmem:[%s1 + $0x390] sm:$0xff]
        %v903 = vld [vmem:[%s1 + $0x398] sm:$0xff]
        %v904 = vld [vmem:[%s1 + $0x3a0] sm:$0xff]
        %v905 = vld [vmem:[%s1 + $0x3a8] sm:$0xff]
        %v906 = vld [vmem:[%s1 + $0x3b0] sm:$0xff]
        %v907 = vld [vmem:[%s1 + $0x3b8] sm:$0xff]
        %v908 = vld [vmem:[%s2] sm:$0x3]
        %v910 = vlaneseq
        %v911 = vshrl.u32 %v910, 7
        %v912 = vsub.s32 0, %v911
        %v913 = vrot.slane %v908, %v912
        %v914 = vlaneseq
        %v915 = vshrl.u32 %v914, 7
        %v916 = vsub.s32 1, %v915
        %v917 = vrot.slane %v908, %v916
        %vm920 = vcmask 785408
        %v922 = vsel %vm920, %v663, 0
        %v925 = vsel %vm920, %v667, 0
        %v928 = vsel %vm920, %v671, 0
        %v931 = vsel %vm920, %v675, 0
        %v934 = vsel %vm920, %v679, 0
        %v937 = vsel %vm920, %v683, 0
        %v940 = vsel %vm920, %v687, 0
        %v943 = vsel %vm920, %v691, 0
        %v946 = vsel %vm920, %v695, 0
        %v949 = vsel %vm920, %v699, 0
        %v952 = vsel %vm920, %v703, 0
        %v955 = vsel %vm920, %v707, 0
        %v958 = vsel %vm920, %v711, 0
        %v961 = vsel %vm920, %v715, 0
        %v964 = vsel %vm920, %v719, 0
        %v967 = vsel %vm920, %v723, 0
        %v970 = vsel %vm920, %v727, 0
        %v973 = vsel %vm920, %v731, 0
        %v976 = vsel %vm920, %v735, 0
        %v979 = vsel %vm920, %v739, 0
        %v982 = vsel %vm920, %v743, 0
        %v985 = vsel %vm920, %v747, 0
        %v988 = vsel %vm920, %v751, 0
        %v991 = vsel %vm920, %v755, 0
        %v994 = vsel %vm920, %v759, 0
        %v997 = vsel %vm920, %v763, 0
        %v1000 = vsel %vm920, %v767, 0
        %v1003 = vsel %vm920, %v771, 0
        %v1006 = vsel %vm920, %v775, 0
        %v1009 = vsel %vm920, %v779, 0
        %v1012 = vsel %vm920, %v783, 0
        %v1015 = vsel %vm920, %v787, 0
        %1017 = vmatprep.subr.mxu0 %v789
        %1018 = vmatpush1.msra.mxu0 %v788
        %1019 = vmatprep.subr.mxu0 %v791
        %1020 = vmatpush1.msra.mxu0 %v790
        %1021 = vmatprep.subr.mxu0 %v793
        %1022 = vmatpush1.msra.mxu0 %v792
        %1023 = vmatprep.subr.mxu0 %v795
        %1024 = vmatpush1.msra.mxu0 %v794
        %1025 = vmatprep.subr.mxu0 %v797
        %1026 = vmatpush1.msra.mxu0 %v796
        %1027 = vmatprep.subr.mxu0 %v799
        %1028 = vmatpush1.msra.mxu0 %v798
        %1029 = vmatprep.subr.mxu0 %v801
        %1030 = vmatpush1.msra.mxu0 %v800
        %1031 = vmatprep.subr.mxu0 %v803
        %1032 = vmatpush1.msra.mxu0 %v802
        %1033 = vmatprep.subr.mxu0 %v805
        %1034 = vmatpush1.msra.mxu0 %v804
        %1035 = vmatprep.subr.mxu0 %v807
        %1036 = vmatpush1.msra.mxu0 %v806
        %1037 = vmatprep.subr.mxu0 %v809
        %1038 = vmatpush1.msra.mxu0 %v808
        %1039 = vmatprep.subr.mxu0 %v811
        %1040 = vmatpush1.msra.mxu0 %v810
        %1041 = vmatprep.subr.mxu0 %v813
        %1042 = vmatpush1.msra.mxu0 %v812
        %1043 = vmatprep.subr.mxu0 %v815
        %1044 = vmatpush1.msra.mxu0 %v814
        %1045 = vmatprep.subr.mxu0 %v817
        %1046 = vmatpush1.msra.mxu0 %v816
        %1047 = vmatprep.subr.mxu0 %v819
        %1048 = vmatpush1.msra.mxu0 %v818
        %1049 = vmatprep.subr.mxu0 %v821
        %1050 = vmatpush1.msra.mxu0 %v820
        %1051 = vmatprep.subr.mxu0 %v823
        %1052 = vmatpush1.msra.mxu0 %v822
        %1053 = vmatprep.subr.mxu0 %v825
        %1054 = vmatpush1.msra.mxu0 %v824
        %1055 = vmatprep.subr.mxu0 %v827
        %1056 = vmatpush1.msra.mxu0 %v826
        %1057 = vmatprep.subr.mxu0 %v829
        %1058 = vmatpush1.msra.mxu0 %v828
        %1059 = vmatprep.subr.mxu0 %v831
        %1060 = vmatpush1.msra.mxu0 %v830
        %1061 = vmatprep.subr.mxu0 %v833
        %1062 = vmatpush1.msra.mxu0 %v832
        %1063 = vmatprep.subr.mxu0 %v835
        %1064 = vmatpush1.msra.mxu0 %v834
        %1065 = vmatprep.subr.mxu0 %v837
        %1066 = vmatpush1.msra.mxu0 %v836
        %1067 = vmatprep.subr.mxu0 %v839
        %1068 = vmatpush1.msra.mxu0 %v838
        %1069 = vmatprep.subr.mxu0 %v841
        %1070 = vmatpush1.msra.mxu0 %v840
        %1071 = vmatprep.subr.mxu0 %v843
        %1072 = vmatpush1.msra.mxu0 %v842
        %1073 = vmatprep.subr.mxu0 %v845
        %1074 = vmatpush1.msra.mxu0 %v844
        %1075 = vmatprep.subr.mxu0 %v847
        %1076 = vmatpush1.msra.mxu0 %v846
        %1077 = vmatprep.subr.mxu0 %v849
        %1078 = vmatpush1.msra.mxu0 %v848
        %1079 = vmatprep.subr.mxu0 %v851
        %1080 = vmatpush1.msra.mxu0 %v850
        %1081 = vmatprep.mubr.f32.mxu0 %v661
        %1082 = vmatmul.mubr.f32.gmra.mrb[0].mxu0 %v660
        %v1083 = vpop.f32.mrb[0].mxu0
        %v1084 = vadd.f32 %v913, %v1083
        %v1085 = vpop.f32.mrb[0].mxu0
        %v1086 = vadd.f32 %v917, %v1085
        %1087 = vmatprep.mubr.f32.mxu0 %v665
        %1088 = vmatmul.mubr.f32.gmra.mrb[0].mxu0 %v664
        %v1089 = vpop.f32.mrb[0].mxu0
        %v1090 = vadd.f32 %v913, %v1089
        %v1091 = vpop.f32.mrb[0].mxu0
        %v1092 = vadd.f32 %v917, %v1091
        %1093 = vmatprep.mubr.f32.mxu0 %v669
        %1094 = vmatmul.mubr.f32.gmra.mrb[0].mxu0 %v668
        %v1095 = vpop.f32.mrb[0].mxu0
        %v1096 = vadd.f32 %v913, %v1095
        %v1097 = vpop.f32.mrb[0].mxu0
        %v1098 = vadd.f32 %v917, %v1097
        %1099 = vmatprep.mubr.f32.mxu0 %v673
        %1100 = vmatmul.mubr.f32.gmra.mrb[0].mxu0 %v672
        %v1101 = vpop.f32.mrb[0].mxu0
        %v1102 = vadd.f32 %v913, %v1101
        %v1103 = vpop.f32.mrb[0].mxu0
        %v1104 = vadd.f32 %v917, %v1103
        %1105 = vmatprep.mubr.f32.mxu0 %v677
        %1106 = vmatmul.mubr.f32.gmra.mrb[0].mxu0 %v676
        %v1107 = vpop.f32.mrb[0].mxu0
        %v1108 = vadd.f32 %v913, %v1107
        %v1109 = vpop.f32.mrb[0].mxu0
        %v1110 = vadd.f32 %v917, %v1109
        %1111 = vmatprep.mubr.f32.mxu0 %v681
        %1112 = vmatmul.mubr.f32.gmra.mrb[0].mxu0 %v680
        %v1113 = vpop.f32.mrb[0].mxu0
        %v1114 = vadd.f32 %v913, %v1113
        %v1115 = vpop.f32.mrb[0].mxu0
        %v1116 = vadd.f32 %v917, %v1115
        %1117 = vmatprep.mubr.f32.mxu0 %v685
        %1118 = vmatmul.mubr.f32.gmra.mrb[0].mxu0 %v684
        %v1119 = vpop.f32.mrb[0].mxu0
        %v1120 = vadd.f32 %v913, %v1119
        %v1121 = vpop.f32.mrb[0].mxu0
        %v1122 = vadd.f32 %v917, %v1121
        %1123 = vmatprep.mubr.f32.mxu0 %v689
        %1124 = vmatmul.mubr.f32.gmra.mrb[0].mxu0 %v688
        %v1125 = vpop.f32.mrb[0].mxu0
        %v1126 = vadd.f32 %v913, %v1125
        %v1127 = vpop.f32.mrb[0].mxu0
        %v1128 = vadd.f32 %v917, %v1127
        %1129 = vmatprep.mubr.f32.mxu0 %v693
        %1130 = vmatmul.mubr.f32.gmra.mrb[0].mxu0 %v692
        %v1131 = vpop.f32.mrb[0].mxu0
        %v1132 = vadd.f32 %v913, %v1131
        %v1133 = vpop.f32.mrb[0].mxu0
        %v1134 = vadd.f32 %v917, %v1133
        %1135 = vmatprep.mubr.f32.mxu0 %v697
        %1136 = vmatmul.mubr.f32.gmra.mrb[0].mxu0 %v696
        %v1137 = vpop.f32.mrb[0].mxu0
        %v1138 = vadd.f32 %v913, %v1137
        %v1139 = vpop.f32.mrb[0].mxu0
        %v1140 = vadd.f32 %v917, %v1139
        %1141 = vmatprep.mubr.f32.mxu0 %v701
        %1142 = vmatmul.mubr.f32.gmra.mrb[0].mxu0 %v700
        %v1143 = vpop.f32.mrb[0].mxu0
        %v1144 = vadd.f32 %v913, %v1143
        %v1145 = vpop.f32.mrb[0].mxu0
        %v1146 = vadd.f32 %v917, %v1145
        %1147 = vmatprep.mubr.f32.mxu0 %v705
        %1148 = vmatmul.mubr.f32.gmra.mrb[0].mxu0 %v704
        %v1149 = vpop.f32.mrb[0].mxu0
        %v1150 = vadd.f32 %v913, %v1149
        %v1151 = vpop.f32.mrb[0].mxu0
        %v1152 = vadd.f32 %v917, %v1151
        %1153 = vmatprep.mubr.f32.mxu0 %v709
        %1154 = vmatmul.mubr.f32.gmra.mrb[0].mxu0 %v708
        %v1155 = vpop.f32.mrb[0].mxu0
        %v1156 = vadd.f32 %v913, %v1155
        %v1157 = vpop.f32.mrb[0].mxu0
        %v1158 = vadd.f32 %v917, %v1157
        %1159 = vmatprep.mubr.f32.mxu0 %v713
        %1160 = vmatmul.mubr.f32.gmra.mrb[0].mxu0 %v712
        %v1161 = vpop.f32.mrb[0].mxu0
        %v1162 = vadd.f32 %v913, %v1161
        %v1163 = vpop.f32.mrb[0].mxu0
        %v1164 = vadd.f32 %v917, %v1163
        %1165 = vmatprep.mubr.f32.mxu0 %v717
        %1166 = vmatmul.mubr.f32.gmra.mrb[0].mxu0 %v716
        %v1167 = vpop.f32.mrb[0].mxu0
        %v1168 = vadd.f32 %v913, %v1167
        %v1169 = vpop.f32.mrb[0].mxu0
        %v1170 = vadd.f32 %v917, %v1169
        %1171 = vmatprep.mubr.f32.mxu0 %v721
        %1172 = vmatmul.mubr.f32.gmra.mrb[0].mxu0 %v720
        %v1173 = vpop.f32.mrb[0].mxu0
        %v1174 = vadd.f32 %v913, %v1173
        %v1175 = vpop.f32.mrb[0].mxu0
        %v1176 = vadd.f32 %v917, %v1175
        %1177 = vmatprep.mubr.f32.mxu0 %v725
        %1178 = vmatmul.mubr.f32.gmra.mrb[0].mxu0 %v724
        %v1179 = vpop.f32.mrb[0].mxu0
        %v1180 = vadd.f32 %v913, %v1179
        %v1181 = vpop.f32.mrb[0].mxu0
        %v1182 = vadd.f32 %v917, %v1181
        %1183 = vmatprep.mubr.f32.mxu0 %v729
        %1184 = vmatmul.mubr.f32.gmra.mrb[0].mxu0 %v728
        %v1185 = vpop.f32.mrb[0].mxu0
        %v1186 = vadd.f32 %v913, %v1185
        %v1187 = vpop.f32.mrb[0].mxu0
        %v1188 = vadd.f32 %v917, %v1187
        %1189 = vmatprep.mubr.f32.mxu0 %v733
        %1190 = vmatmul.mubr.f32.gmra.mrb[0].mxu0 %v732
        %v1191 = vpop.f32.mrb[0].mxu0
        %v1192 = vadd.f32 %v913, %v1191
        %v1193 = vpop.f32.mrb[0].mxu0
        %v1194 = vadd.f32 %v917, %v1193
        %1195 = vmatprep.mubr.f32.mxu0 %v737
        %1196 = vmatmul.mubr.f32.gmra.mrb[0].mxu0 %v736
        %v1197 = vpop.f32.mrb[0].mxu0
        %v1198 = vadd.f32 %v913, %v1197
        %v1199 = vpop.f32.mrb[0].mxu0
        %v1200 = vadd.f32 %v917, %v1199
        %1201 = vmatprep.mubr.f32.mxu0 %v741
        %1202 = vmatmul.mubr.f32.gmra.mrb[0].mxu0 %v740
        %v1203 = vpop.f32.mrb[0].mxu0
        %v1204 = vadd.f32 %v913, %v1203
        %v1205 = vpop.f32.mrb[0].mxu0
        %v1206 = vadd.f32 %v917, %v1205
        %1207 = vmatprep.mubr.f32.mxu0 %v745
        %1208 = vmatmul.mubr.f32.gmra.mrb[0].mxu0 %v744
        %v1209 = vpop.f32.mrb[0].mxu0
        %v1210 = vadd.f32 %v913, %v1209
        %v1211 = vpop.f32.mrb[0].mxu0
        %v1212 = vadd.f32 %v917, %v1211
        %1213 = vmatprep.mubr.f32.mxu0 %v749
        %1214 = vmatmul.mubr.f32.gmra.mrb[0].mxu0 %v748
        %v1215 = vpop.f32.mrb[0].mxu0
        %v1216 = vadd.f32 %v913, %v1215
        %v1217 = vpop.f32.mrb[0].mxu0
        %v1218 = vadd.f32 %v917, %v1217
        %1219 = vmatprep.mubr.f32.mxu0 %v753
        %1220 = vmatmul.mubr.f32.gmra.mrb[0].mxu0 %v752
        %v1221 = vpop.f32.mrb[0].mxu0
        %v1222 = vadd.f32 %v913, %v1221
        %v1223 = vpop.f32.mrb[0].mxu0
        %v1224 = vadd.f32 %v917, %v1223
        %1225 = vmatprep.mubr.f32.mxu0 %v757
        %1226 = vmatmul.mubr.f32.gmra.mrb[0].mxu0 %v756
        %v1227 = vpop.f32.mrb[0].mxu0
        %v1228 = vadd.f32 %v913, %v1227
        %v1229 = vpop.f32.mrb[0].mxu0
        %v1230 = vadd.f32 %v917, %v1229
        %1231 = vmatprep.mubr.f32.mxu0 %v761
        %1232 = vmatmul.mubr.f32.gmra.mrb[0].mxu0 %v760
        %v1233 = vpop.f32.mrb[0].mxu0
        %v1234 = vadd.f32 %v913, %v1233
        %v1235 = vpop.f32.mrb[0].mxu0
        %v1236 = vadd.f32 %v917, %v1235
        %1237 = vmatprep.mubr.f32.mxu0 %v765
        %1238 = vmatmul.mubr.f32.gmra.mrb[0].mxu0 %v764
        %v1239 = vpop.f32.mrb[0].mxu0
        %v1240 = vadd.f32 %v913, %v1239
        %v1241 = vpop.f32.mrb[0].mxu0
        %v1242 = vadd.f32 %v917, %v1241
        %1243 = vmatprep.mubr.f32.mxu0 %v769
        %1244 = vmatmul.mubr.f32.gmra.mrb[0].mxu0 %v768
        %v1245 = vpop.f32.mrb[0].mxu0
        %v1246 = vadd.f32 %v913, %v1245
        %v1247 = vpop.f32.mrb[0].mxu0
        %v1248 = vadd.f32 %v917, %v1247
        %1249 = vmatprep.mubr.f32.mxu0 %v773
        %1250 = vmatmul.mubr.f32.gmra.mrb[0].mxu0 %v772
        %v1251 = vpop.f32.mrb[0].mxu0
        %v1252 = vadd.f32 %v913, %v1251
        %v1253 = vpop.f32.mrb[0].mxu0
        %v1254 = vadd.f32 %v917, %v1253
        %1255 = vmatprep.mubr.f32.mxu0 %v777
        %1256 = vmatmul.mubr.f32.gmra.mrb[0].mxu0 %v776
        %v1257 = vpop.f32.mrb[0].mxu0
        %v1258 = vadd.f32 %v913, %v1257
        %v1259 = vpop.f32.mrb[0].mxu0
        %v1260 = vadd.f32 %v917, %v1259
        %1261 = vmatprep.mubr.f32.mxu0 %v781
        %1262 = vmatmul.mubr.f32.gmra.mrb[0].mxu0 %v780
        %v1263 = vpop.f32.mrb[0].mxu0
        %v1264 = vadd.f32 %v913, %v1263
        %v1265 = vpop.f32.mrb[0].mxu0
        %v1266 = vadd.f32 %v917, %v1265
        %1267 = vmatprep.mubr.f32.mxu0 %v785
        %1268 = vmatmul.mubr.f32.gmra.mrb[0].mxu0 %v784
        %v1269 = vpop.f32.mrb[0].mxu0
        %v1270 = vadd.f32 %v913, %v1269
        %v1271 = vpop.f32.mrb[0].mxu0
        %v1272 = vadd.f32 %v917, %v1271
        %1273 = vdwg.mxu0
        %1274 = vmatprep.subr.mxu0 %v853
        %1275 = vmatpush1.msra.mxu0 %v852
        %1276 = vmatprep.subr.mxu0 %v855
        %1277 = vmatpush1.msra.mxu0 %v854
        %1278 = vmatprep.subr.mxu0 %v857
        %1279 = vmatpush1.msra.mxu0 %v856
        %1280 = vmatprep.subr.mxu0 %v859
        %1281 = vmatpush1.msra.mxu0 %v858
        %1282 = vmatprep.subr.mxu0 %v861
        %1283 = vmatpush1.msra.mxu0 %v860
        %1284 = vmatprep.subr.mxu0 %v863
        %1285 = vmatpush1.msra.mxu0 %v862
        %1286 = vmatprep.subr.mxu0 %v865
        %1287 = vmatpush1.msra.mxu0 %v864
        %1288 = vmatprep.subr.mxu0 %v867
        %1289 = vmatpush1.msra.mxu0 %v866
        %1290 = vmatprep.subr.mxu0 %v869
        %1291 = vmatpush1.msra.mxu0 %v868
        %1292 = vmatprep.subr.mxu0 %v871
        %1293 = vmatpush1.msra.mxu0 %v870
        %1294 = vmatprep.subr.mxu0 %v873
        %1295 = vmatpush1.msra.mxu0 %v872
        %1296 = vmatprep.subr.mxu0 %v875
        %1297 = vmatpush1.msra.mxu0 %v874
        %1298 = vmatprep.subr.mxu0 %v877
        %1299 = vmatpush1.msra.mxu0 %v876
        %1300 = vmatprep.subr.mxu0 %v879
        %1301 = vmatpush1.msra.mxu0 %v878
        %1302 = vmatprep.subr.mxu0 %v881
        %1303 = vmatpush1.msra.mxu0 %v880
        %1304 = vmatprep.subr.mxu0 %v883
        %1305 = vmatpush1.msra.mxu0 %v882
        %1306 = vmatprep.subr.mxu0 %v885
        %1307 = vmatpush1.msra.mxu0 %v884
        %1308 = vmatprep.subr.mxu0 %v887
        %1309 = vmatpush1.msra.mxu0 %v886
        %1310 = vmatprep.subr.mxu0 %v889
        %1311 = vmatpush1.msra.mxu0 %v888
        %1312 = vmatprep.subr.mxu0 %v891
        %1313 = vmatpush1.msra.mxu0 %v890
        %1314 = vmatprep.subr.mxu0 %v893
        %1315 = vmatpush1.msra.mxu0 %v892
        %1316 = vmatprep.subr.mxu0 %v895
        %1317 = vmatpush1.msra.mxu0 %v894
        %1318 = vmatprep.subr.mxu0 %v897
        %1319 = vmatpush1.msra.mxu0 %v896
        %1320 = vmatprep.subr.mxu0 %v899
        %1321 = vmatpush1.msra.mxu0 %v898
        %1322 = vmatprep.subr.mxu0 %v901
        %1323 = vmatpush1.msra.mxu0 %v900
        %1324 = vmatprep.subr.mxu0 %v903
        %1325 = vmatpush1.msra.mxu0 %v902
        %1326 = vmatprep.subr.mxu0 %v905
        %1327 = vmatpush1.msra.mxu0 %v904
        %1328 = vmatprep.subr.mxu0 %v907
        %1329 = vmatpush1.msra.mxu0 %v906
        %1330 = vmatprep.subr.mxu0 0.0
        %1331 = vmatpush1.msra.mxu0 0.0
        %1332 = vmatprep.subr.mxu0 0.0
        %1333 = vmatpush1.msra.mxu0 0.0
        %1334 = vmatprep.subr.mxu0 0.0
        %1335 = vmatpush1.msra.mxu0 0.0
        %1336 = vmatprep.subr.mxu0 0.0
        %1337 = vmatpush1.msra.mxu0 0.0
        %1338 = vmatprep.mubr.f32.mxu0 %v922
        %1339 = vmatmul.mubr.f32.gmra.mrb[0].mxu0 %v662
        %v1340 = vpop.f32.mrb[0].mxu0
        %v1341 = vadd.f32 %v1084, %v1340
        %v1342 = vpop.f32.mrb[0].mxu0
        %v1343 = vadd.f32 %v1086, %v1342
        %1344 = vmatprep.mubr.f32.mxu0 %v925
        %1345 = vmatmul.mubr.f32.gmra.mrb[0].mxu0 %v666
        %v1346 = vpop.f32.mrb[0].mxu0
        %v1347 = vadd.f32 %v1090, %v1346
        %v1348 = vpop.f32.mrb[0].mxu0
        %v1349 = vadd.f32 %v1092, %v1348
        %1350 = vmatprep.mubr.f32.mxu0 %v928
        %1351 = vmatmul.mubr.f32.gmra.mrb[0].mxu0 %v670
        %v1352 = vpop.f32.mrb[0].mxu0
        %v1353 = vadd.f32 %v1096, %v1352
        %v1354 = vpop.f32.mrb[0].mxu0
        %v1355 = vadd.f32 %v1098, %v1354
        %1356 = vmatprep.mubr.f32.mxu0 %v931
        %1357 = vmatmul.mubr.f32.gmra.mrb[0].mxu0 %v674
        %v1358 = vpop.f32.mrb[0].mxu0
        %v1359 = vadd.f32 %v1102, %v1358
        %v1360 = vpop.f32.mrb[0].mxu0
        %v1361 = vadd.f32 %v1104, %v1360
        %1362 = vmatprep.mubr.f32.mxu0 %v934
        %1363 = vmatmul.mubr.f32.gmra.mrb[0].mxu0 %v678
        %v1364 = vpop.f32.mrb[0].mxu0
        %v1365 = vadd.f32 %v1108, %v1364
        %v1366 = vpop.f32.mrb[0].mxu0
        %v1367 = vadd.f32 %v1110, %v1366
        %1368 = vmatprep.mubr.f32.mxu0 %v937
        %1369 = vmatmul.mubr.f32.gmra.mrb[0].mxu0 %v682
        %v1370 = vpop.f32.mrb[0].mxu0
        %v1371 = vadd.f32 %v1114, %v1370
        %v1372 = vpop.f32.mrb[0].mxu0
        %v1373 = vadd.f32 %v1116, %v1372
        %1374 = vmatprep.mubr.f32.mxu0 %v940
        %1375 = vmatmul.mubr.f32.gmra.mrb[0].mxu0 %v686
        %v1376 = vpop.f32.mrb[0].mxu0
        %v1377 = vadd.f32 %v1120, %v1376
        %v1378 = vpop.f32.mrb[0].mxu0
        %v1379 = vadd.f32 %v1122, %v1378
        %1380 = vmatprep.mubr.f32.mxu0 %v943
        %1381 = vmatmul.mubr.f32.gmra.mrb[0].mxu0 %v690
        %v1382 = vpop.f32.mrb[0].mxu0
        %v1383 = vadd.f32 %v1126, %v1382
        %v1384 = vpop.f32.mrb[0].mxu0
        %v1385 = vadd.f32 %v1128, %v1384
        %1386 = vmatprep.mubr.f32.mxu0 %v946
        %1387 = vmatmul.mubr.f32.gmra.mrb[0].mxu0 %v694
        %v1388 = vpop.f32.mrb[0].mxu0
        %v1389 = vadd.f32 %v1132, %v1388
        %v1390 = vpop.f32.mrb[0].mxu0
        %v1391 = vadd.f32 %v1134, %v1390
        %1392 = vmatprep.mubr.f32.mxu0 %v949
        %1393 = vmatmul.mubr.f32.gmra.mrb[0].mxu0 %v698
        %v1394 = vpop.f32.mrb[0].mxu0
        %v1395 = vadd.f32 %v1138, %v1394
        %v1396 = vpop.f32.mrb[0].mxu0
        %v1397 = vadd.f32 %v1140, %v1396
        %1398 = vmatprep.mubr.f32.mxu0 %v952
        %1399 = vmatmul.mubr.f32.gmra.mrb[0].mxu0 %v702
        %v1400 = vpop.f32.mrb[0].mxu0
        %v1401 = vadd.f32 %v1144, %v1400
        %v1402 = vpop.f32.mrb[0].mxu0
        %v1403 = vadd.f32 %v1146, %v1402
        %1404 = vmatprep.mubr.f32.mxu0 %v955
        %1405 = vmatmul.mubr.f32.gmra.mrb[0].mxu0 %v706
        %v1406 = vpop.f32.mrb[0].mxu0
        %v1407 = vadd.f32 %v1150, %v1406
        %v1408 = vpop.f32.mrb[0].mxu0
        %v1409 = vadd.f32 %v1152, %v1408
        %1410 = vmatprep.mubr.f32.mxu0 %v958
        %1411 = vmatmul.mubr.f32.gmra.mrb[0].mxu0 %v710
        %v1412 = vpop.f32.mrb[0].mxu0
        %v1413 = vadd.f32 %v1156, %v1412
        %v1414 = vpop.f32.mrb[0].mxu0
        %v1415 = vadd.f32 %v1158, %v1414
        %1416 = vmatprep.mubr.f32.mxu0 %v961
        %1417 = vmatmul.mubr.f32.gmra.mrb[0].mxu0 %v714
        %v1418 = vpop.f32.mrb[0].mxu0
        %v1419 = vadd.f32 %v1162, %v1418
        %v1420 = vpop.f32.mrb[0].mxu0
        %v1421 = vadd.f32 %v1164, %v1420
        %1422 = vmatprep.mubr.f32.mxu0 %v964
        %1423 = vmatmul.mubr.f32.gmra.mrb[0].mxu0 %v718
        %v1424 = vpop.f32.mrb[0].mxu0
        %v1425 = vadd.f32 %v1168, %v1424
        %v1426 = vpop.f32.mrb[0].mxu0
        %v1427 = vadd.f32 %v1170, %v1426
        %1428 = vmatprep.mubr.f32.mxu0 %v967
        %1429 = vmatmul.mubr.f32.gmra.mrb[0].mxu0 %v722
        %v1430 = vpop.f32.mrb[0].mxu0
        %v1431 = vadd.f32 %v1174, %v1430
        %v1432 = vpop.f32.mrb[0].mxu0
        %v1433 = vadd.f32 %v1176, %v1432
        %1434 = vmatprep.mubr.f32.mxu0 %v970
        %1435 = vmatmul.mubr.f32.gmra.mrb[0].mxu0 %v726
        %v1436 = vpop.f32.mrb[0].mxu0
        %v1437 = vadd.f32 %v1180, %v1436
        %v1438 = vpop.f32.mrb[0].mxu0
        %v1439 = vadd.f32 %v1182, %v1438
        %1440 = vmatprep.mubr.f32.mxu0 %v973
        %1441 = vmatmul.mubr.f32.gmra.mrb[0].mxu0 %v730
        %v1442 = vpop.f32.mrb[0].mxu0
        %v1443 = vadd.f32 %v1186, %v1442
        %v1444 = vpop.f32.mrb[0].mxu0
        %v1445 = vadd.f32 %v1188, %v1444
        %1446 = vmatprep.mubr.f32.mxu0 %v976
        %1447 = vmatmul.mubr.f32.gmra.mrb[0].mxu0 %v734
        %v1448 = vpop.f32.mrb[0].mxu0
        %v1449 = vadd.f32 %v1192, %v1448
        %v1450 = vpop.f32.mrb[0].mxu0
        %v1451 = vadd.f32 %v1194, %v1450
        %1452 = vmatprep.mubr.f32.mxu0 %v979
        %1453 = vmatmul.mubr.f32.gmra.mrb[0].mxu0 %v738
        %v1454 = vpop.f32.mrb[0].mxu0
        %v1455 = vadd.f32 %v1198, %v1454
        %v1456 = vpop.f32.mrb[0].mxu0
        %v1457 = vadd.f32 %v1200, %v1456
        %1458 = vmatprep.mubr.f32.mxu0 %v982
        %1459 = vmatmul.mubr.f32.gmra.mrb[0].mxu0 %v742
        %v1460 = vpop.f32.mrb[0].mxu0
        %v1461 = vadd.f32 %v1204, %v1460
        %v1462 = vpop.f32.mrb[0].mxu0
        %v1463 = vadd.f32 %v1206, %v1462
        %1464 = vmatprep.mubr.f32.mxu0 %v985
        %1465 = vmatmul.mubr.f32.gmra.mrb[0].mxu0 %v746
        %v1466 = vpop.f32.mrb[0].mxu0
        %v1467 = vadd.f32 %v1210, %v1466
        %v1468 = vpop.f32.mrb[0].mxu0
        %v1469 = vadd.f32 %v1212, %v1468
        %1470 = vmatprep.mubr.f32.mxu0 %v988
        %1471 = vmatmul.mubr.f32.gmra.mrb[0].mxu0 %v750
        %v1472 = vpop.f32.mrb[0].mxu0
        %v1473 = vadd.f32 %v1216, %v1472
        %v1474 = vpop.f32.mrb[0].mxu0
        %v1475 = vadd.f32 %v1218, %v1474
        %1476 = vmatprep.mubr.f32.mxu0 %v991
        %1477 = vmatmul.mubr.f32.gmra.mrb[0].mxu0 %v754
        %v1478 = vpop.f32.mrb[0].mxu0
        %v1479 = vadd.f32 %v1222, %v1478
        %v1480 = vpop.f32.mrb[0].mxu0
        %v1481 = vadd.f32 %v1224, %v1480
        %1482 = vmatprep.mubr.f32.mxu0 %v994
        %1483 = vmatmul.mubr.f32.gmra.mrb[0].mxu0 %v758
        %v1484 = vpop.f32.mrb[0].mxu0
        %v1485 = vadd.f32 %v1228, %v1484
        %v1486 = vpop.f32.mrb[0].mxu0
        %v1487 = vadd.f32 %v1230, %v1486
        %1488 = vmatprep.mubr.f32.mxu0 %v997
        %1489 = vmatmul.mubr.f32.gmra.mrb[0].mxu0 %v762
        %v1490 = vpop.f32.mrb[0].mxu0
        %v1491 = vadd.f32 %v1234, %v1490
        %v1492 = vpop.f32.mrb[0].mxu0
        %v1493 = vadd.f32 %v1236, %v1492
        %1494 = vmatprep.mubr.f32.mxu0 %v1000
        %1495 = vmatmul.mubr.f32.gmra.mrb[0].mxu0 %v766
        %v1496 = vpop.f32.mrb[0].mxu0
        %v1497 = vadd.f32 %v1240, %v1496
        %v1498 = vpop.f32.mrb[0].mxu0
        %v1499 = vadd.f32 %v1242, %v1498
        %1500 = vmatprep.mubr.f32.mxu0 %v1003
        %1501 = vmatmul.mubr.f32.gmra.mrb[0].mxu0 %v770
        %v1502 = vpop.f32.mrb[0].mxu0
        %v1503 = vadd.f32 %v1246, %v1502
        %v1504 = vpop.f32.mrb[0].mxu0
        %v1505 = vadd.f32 %v1248, %v1504
        %1506 = vmatprep.mubr.f32.mxu0 %v1006
        %1507 = vmatmul.mubr.f32.gmra.mrb[0].mxu0 %v774
        %v1508 = vpop.f32.mrb[0].mxu0
        %v1509 = vadd.f32 %v1252, %v1508
        %v1510 = vpop.f32.mrb[0].mxu0
        %v1511 = vadd.f32 %v1254, %v1510
        %1512 = vmatprep.mubr.f32.mxu0 %v1009
        %1513 = vmatmul.mubr.f32.gmra.mrb[0].mxu0 %v778
        %v1514 = vpop.f32.mrb[0].mxu0
        %v1515 = vadd.f32 %v1258, %v1514
        %v1516 = vpop.f32.mrb[0].mxu0
        %v1517 = vadd.f32 %v1260, %v1516
        %1518 = vmatprep.mubr.f32.mxu0 %v1012
        %1519 = vmatmul.mubr.f32.gmra.mrb[0].mxu0 %v782
        %v1520 = vpop.f32.mrb[0].mxu0
        %v1521 = vadd.f32 %v1264, %v1520
        %v1522 = vpop.f32.mrb[0].mxu0
        %v1523 = vadd.f32 %v1266, %v1522
        %1524 = vmatprep.mubr.f32.mxu0 %v1015
        %1525 = vmatmul.mubr.f32.gmra.mrb[0].mxu0 %v786
        %v1526 = vpop.f32.mrb[0].mxu0
        %v1527 = vadd.f32 %v1270, %v1526
        %v1528 = vpop.f32.mrb[0].mxu0
        %v1529 = vadd.f32 %v1272, %v1528
        %1530 = vdwg.mxu0
        %v1531 = vmax.f32 %v1341, 0.0
        %v1532 = vmax.f32 %v1343, 0.0
        %v1533 = vmax.f32 %v1347, 0.0
        %v1534 = vmax.f32 %v1349, 0.0
        %v1535 = vmax.f32 %v1353, 0.0
        %v1536 = vmax.f32 %v1355, 0.0
        %v1537 = vmax.f32 %v1359, 0.0
        %v1538 = vmax.f32 %v1361, 0.0
        %v1539 = vmax.f32 %v1365, 0.0
        %v1540 = vmax.f32 %v1367, 0.0
        %v1541 = vmax.f32 %v1371, 0.0
        %v1542 = vmax.f32 %v1373, 0.0
        %v1543 = vmax.f32 %v1377, 0.0
        %v1544 = vmax.f32 %v1379, 0.0
        %v1545 = vmax.f32 %v1383, 0.0
        %v1546 = vmax.f32 %v1385, 0.0
        %v1547 = vmax.f32 %v1389, 0.0
        %v1548 = vmax.f32 %v1391, 0.0
        %v1549 = vmax.f32 %v1395, 0.0
        %v1550 = vmax.f32 %v1397, 0.0
        %v1551 = vmax.f32 %v1401, 0.0
        %v1552 = vmax.f32 %v1403, 0.0
        %v1553 = vmax.f32 %v1407, 0.0
        %v1554 = vmax.f32 %v1409, 0.0
        %v1555 = vmax.f32 %v1413, 0.0
        %v1556 = vmax.f32 %v1415, 0.0
        %v1557 = vmax.f32 %v1419, 0.0
        %v1558 = vmax.f32 %v1421, 0.0
        %v1559 = vmax.f32 %v1425, 0.0
        %v1560 = vmax.f32 %v1427, 0.0
        %v1561 = vmax.f32 %v1431, 0.0
        %v1562 = vmax.f32 %v1433, 0.0
        %v1563 = vmax.f32 %v1437, 0.0
        %v1564 = vmax.f32 %v1439, 0.0
        %v1565 = vmax.f32 %v1443, 0.0
        %v1566 = vmax.f32 %v1445, 0.0
        %v1567 = vmax.f32 %v1449, 0.0
        %v1568 = vmax.f32 %v1451, 0.0
        %v1569 = vmax.f32 %v1455, 0.0
        %v1570 = vmax.f32 %v1457, 0.0
        %v1571 = vmax.f32 %v1461, 0.0
        %v1572 = vmax.f32 %v1463, 0.0
        %v1573 = vmax.f32 %v1467, 0.0
        %v1574 = vmax.f32 %v1469, 0.0
        %v1575 = vmax.f32 %v1473, 0.0
        %v1576 = vmax.f32 %v1475, 0.0
        %v1577 = vmax.f32 %v1479, 0.0
        %v1578 = vmax.f32 %v1481, 0.0
        %v1579 = vmax.f32 %v1485, 0.0
        %v1580 = vmax.f32 %v1487, 0.0
        %v1581 = vmax.f32 %v1491, 0.0
        %v1582 = vmax.f32 %v1493, 0.0
        %v1583 = vmax.f32 %v1497, 0.0
        %v1584 = vmax.f32 %v1499, 0.0
        %v1585 = vmax.f32 %v1503, 0.0
        %v1586 = vmax.f32 %v1505, 0.0
        %v1587 = vmax.f32 %v1509, 0.0
        %v1588 = vmax.f32 %v1511, 0.0
        %v1589 = vmax.f32 %v1515, 0.0
        %v1590 = vmax.f32 %v1517, 0.0
        %v1591 = vmax.f32 %v1521, 0.0
        %v1592 = vmax.f32 %v1523, 0.0
        %v1593 = vmax.f32 %v1527, 0.0
        %v1594 = vmax.f32 %v1529, 0.0
        %v1595 = vld [vmem:[%s3] sm:$0xff]
        %v1596 = vld [vmem:[%s3 + $0x8] sm:$0xff]
        %v1597 = vld [vmem:[%s3 + $0x10] sm:$0xff]
        %v1598 = vld [vmem:[%s3 + $0x18] sm:$0xff]
        %v1599 = vld [vmem:[%s3 + $0x20] sm:$0xff]
        %v1600 = vld [vmem:[%s3 + $0x28] sm:$0xff]
        %v1601 = vld [vmem:[%s3 + $0x30] sm:$0xff]
        %v1602 = vld [vmem:[%s3 + $0x38] sm:$0xff]
        %v1603 = vld [vmem:[%s3 + $0x40] sm:$0xff]
        %v1604 = vld [vmem:[%s3 + $0x48] sm:$0xff]
        %v1605 = vld [vmem:[%s3 + $0x50] sm:$0xff]
        %v1606 = vld [vmem:[%s3 + $0x58] sm:$0xff]
        %v1607 = vld [vmem:[%s3 + $0x60] sm:$0xff]
        %v1608 = vld [vmem:[%s3 + $0x68] sm:$0xff]
        %v1609 = vld [vmem:[%s3 + $0x70] sm:$0xff]
        %v1610 = vld [vmem:[%s3 + $0x78] sm:$0xff]
        %v1611 = vld [vmem:[%s3 + $0x80] sm:$0xff]
        %v1612 = vld [vmem:[%s3 + $0x88] sm:$0xff]
        %v1613 = vld [vmem:[%s3 + $0x90] sm:$0xff]
        %v1614 = vld [vmem:[%s3 + $0x98] sm:$0xff]
        %v1615 = vld [vmem:[%s3 + $0xa0] sm:$0xff]
        %v1616 = vld [vmem:[%s3 + $0xa8] sm:$0xff]
        %v1617 = vld [vmem:[%s3 + $0xb0] sm:$0xff]
        %v1618 = vld [vmem:[%s3 + $0xb8] sm:$0xff]
        %v1619 = vld [vmem:[%s3 + $0xc0] sm:$0xff]
        %v1620 = vld [vmem:[%s3 + $0xc8] sm:$0xff]
        %v1621 = vld [vmem:[%s3 + $0xd0] sm:$0xff]
        %v1622 = vld [vmem:[%s3 + $0xd8] sm:$0xff]
        %1623 = vmatprep.subr.mxu0 %v1532
        %1624 = vmatpush1.msra.mxu0 %v1531
        %1625 = vmatprep.subr.mxu0 %v1534
        %1626 = vmatpush1.msra.mxu0 %v1533
        %1627 = vmatprep.subr.mxu0 %v1536
        %1628 = vmatpush1.msra.mxu0 %v1535
        %1629 = vmatprep.subr.mxu0 %v1538
        %1630 = vmatpush1.msra.mxu0 %v1537
        %1631 = vmatprep.subr.mxu0 %v1540
        %1632 = vmatpush1.msra.mxu0 %v1539
        %1633 = vmatprep.subr.mxu0 %v1542
        %1634 = vmatpush1.msra.mxu0 %v1541
        %1635 = vmatprep.subr.mxu0 %v1544
        %1636 = vmatpush1.msra.mxu0 %v1543
        %1637 = vmatprep.subr.mxu0 %v1546
        %1638 = vmatpush1.msra.mxu0 %v1545
        %1639 = vmatprep.subr.mxu0 %v1548
        %1640 = vmatpush1.msra.mxu0 %v1547
        %1641 = vmatprep.subr.mxu0 %v1550
        %1642 = vmatpush1.msra.mxu0 %v1549
        %1643 = vmatprep.subr.mxu0 %v1552
        %1644 = vmatpush1.msra.mxu0 %v1551
        %1645 = vmatprep.subr.mxu0 %v1554
        %1646 = vmatpush1.msra.mxu0 %v1553
        %1647 = vmatprep.subr.mxu0 %v1556
        %1648 = vmatpush1.msra.mxu0 %v1555
        %1649 = vmatprep.subr.mxu0 %v1558
        %1650 = vmatpush1.msra.mxu0 %v1557
        %1651 = vmatprep.subr.mxu0 %v1560
        %1652 = vmatpush1.msra.mxu0 %v1559
        %1653 = vmatprep.subr.mxu0 %v1562
        %1654 = vmatpush1.msra.mxu0 %v1561
        %1655 = vmatprep.subr.mxu0 %v1564
        %1656 = vmatpush1.msra.mxu0 %v1563
        %1657 = vmatprep.subr.mxu0 %v1566
        %1658 = vmatpush1.msra.mxu0 %v1565
        %1659 = vmatprep.subr.mxu0 %v1568
        %1660 = vmatpush1.msra.mxu0 %v1567
        %1661 = vmatprep.subr.mxu0 %v1570
        %1662 = vmatpush1.msra.mxu0 %v1569
        %1663 = vmatprep.subr.mxu0 %v1572
        %1664 = vmatpush1.msra.mxu0 %v1571
        %1665 = vmatprep.subr.mxu0 %v1574
        %1666 = vmatpush1.msra.mxu0 %v1573
        %1667 = vmatprep.subr.mxu0 %v1576
        %1668 = vmatpush1.msra.mxu0 %v1575
        %1669 = vmatprep.subr.mxu0 %v1578
        %1670 = vmatpush1.msra.mxu0 %v1577
        %1671 = vmatprep.subr.mxu0 %v1580
        %1672 = vmatpush1.msra.mxu0 %v1579
        %1673 = vmatprep.subr.mxu0 %v1582
        %1674 = vmatpush1.msra.mxu0 %v1581
        %1675 = vmatprep.subr.mxu0 %v1584
        %1676 = vmatpush1.msra.mxu0 %v1583
        %1677 = vmatprep.subr.mxu0 %v1586
        %1678 = vmatpush1.msra.mxu0 %v1585
        %1679 = vmatprep.subr.mxu0 %v1588
        %1680 = vmatpush1.msra.mxu0 %v1587
        %1681 = vmatprep.subr.mxu0 %v1590
        %1682 = vmatpush1.msra.mxu0 %v1589
        %1683 = vmatprep.subr.mxu0 %v1592
        %1684 = vmatpush1.msra.mxu0 %v1591
        %1685 = vmatprep.subr.mxu0 %v1594
        %1686 = vmatpush1.msra.mxu0 %v1593
        %1687 = vmatprep.mubr.f32.mxu0 %v1596
        %1688 = vmatmul.mubr.f32.gmra.mrb[0].mxu0 %v1595
        %v1689 = vpop.f32.mrb[0].mxu0
        %v1690 = vadd.f32 0.0, %v1689
        %v1691 = vpop.f32.mrb[0].mxu0
        %v1692 = vadd.f32 0.0, %v1691
        %1693 = vmatprep.mubr.f32.mxu0 %v1598
        %1694 = vmatmul.mubr.f32.gmra.mrb[0].mxu0 %v1597
        %v1695 = vpop.f32.mrb[0].mxu0
        %v1696 = vadd.f32 0.0, %v1695
        %v1697 = vpop.f32.mrb[0].mxu0
        %v1698 = vadd.f32 0.0, %v1697
        %1699 = vmatprep.mubr.f32.mxu0 %v1600
        %1700 = vmatmul.mubr.f32.gmra.mrb[0].mxu0 %v1599
        %v1701 = vpop.f32.mrb[0].mxu0
        %v1702 = vadd.f32 0.0, %v1701
        %v1703 = vpop.f32.mrb[0].mxu0
        %v1704 = vadd.f32 0.0, %v1703
        %1705 = vmatprep.mubr.f32.mxu0 %v1602
        %1706 = vmatmul.mubr.f32.gmra.mrb[0].mxu0 %v1601
        %v1707 = vpop.f32.mrb[0].mxu0
        %v1708 = vadd.f32 0.0, %v1707
        %v1709 = vpop.f32.mrb[0].mxu0
        %v1710 = vadd.f32 0.0, %v1709
        %1711 = vmatprep.mubr.f32.mxu0 %v1604
        %1712 = vmatmul.mubr.f32.gmra.mrb[0].mxu0 %v1603
        %v1713 = vpop.f32.mrb[0].mxu0
        %v1714 = vadd.f32 0.0, %v1713
        %v1715 = vpop.f32.mrb[0].mxu0
        %v1716 = vadd.f32 0.0, %v1715
        %1717 = vmatprep.mubr.f32.mxu0 %v1606
        %1718 = vmatmul.mubr.f32.gmra.mrb[0].mxu0 %v1605
        %v1719 = vpop.f32.mrb[0].mxu0
        %v1720 = vadd.f32 0.0, %v1719
        %v1721 = vpop.f32.mrb[0].mxu0
        %v1722 = vadd.f32 0.0, %v1721
        %1723 = vmatprep.mubr.f32.mxu0 %v1608
        %1724 = vmatmul.mubr.f32.gmra.mrb[0].mxu0 %v1607
        %v1725 = vpop.f32.mrb[0].mxu0
        %v1726 = vadd.f32 0.0, %v1725
        %v1727 = vpop.f32.mrb[0].mxu0
        %v1728 = vadd.f32 0.0, %v1727
        %1729 = vmatprep.mubr.f32.mxu0 %v1610
        %1730 = vmatmul.mubr.f32.gmra.mrb[0].mxu0 %v1609
        %v1731 = vpop.f32.mrb[0].mxu0
        %v1732 = vadd.f32 0.0, %v1731
        %v1733 = vpop.f32.mrb[0].mxu0
        %v1734 = vadd.f32 0.0, %v1733
        %1735 = vmatprep.mubr.f32.mxu0 %v1612
        %1736 = vmatmul.mubr.f32.gmra.mrb[0].mxu0 %v1611
        %v1737 = vpop.f32.mrb[0].mxu0
        %v1738 = vadd.f32 0.0, %v1737
        %v1739 = vpop.f32.mrb[0].mxu0
        %v1740 = vadd.f32 0.0, %v1739
        %1741 = vmatprep.mubr.f32.mxu0 %v1614
        %1742 = vmatmul.mubr.f32.gmra.mrb[0].mxu0 %v1613
        %v1743 = vpop.f32.mrb[0].mxu0
        %v1744 = vadd.f32 0.0, %v1743
        %v1745 = vpop.f32.mrb[0].mxu0
        %v1746 = vadd.f32 0.0, %v1745
        %1747 = vmatprep.mubr.f32.mxu0 %v1616
        %1748 = vmatmul.mubr.f32.gmra.mrb[0].mxu0 %v1615
        %v1749 = vpop.f32.mrb[0].mxu0
        %v1750 = vadd.f32 0.0, %v1749
        %v1751 = vpop.f32.mrb[0].mxu0
        %v1752 = vadd.f32 0.0, %v1751
        %1753 = vmatprep.mubr.f32.mxu0 %v1618
        %1754 = vmatmul.mubr.f32.gmra.mrb[0].mxu0 %v1617
        %v1755 = vpop.f32.mrb[0].mxu0
        %v1756 = vadd.f32 0.0, %v1755
        %v1757 = vpop.f32.mrb[0].mxu0
        %v1758 = vadd.f32 0.0, %v1757
        %1759 = vmatprep.mubr.f32.mxu0 %v1620
        %1760 = vmatmul.mubr.f32.gmra.mrb[0].mxu0 %v1619
        %v1761 = vpop.f32.mrb[0].mxu0
        %v1762 = vadd.f32 0.0, %v1761
        %v1763 = vpop.f32.mrb[0].mxu0
        %v1764 = vadd.f32 0.0, %v1763
        %1765 = vmatprep.mubr.f32.mxu0 %v1622
        %1766 = vmatmul.mubr.f32.gmra.mrb[0].mxu0 %v1621
        %v1767 = vpop.f32.mrb[0].mxu0
        %v1768 = vadd.f32 0.0, %v1767
        %v1769 = vpop.f32.mrb[0].mxu0
        %v1770 = vadd.f32 0.0, %v1769
        %1771 = vdwg.mxu0
        %v1772 = vld [vmem:[%s4] sm:$0xff]
        %v1773 = vld [vmem:[%s4 + $0x8] sm:$0xff]
        %v1774 = vld [vmem:[%s4 + $0x10] sm:$0xff]
        %v1775 = vld [vmem:[%s4 + $0x18] sm:$0xff]
        %v1776 = vld [vmem:[%s4 + $0x20] sm:$0xff]
        %v1777 = vld [vmem:[%s4 + $0x28] sm:$0xff]
        %v1778 = vld [vmem:[%s4 + $0x30] sm:$0xff]
        %v1779 = vld [vmem:[%s4 + $0x38] sm:$0xff]
        %v1780 = vld [vmem:[%s4 + $0x40] sm:$0xff]
        %v1781 = vld [vmem:[%s4 + $0x48] sm:$0xff]
        %v1782 = vld [vmem:[%s4 + $0x50] sm:$0xff]
        %v1783 = vld [vmem:[%s4 + $0x58] sm:$0xff]
        %v1784 = vld [vmem:[%s4 + $0x60] sm:$0xff]
        %v1785 = vld [vmem:[%s4 + $0x68] sm:$0xff]
        %v1786 = vld [vmem:[%s4 + $0x70] sm:$0xff]
        %v1787 = vld [vmem:[%s4 + $0x78] sm:$0xff]
        %v1788 = vld [vmem:[%s4 + $0x80] sm:$0xff]
        %v1789 = vld [vmem:[%s4 + $0x88] sm:$0xff]
        %v1790 = vld [vmem:[%s4 + $0x90] sm:$0xff]
        %v1791 = vld [vmem:[%s4 + $0x98] sm:$0xff]
        %v1792 = vld [vmem:[%s4 + $0xa0] sm:$0xff]
        %v1793 = vld [vmem:[%s4 + $0xa8] sm:$0xff]
        %v1794 = vld [vmem:[%s4 + $0xb0] sm:$0xff]
        %v1795 = vld [vmem:[%s4 + $0xb8] sm:$0xff]
        %v1796 = vld [vmem:[%s4 + $0xc0] sm:$0xff]
        %v1797 = vld [vmem:[%s4 + $0xc8] sm:$0xff]
        %v1798 = vld [vmem:[%s4 + $0xd0] sm:$0xff]
        %v1799 = vld [vmem:[%s4 + $0xd8] sm:$0xff]
        %1800 = vmatprep.subr.mxu0 %v1532
        %1801 = vmatpush1.msra.mxu0 %v1531
        %1802 = vmatprep.subr.mxu0 %v1534
        %1803 = vmatpush1.msra.mxu0 %v1533
        %1804 = vmatprep.subr.mxu0 %v1536
        %1805 = vmatpush1.msra.mxu0 %v1535
        %1806 = vmatprep.subr.mxu0 %v1538
        %1807 = vmatpush1.msra.mxu0 %v1537
        %1808 = vmatprep.subr.mxu0 %v1540
        %1809 = vmatpush1.msra.mxu0 %v1539
        %1810 = vmatprep.subr.mxu0 %v1542
        %1811 = vmatpush1.msra.mxu0 %v1541
        %1812 = vmatprep.subr.mxu0 %v1544
        %1813 = vmatpush1.msra.mxu0 %v1543
        %1814 = vmatprep.subr.mxu0 %v1546
        %1815 = vmatpush1.msra.mxu0 %v1545
        %1816 = vmatprep.subr.mxu0 %v1548
        %1817 = vmatpush1.msra.mxu0 %v1547
        %1818 = vmatprep.subr.mxu0 %v1550
        %1819 = vmatpush1.msra.mxu0 %v1549
        %1820 = vmatprep.subr.mxu0 %v1552
        %1821 = vmatpush1.msra.mxu0 %v1551
        %1822 = vmatprep.subr.mxu0 %v1554
        %1823 = vmatpush1.msra.mxu0 %v1553
        %1824 = vmatprep.subr.mxu0 %v1556
        %1825 = vmatpush1.msra.mxu0 %v1555
        %1826 = vmatprep.subr.mxu0 %v1558
        %1827 = vmatpush1.msra.mxu0 %v1557
        %1828 = vmatprep.subr.mxu0 %v1560
        %1829 = vmatpush1.msra.mxu0 %v1559
        %1830 = vmatprep.subr.mxu0 %v1562
        %1831 = vmatpush1.msra.mxu0 %v1561
        %1832 = vmatprep.subr.mxu0 %v1564
        %1833 = vmatpush1.msra.mxu0 %v1563
        %1834 = vmatprep.subr.mxu0 %v1566
        %1835 = vmatpush1.msra.mxu0 %v1565
        %1836 = vmatprep.subr.mxu0 %v1568
        %1837 = vmatpush1.msra.mxu0 %v1567
        %1838 = vmatprep.subr.mxu0 %v1570
        %1839 = vmatpush1.msra.mxu0 %v1569
        %1840 = vmatprep.subr.mxu0 %v1572
        %1841 = vmatpush1.msra.mxu0 %v1571
        %1842 = vmatprep.subr.mxu0 %v1574
        %1843 = vmatpush1.msra.mxu0 %v1573
        %1844 = vmatprep.subr.mxu0 %v1576
        %1845 = vmatpush1.msra.mxu0 %v1575
        %1846 = vmatprep.subr.mxu0 %v1578
        %1847 = vmatpush1.msra.mxu0 %v1577
        %1848 = vmatprep.subr.mxu0 %v1580
        %1849 = vmatpush1.msra.mxu0 %v1579
        %1850 = vmatprep.subr.mxu0 %v1582
        %1851 = vmatpush1.msra.mxu0 %v1581
        %1852 = vmatprep.subr.mxu0 %v1584
        %1853 = vmatpush1.msra.mxu0 %v1583
        %1854 = vmatprep.subr.mxu0 %v1586
        %1855 = vmatpush1.msra.mxu0 %v1585
        %1856 = vmatprep.subr.mxu0 %v1588
        %1857 = vmatpush1.msra.mxu0 %v1587
        %1858 = vmatprep.subr.mxu0 %v1590
        %1859 = vmatpush1.msra.mxu0 %v1589
        %1860 = vmatprep.subr.mxu0 %v1592
        %1861 = vmatpush1.msra.mxu0 %v1591
        %1862 = vmatprep.subr.mxu0 %v1594
        %1863 = vmatpush1.msra.mxu0 %v1593
        %1864 = vmatprep.mubr.f32.mxu0 %v1773
        %1865 = vmatmul.mubr.f32.gmra.mrb[0].mxu0 %v1772
        %v1866 = vpop.f32.mrb[0].mxu0
        %v1867 = vadd.f32 0.0, %v1866
        %v1868 = vpop.f32.mrb[0].mxu0
        %v1869 = vadd.f32 0.0, %v1868
        %1870 = vmatprep.mubr.f32.mxu0 %v1775
        %1871 = vmatmul.mubr.f32.gmra.mrb[0].mxu0 %v1774
        %v1872 = vpop.f32.mrb[0].mxu0
        %v1873 = vadd.f32 0.0, %v1872
        %v1874 = vpop.f32.mrb[0].mxu0
        %v1875 = vadd.f32 0.0, %v1874
        %1876 = vmatprep.mubr.f32.mxu0 %v1777
        %1877 = vmatmul.mubr.f32.gmra.mrb[0].mxu0 %v1776
        %v1878 = vpop.f32.mrb[0].mxu0
        %v1879 = vadd.f32 0.0, %v1878
        %v1880 = vpop.f32.mrb[0].mxu0
        %v1881 = vadd.f32 0.0, %v1880
        %1882 = vmatprep.mubr.f32.mxu0 %v1779
        %1883 = vmatmul.mubr.f32.gmra.mrb[0].mxu0 %v1778
        %v1884 = vpop.f32.mrb[0].mxu0
        %v1885 = vadd.f32 0.0, %v1884
        %v1886 = vpop.f32.mrb[0].mxu0
        %v1887 = vadd.f32 0.0, %v1886
        %1888 = vmatprep.mubr.f32.mxu0 %v1781
        %1889 = vmatmul.mubr.f32.gmra.mrb[0].mxu0 %v1780
        %v1890 = vpop.f32.mrb[0].mxu0
        %v1891 = vadd.f32 0.0, %v1890
        %v1892 = vpop.f32.mrb[0].mxu0
        %v1893 = vadd.f32 0.0, %v1892
        %1894 = vmatprep.mubr.f32.mxu0 %v1783
        %1895 = vmatmul.mubr.f32.gmra.mrb[0].mxu0 %v1782
        %v1896 = vpop.f32.mrb[0].mxu0
        %v1897 = vadd.f32 0.0, %v1896
        %v1898 = vpop.f32.mrb[0].mxu0
        %v1899 = vadd.f32 0.0, %v1898
        %1900 = vmatprep.mubr.f32.mxu0 %v1785
        %1901 = vmatmul.mubr.f32.gmra.mrb[0].mxu0 %v1784
        %v1902 = vpop.f32.mrb[0].mxu0
        %v1903 = vadd.f32 0.0, %v1902
        %v1904 = vpop.f32.mrb[0].mxu0
        %v1905 = vadd.f32 0.0, %v1904
        %1906 = vmatprep.mubr.f32.mxu0 %v1787
        %1907 = vmatmul.mubr.f32.gmra.mrb[0].mxu0 %v1786
        %v1908 = vpop.f32.mrb[0].mxu0
        %v1909 = vadd.f32 0.0, %v1908
        %v1910 = vpop.f32.mrb[0].mxu0
        %v1911 = vadd.f32 0.0, %v1910
        %1912 = vmatprep.mubr.f32.mxu0 %v1789
        %1913 = vmatmul.mubr.f32.gmra.mrb[0].mxu0 %v1788
        %v1914 = vpop.f32.mrb[0].mxu0
        %v1915 = vadd.f32 0.0, %v1914
        %v1916 = vpop.f32.mrb[0].mxu0
        %v1917 = vadd.f32 0.0, %v1916
        %1918 = vmatprep.mubr.f32.mxu0 %v1791
        %1919 = vmatmul.mubr.f32.gmra.mrb[0].mxu0 %v1790
        %v1920 = vpop.f32.mrb[0].mxu0
        %v1921 = vadd.f32 0.0, %v1920
        %v1922 = vpop.f32.mrb[0].mxu0
        %v1923 = vadd.f32 0.0, %v1922
        %1924 = vmatprep.mubr.f32.mxu0 %v1793
        %1925 = vmatmul.mubr.f32.gmra.mrb[0].mxu0 %v1792
        %v1926 = vpop.f32.mrb[0].mxu0
        %v1927 = vadd.f32 0.0, %v1926
        %v1928 = vpop.f32.mrb[0].mxu0
        %v1929 = vadd.f32 0.0, %v1928
        %1930 = vmatprep.mubr.f32.mxu0 %v1795
        %1931 = vmatmul.mubr.f32.gmra.mrb[0].mxu0 %v1794
        %v1932 = vpop.f32.mrb[0].mxu0
        %v1933 = vadd.f32 0.0, %v1932
        %v1934 = vpop.f32.mrb[0].mxu0
        %v1935 = vadd.f32 0.0, %v1934
        %1936 = vmatprep.mubr.f32.mxu0 %v1797
        %1937 = vmatmul.mubr.f32.gmra.mrb[0].mxu0 %v1796
        %v1938 = vpop.f32.mrb[0].mxu0
        %v1939 = vadd.f32 0.0, %v1938
        %v1940 = vpop.f32.mrb[0].mxu0
        %v1941 = vadd.f32 0.0, %v1940
        %1942 = vmatprep.mubr.f32.mxu0 %v1799
        %1943 = vmatmul.mubr.f32.gmra.mrb[0].mxu0 %v1798
        %v1944 = vpop.f32.mrb[0].mxu0
        %v1945 = vadd.f32 0.0, %v1944
        %v1946 = vpop.f32.mrb[0].mxu0
        %v1947 = vadd.f32 0.0, %v1946
        %1948 = vdwg.mxu0
        %v1949 = vmax.f32 %v1690, %v1867
        %v1950 = vmax.f32 %v1692, %v1869
        %v1951 = vmax.f32 %v1696, %v1873
        %v1952 = vmax.f32 %v1698, %v1875
        %v1953 = vmax.f32 %v1702, %v1879
        %v1954 = vmax.f32 %v1704, %v1881
        %v1955 = vmax.f32 %v1708, %v1885
        %v1956 = vmax.f32 %v1710, %v1887
        %v1957 = vmax.f32 %v1714, %v1891
        %v1958 = vmax.f32 %v1716, %v1893
        %v1959 = vmax.f32 %v1720, %v1897
        %v1960 = vmax.f32 %v1722, %v1899
        %v1961 = vmax.f32 %v1726, %v1903
        %v1962 = vmax.f32 %v1728, %v1905
        %v1963 = vmax.f32 %v1732, %v1909
        %v1964 = vmax.f32 %v1734, %v1911
        %v1965 = vmax.f32 %v1738, %v1915
        %v1966 = vmax.f32 %v1740, %v1917
        %v1967 = vmax.f32 %v1744, %v1921
        %v1968 = vmax.f32 %v1746, %v1923
        %v1969 = vmax.f32 %v1750, %v1927
        %v1970 = vmax.f32 %v1752, %v1929
        %v1971 = vmax.f32 %v1756, %v1933
        %v1972 = vmax.f32 %v1758, %v1935
        %v1973 = vmax.f32 %v1762, %v1939
        %v1974 = vmax.f32 %v1764, %v1941
        %v1975 = vmax.f32 %v1768, %v1945
        %v1976 = vmax.f32 %v1770, %v1947
        %v1977 = vld [vmem:[%s5] sm:$0xff]
        %v1978 = vld [vmem:[%s5 + $0x8] sm:$0xff]
        %v1979 = vld [vmem:[%s5 + $0x10] sm:$0xff]
        %v1980 = vld [vmem:[%s5 + $0x18] sm:$0xff]
        %v1981 = vld [vmem:[%s5 + $0x20] sm:$0xff]
        %v1982 = vld [vmem:[%s5 + $0x28] sm:$0xff]
        %v1983 = vld [vmem:[%s5 + $0x30] sm:$0xff]
        %v1984 = vld [vmem:[%s5 + $0x38] sm:$0xff]
        %v1985 = vld [vmem:[%s5 + $0x40] sm:$0xff]
        %v1986 = vld [vmem:[%s5 + $0x48] sm:$0xff]
        %v1987 = vld [vmem:[%s5 + $0x50] sm:$0xff]
        %v1988 = vld [vmem:[%s5 + $0x58] sm:$0xff]
        %v1989 = vld [vmem:[%s5 + $0x60] sm:$0xff]
        %v1990 = vld [vmem:[%s5 + $0x68] sm:$0xff]
        %v1991 = vld [vmem:[%s5 + $0x70] sm:$0xff]
        %v1992 = vld [vmem:[%s5 + $0x78] sm:$0xff]
        %v1993 = vld [vmem:[%s5 + $0x80] sm:$0xff]
        %v1994 = vld [vmem:[%s5 + $0x88] sm:$0xff]
        %v1995 = vld [vmem:[%s5 + $0x90] sm:$0xff]
        %v1996 = vld [vmem:[%s5 + $0x98] sm:$0xff]
        %v1997 = vld [vmem:[%s5 + $0xa0] sm:$0xff]
        %vm1998 = vcmask 326656
        %v2000 = vsel %vm1998, %v1950, 0
        %v2003 = vsel %vm1998, %v1952, 0
        %v2006 = vsel %vm1998, %v1954, 0
        %v2009 = vsel %vm1998, %v1956, 0
        %v2012 = vsel %vm1998, %v1958, 0
        %v2015 = vsel %vm1998, %v1960, 0
        %v2018 = vsel %vm1998, %v1962, 0
        %v2021 = vsel %vm1998, %v1964, 0
        %v2024 = vsel %vm1998, %v1966, 0
        %v2027 = vsel %vm1998, %v1968, 0
        %v2030 = vsel %vm1998, %v1970, 0
        %v2033 = vsel %vm1998, %v1972, 0
        %v2036 = vsel %vm1998, %v1974, 0
        %v2039 = vsel %vm1998, %v1976, 0
        %2041 = vmatprep.subr.mxu0 0.0
        %2042 = vmatpush1.msra.mxu0 %v1977
        %2043 = vmatprep.subr.mxu0 0.0
        %2044 = vmatpush1.msra.mxu0 %v1978
        %2045 = vmatprep.subr.mxu0 0.0
        %2046 = vmatpush1.msra.mxu0 %v1979
        %2047 = vmatprep.subr.mxu0 0.0
        %2048 = vmatpush1.msra.mxu0 %v1980
        %2049 = vmatprep.subr.mxu0 0.0
        %2050 = vmatpush1.msra.mxu0 %v1981
        %2051 = vmatprep.subr.mxu0 0.0
        %2052 = vmatpush1.msra.mxu0 %v1982
        %2053 = vmatprep.subr.mxu0 0.0
        %2054 = vmatpush1.msra.mxu0 %v1983
        %2055 = vmatprep.subr.mxu0 0.0
        %2056 = vmatpush1.msra.mxu0 %v1984
        %2057 = vmatprep.subr.mxu0 0.0
        %2058 = vmatpush1.msra.mxu0 %v1985
        %2059 = vmatprep.subr.mxu0 0.0
        %2060 = vmatpush1.msra.mxu0 %v1986
        %2061 = vmatprep.subr.mxu0 0.0
        %2062 = vmatpush1.msra.mxu0 %v1987
        %2063 = vmatprep.subr.mxu0 0.0
        %2064 = vmatpush1.msra.mxu0 %v1988
        %2065 = vmatprep.subr.mxu0 0.0
        %2066 = vmatpush1.msra.mxu0 %v1989
        %2067 = vmatprep.subr.mxu0 0.0
        %2068 = vmatpush1.msra.mxu0 %v1990
        %2069 = vmatprep.subr.mxu0 0.0
        %2070 = vmatpush1.msra.mxu0 %v1991
        %2071 = vmatprep.subr.mxu0 0.0
        %2072 = vmatpush1.msra.mxu0 %v1992
        %2073 = vmatprep.subr.mxu0 0.0
        %2074 = vmatpush1.msra.mxu0 %v1993
        %2075 = vmatprep.subr.mxu0 0.0
        %2076 = vmatpush1.msra.mxu0 %v1994
        %2077 = vmatprep.subr.mxu0 0.0
        %2078 = vmatpush1.msra.mxu0 %v1995
        %2079 = vmatprep.subr.mxu0 0.0
        %2080 = vmatpush1.msra.mxu0 %v1996
        %2081 = vmatprep.subr.mxu0 0.0
        %2082 = vmatpush1.msra.mxu0 %v1997
        %2083 = vmatprep.subr.mxu0 0.0
        %2084 = vmatpush1.msra.mxu0 0.0
        %2085 = vmatprep.subr.mxu0 0.0
        %2086 = vmatpush1.msra.mxu0 0.0
        %2087 = vmatprep.subr.mxu0 0.0
        %2088 = vmatpush1.msra.mxu0 0.0
        %2089 = vmatprep.subr.mxu0 0.0
        %2090 = vmatpush1.msra.mxu0 0.0
        %2091 = vmatprep.subr.mxu0 0.0
        %2092 = vmatpush1.msra.mxu0 0.0
        %2093 = vmatprep.subr.mxu0 0.0
        %2094 = vmatpush1.msra.mxu0 0.0
        %2095 = vmatprep.subr.mxu0 0.0
        %2096 = vmatpush1.msra.mxu0 0.0
        %2097 = vmatprep.subr.mxu0 0.0
        %2098 = vmatpush1.msra.mxu0 0.0
        %2099 = vmatprep.subr.mxu0 0.0
        %2100 = vmatpush1.msra.mxu0 0.0
        %2101 = vmatprep.subr.mxu0 0.0
        %2102 = vmatpush1.msra.mxu0 0.0
        %2103 = vmatprep.subr.mxu0 0.0
        %2104 = vmatpush1.msra.mxu0 0.0
        %2105 = vmatprep.mubr.f32.mxu0 %v2000
        %2106 = vmatmul.mubr.f32.gmra.mrb[0].mxu0 %v1949
        %v2107 = vpop.f32.mrb[0].mxu0
        %v2108 = vadd.f32 0.0, %v2107
        %v2109 = vpop.f32.mrb[0].mxu0
        %2110 = vmatprep.mubr.f32.mxu0 %v2003
        %2111 = vmatmul.mubr.f32.gmra.mrb[0].mxu0 %v1951
        %v2112 = vpop.f32.mrb[0].mxu0
        %v2113 = vadd.f32 0.0, %v2112
        %v2114 = vpop.f32.mrb[0].mxu0
        %2115 = vmatprep.mubr.f32.mxu0 %v2006
        %2116 = vmatmul.mubr.f32.gmra.mrb[0].mxu0 %v1953
        %v2117 = vpop.f32.mrb[0].mxu0
        %v2118 = vadd.f32 0.0, %v2117
        %v2119 = vpop.f32.mrb[0].mxu0
        %2120 = vmatprep.mubr.f32.mxu0 %v2009
        %2121 = vmatmul.mubr.f32.gmra.mrb[0].mxu0 %v1955
        %v2122 = vpop.f32.mrb[0].mxu0
        %v2123 = vadd.f32 0.0, %v2122
        %v2124 = vpop.f32.mrb[0].mxu0
        %2125 = vmatprep.mubr.f32.mxu0 %v2012
        %2126 = vmatmul.mubr.f32.gmra.mrb[0].mxu0 %v1957
        %v2127 = vpop.f32.mrb[0].mxu0
        %v2128 = vadd.f32 0.0, %v2127
        %v2129 = vpop.f32.mrb[0].mxu0
        %2130 = vmatprep.mubr.f32.mxu0 %v2015
        %2131 = vmatmul.mubr.f32.gmra.mrb[0].mxu0 %v1959
        %v2132 = vpop.f32.mrb[0].mxu0
        %v2133 = vadd.f32 0.0, %v2132
        %v2134 = vpop.f32.mrb[0].mxu0
        %2135 = vmatprep.mubr.f32.mxu0 %v2018
        %2136 = vmatmul.mubr.f32.gmra.mrb[0].mxu0 %v1961
        %v2137 = vpop.f32.mrb[0].mxu0
        %v2138 = vadd.f32 0.0, %v2137
        %v2139 = vpop.f32.mrb[0].mxu0
        %2140 = vmatprep.mubr.f32.mxu0 %v2021
        %2141 = vmatmul.mubr.f32.gmra.mrb[0].mxu0 %v1963
        %v2142 = vpop.f32.mrb[0].mxu0
        %v2143 = vadd.f32 0.0, %v2142
        %v2144 = vpop.f32.mrb[0].mxu0
        %2145 = vmatprep.mubr.f32.mxu0 %v2024
        %2146 = vmatmul.mubr.f32.gmra.mrb[0].mxu0 %v1965
        %v2147 = vpop.f32.mrb[0].mxu0
        %v2148 = vadd.f32 0.0, %v2147
        %v2149 = vpop.f32.mrb[0].mxu0
        %2150 = vmatprep.mubr.f32.mxu0 %v2027
        %2151 = vmatmul.mubr.f32.gmra.mrb[0].mxu0 %v1967
        %v2152 = vpop.f32.mrb[0].mxu0
        %v2153 = vadd.f32 0.0, %v2152
        %v2154 = vpop.f32.mrb[0].mxu0
        %2155 = vmatprep.mubr.f32.mxu0 %v2030
        %2156 = vmatmul.mubr.f32.gmra.mrb[0].mxu0 %v1969
        %v2157 = vpop.f32.mrb[0].mxu0
        %v2158 = vadd.f32 0.0, %v2157
        %v2159 = vpop.f32.mrb[0].mxu0
        %2160 = vmatprep.mubr.f32.mxu0 %v2033
        %2161 = vmatmul.mubr.f32.gmra.mrb[0].mxu0 %v1971
        %v2162 = vpop.f32.mrb[0].mxu0
        %v2163 = vadd.f32 0.0, %v2162
        %v2164 = vpop.f32.mrb[0].mxu0
        %2165 = vmatprep.mubr.f32.mxu0 %v2036
        %2166 = vmatmul.mubr.f32.gmra.mrb[0].mxu0 %v1973
        %v2167 = vpop.f32.mrb[0].mxu0
        %v2168 = vadd.f32 0.0, %v2167
        %v2169 = vpop.f32.mrb[0].mxu0
        %2170 = vmatprep.mubr.f32.mxu0 %v2039
        %2171 = vmatmul.mubr.f32.gmra.mrb[0].mxu0 %v1975
        %v2172 = vpop.f32.mrb[0].mxu0
        %v2173 = vadd.f32 0.0, %v2172
        %v2174 = vpop.f32.mrb[0].mxu0
        %2175 = vdwg.mxu0
        %v2176 = vld [vmem:[%s6] sm:$0xff]
        %v2177 = vld [vmem:[%s6 + $0x8] sm:$0xff]
        %v2178 = vld [vmem:[%s6 + $0x10] sm:$0xff]
        %v2179 = vld [vmem:[%s6 + $0x18] sm:$0xff]
        %v2180 = vld [vmem:[%s6 + $0x20] sm:$0xff]
        %v2181 = vld [vmem:[%s6 + $0x28] sm:$0xff]
        %v2182 = vld [vmem:[%s6 + $0x30] sm:$0xff]
        %v2183 = vld [vmem:[%s6 + $0x38] sm:$0xff]
        %v2184 = vld [vmem:[%s6 + $0x40] sm:$0xff]
        %v2185 = vld [vmem:[%s6 + $0x48] sm:$0xff]
        %v2186 = vld [vmem:[%s6 + $0x50] sm:$0xff]
        %v2187 = vld [vmem:[%s6 + $0x58] sm:$0xff]
        %v2188 = vld [vmem:[%s6 + $0x60] sm:$0xff]
        %v2189 = vld [vmem:[%s6 + $0x68] sm:$0xff]
        %v2190 = vld [vmem:[%s6 + $0x70] sm:$0xff]
        %v2191 = vld [vmem:[%s6 + $0x78] sm:$0xff]
        %v2192 = vld [vmem:[%s6 + $0x80] sm:$0xff]
        %v2193 = vld [vmem:[%s6 + $0x88] sm:$0xff]
        %v2194 = vld [vmem:[%s6 + $0x90] sm:$0xff]
        %v2195 = vld [vmem:[%s6 + $0x98] sm:$0xff]
        %v2196 = vld [vmem:[%s6 + $0xa0] sm:$0xff]
        %2197 = vmatprep.subr.mxu0 0.0
        %2198 = vmatpush1.msra.mxu0 %v2176
        %2199 = vmatprep.subr.mxu0 0.0
        %2200 = vmatpush1.msra.mxu0 %v2177
        %2201 = vmatprep.subr.mxu0 0.0
        %2202 = vmatpush1.msra.mxu0 %v2178
        %2203 = vmatprep.subr.mxu0 0.0
        %2204 = vmatpush1.msra.mxu0 %v2179
        %2205 = vmatprep.subr.mxu0 0.0
        %2206 = vmatpush1.msra.mxu0 %v2180
        %2207 = vmatprep.subr.mxu0 0.0
        %2208 = vmatpush1.msra.mxu0 %v2181
        %2209 = vmatprep.subr.mxu0 0.0
        %2210 = vmatpush1.msra.mxu0 %v2182
        %2211 = vmatprep.subr.mxu0 0.0
        %2212 = vmatpush1.msra.mxu0 %v2183
        %2213 = vmatprep.subr.mxu0 0.0
        %2214 = vmatpush1.msra.mxu0 %v2184
        %2215 = vmatprep.subr.mxu0 0.0
        %2216 = vmatpush1.msra.mxu0 %v2185
        %2217 = vmatprep.subr.mxu0 0.0
        %2218 = vmatpush1.msra.mxu0 %v2186
        %2219 = vmatprep.subr.mxu0 0.0
        %2220 = vmatpush1.msra.mxu0 %v2187
        %2221 = vmatprep.subr.mxu0 0.0
        %2222 = vmatpush1.msra.mxu0 %v2188
        %2223 = vmatprep.subr.mxu0 0.0
        %2224 = vmatpush1.msra.mxu0 %v2189
        %2225 = vmatprep.subr.mxu0 0.0
        %2226 = vmatpush1.msra.mxu0 %v2190
        %2227 = vmatprep.subr.mxu0 0.0
        %2228 = vmatpush1.msra.mxu0 %v2191
        %2229 = vmatprep.subr.mxu0 0.0
        %2230 = vmatpush1.msra.mxu0 %v2192
        %2231 = vmatprep.subr.mxu0 0.0
        %2232 = vmatpush1.msra.mxu0 %v2193
        %2233 = vmatprep.subr.mxu0 0.0
        %2234 = vmatpush1.msra.mxu0 %v2194
        %2235 = vmatprep.subr.mxu0 0.0
        %2236 = vmatpush1.msra.mxu0 %v2195
        %2237 = vmatprep.subr.mxu0 0.0
        %2238 = vmatpush1.msra.mxu0 %v2196
        %2239 = vmatprep.subr.mxu0 0.0
        %2240 = vmatpush1.msra.mxu0 0.0
        %2241 = vmatprep.subr.mxu0 0.0
        %2242 = vmatpush1.msra.mxu0 0.0
        %2243 = vmatprep.subr.mxu0 0.0
        %2244 = vmatpush1.msra.mxu0 0.0
        %2245 = vmatprep.subr.mxu0 0.0
        %2246 = vmatpush1.msra.mxu0 0.0
        %2247 = vmatprep.subr.mxu0 0.0
        %2248 = vmatpush1.msra.mxu0 0.0
        %2249 = vmatprep.subr.mxu0 0.0
        %2250 = vmatpush1.msra.mxu0 0.0
        %2251 = vmatprep.subr.mxu0 0.0
        %2252 = vmatpush1.msra.mxu0 0.0
        %2253 = vmatprep.subr.mxu0 0.0
        %2254 = vmatpush1.msra.mxu0 0.0
        %2255 = vmatprep.subr.mxu0 0.0
        %2256 = vmatpush1.msra.mxu0 0.0
        %2257 = vmatprep.subr.mxu0 0.0
        %2258 = vmatpush1.msra.mxu0 0.0
        %2259 = vmatprep.subr.mxu0 0.0
        %2260 = vmatpush1.msra.mxu0 0.0
        %2261 = vmatprep.mubr.f32.mxu0 %v2000
        %2262 = vmatmul.mubr.f32.gmra.mrb[0].mxu0 %v1949
        %v2263 = vpop.f32.mrb[0].mxu0
        %v2264 = vadd.f32 0.0, %v2263
        %v2265 = vpop.f32.mrb[0].mxu0
        %2266 = vmatprep.mubr.f32.mxu0 %v2003
        %2267 = vmatmul.mubr.f32.gmra.mrb[0].mxu0 %v1951
        %v2268 = vpop.f32.mrb[0].mxu0
        %v2269 = vadd.f32 0.0, %v2268
        %v2270 = vpop.f32.mrb[0].mxu0
        %2271 = vmatprep.mubr.f32.mxu0 %v2006
        %2272 = vmatmul.mubr.f32.gmra.mrb[0].mxu0 %v1953
        %v2273 = vpop.f32.mrb[0].mxu0
        %v2274 = vadd.f32 0.0, %v2273
        %v2275 = vpop.f32.mrb[0].mxu0
        %2276 = vmatprep.mubr.f32.mxu0 %v2009
        %2277 = vmatmul.mubr.f32.gmra.mrb[0].mxu0 %v1955
        %v2278 = vpop.f32.mrb[0].mxu0
        %v2279 = vadd.f32 0.0, %v2278
        %v2280 = vpop.f32.mrb[0].mxu0
        %2281 = vmatprep.mubr.f32.mxu0 %v2012
        %2282 = vmatmul.mubr.f32.gmra.mrb[0].mxu0 %v1957
        %v2283 = vpop.f32.mrb[0].mxu0
        %v2284 = vadd.f32 0.0, %v2283
        %v2285 = vpop.f32.mrb[0].mxu0
        %2286 = vmatprep.mubr.f32.mxu0 %v2015
        %2287 = vmatmul.mubr.f32.gmra.mrb[0].mxu0 %v1959
        %v2288 = vpop.f32.mrb[0].mxu0
        %v2289 = vadd.f32 0.0, %v2288
        %v2290 = vpop.f32.mrb[0].mxu0
        %2291 = vmatprep.mubr.f32.mxu0 %v2018
        %2292 = vmatmul.mubr.f32.gmra.mrb[0].mxu0 %v1961
        %v2293 = vpop.f32.mrb[0].mxu0
        %v2294 = vadd.f32 0.0, %v2293
        %v2295 = vpop.f32.mrb[0].mxu0
        %2296 = vmatprep.mubr.f32.mxu0 %v2021
        %2297 = vmatmul.mubr.f32.gmra.mrb[0].mxu0 %v1963
        %v2298 = vpop.f32.mrb[0].mxu0
        %v2299 = vadd.f32 0.0, %v2298
        %v2300 = vpop.f32.mrb[0].mxu0
        %2301 = vmatprep.mubr.f32.mxu0 %v2024
        %2302 = vmatmul.mubr.f32.gmra.mrb[0].mxu0 %v1965
        %v2303 = vpop.f32.mrb[0].mxu0
        %v2304 = vadd.f32 0.0, %v2303
        %v2305 = vpop.f32.mrb[0].mxu0
        %2306 = vmatprep.mubr.f32.mxu0 %v2027
        %2307 = vmatmul.mubr.f32.gmra.mrb[0].mxu0 %v1967
        %v2308 = vpop.f32.mrb[0].mxu0
        %v2309 = vadd.f32 0.0, %v2308
        %v2310 = vpop.f32.mrb[0].mxu0
        %2311 = vmatprep.mubr.f32.mxu0 %v2030
        %2312 = vmatmul.mubr.f32.gmra.mrb[0].mxu0 %v1969
        %v2313 = vpop.f32.mrb[0].mxu0
        %v2314 = vadd.f32 0.0, %v2313
        %v2315 = vpop.f32.mrb[0].mxu0
        %2316 = vmatprep.mubr.f32.mxu0 %v2033
        %2317 = vmatmul.mubr.f32.gmra.mrb[0].mxu0 %v1971
        %v2318 = vpop.f32.mrb[0].mxu0
        %v2319 = vadd.f32 0.0, %v2318
        %v2320 = vpop.f32.mrb[0].mxu0
        %2321 = vmatprep.mubr.f32.mxu0 %v2036
        %2322 = vmatmul.mubr.f32.gmra.mrb[0].mxu0 %v1973
        %v2323 = vpop.f32.mrb[0].mxu0
        %v2324 = vadd.f32 0.0, %v2323
        %v2325 = vpop.f32.mrb[0].mxu0
        %2326 = vmatprep.mubr.f32.mxu0 %v2039
        %2327 = vmatmul.mubr.f32.gmra.mrb[0].mxu0 %v1975
        %v2328 = vpop.f32.mrb[0].mxu0
        %v2329 = vadd.f32 0.0, %v2328
        %v2330 = vpop.f32.mrb[0].mxu0
        %2331 = vdwg.mxu0
        %v2332 = vmax.f32 %v2108, %v2264
        %v2333 = vmax.f32 %v2113, %v2269
        %v2334 = vmax.f32 %v2118, %v2274
        %v2335 = vmax.f32 %v2123, %v2279
        %v2336 = vmax.f32 %v2128, %v2284
        %v2337 = vmax.f32 %v2133, %v2289
        %v2338 = vmax.f32 %v2138, %v2294
        %v2339 = vmax.f32 %v2143, %v2299
        %v2340 = vmax.f32 %v2148, %v2304
        %v2341 = vmax.f32 %v2153, %v2309
        %v2342 = vmax.f32 %v2158, %v2314
        %v2343 = vmax.f32 %v2163, %v2319
        %v2344 = vmax.f32 %v2168, %v2324
        %v2345 = vmax.f32 %v2173, %v2329
        %v2346 = vld [vmem:[%s7] sm:$0xff]
        %v2347 = vld [vmem:[%s7 + $0x8] sm:$0xff]
        %v2348 = vld [vmem:[%s7 + $0x10] sm:$0xff]
        %v2349 = vld [vmem:[%s7 + $0x18] sm:$0xff]
        %v2350 = vld [vmem:[%s7 + $0x20] sm:$0xff]
        %v2351 = vld [vmem:[%s7 + $0x28] sm:$0xff]
        %v2352 = vld [vmem:[%s7 + $0x30] sm:$0xff]
        %v2353 = vld [vmem:[%s7 + $0x38] sm:$0xff]
        %v2354 = vld [vmem:[%s7 + $0x40] sm:$0xff]
        %v2355 = vld [vmem:[%s7 + $0x48] sm:$0xff]
        %vm2356 = vcmask 916480
        %v2358 = vsel %vm2356, %v2346, 0
        %v2361 = vsel %vm2356, %v2347, 0
        %v2364 = vsel %vm2356, %v2348, 0
        %v2367 = vsel %vm2356, %v2349, 0
        %v2370 = vsel %vm2356, %v2350, 0
        %v2373 = vsel %vm2356, %v2351, 0
        %v2376 = vsel %vm2356, %v2352, 0
        %v2379 = vsel %vm2356, %v2353, 0
        %v2382 = vsel %vm2356, %v2354, 0
        %v2385 = vsel %vm2356, %v2355, 0
        %2387 = vmatprep.subr.mxu0 0.0
        %2388 = vmatpush1.msra.mxu0 %v2332
        %2389 = vmatprep.subr.mxu0 0.0
        %2390 = vmatpush1.msra.mxu0 %v2333
        %2391 = vmatprep.subr.mxu0 0.0
        %2392 = vmatpush1.msra.mxu0 %v2334
        %2393 = vmatprep.subr.mxu0 0.0
        %2394 = vmatpush1.msra.mxu0 %v2335
        %2395 = vmatprep.subr.mxu0 0.0
        %2396 = vmatpush1.msra.mxu0 %v2336
        %2397 = vmatprep.subr.mxu0 0.0
        %2398 = vmatpush1.msra.mxu0 %v2337
        %2399 = vmatprep.subr.mxu0 0.0
        %2400 = vmatpush1.msra.mxu0 %v2338
        %2401 = vmatprep.subr.mxu0 0.0
        %2402 = vmatpush1.msra.mxu0 %v2339
        %2403 = vmatprep.subr.mxu0 0.0
        %2404 = vmatpush1.msra.mxu0 %v2340
        %2405 = vmatprep.subr.mxu0 0.0
        %2406 = vmatpush1.msra.mxu0 %v2341
        %2407 = vmatprep.subr.mxu0 0.0
        %2408 = vmatpush1.msra.mxu0 %v2342
        %2409 = vmatprep.subr.mxu0 0.0
        %2410 = vmatpush1.msra.mxu0 %v2343
        %2411 = vmatprep.subr.mxu0 0.0
        %2412 = vmatpush1.msra.mxu0 %v2344
        %2413 = vmatprep.subr.mxu0 0.0
        %2414 = vmatpush1.msra.mxu0 %v2345
        %2415 = vmatprep.subr.mxu0 0.0
        %2416 = vmatpush1.msra.mxu0 0.0
        %2417 = vmatprep.subr.mxu0 0.0
        %2418 = vmatpush1.msra.mxu0 0.0
        %2419 = vmatprep.subr.mxu0 0.0
        %2420 = vmatpush1.msra.mxu0 0.0
        %2421 = vmatprep.subr.mxu0 0.0
        %2422 = vmatpush1.msra.mxu0 0.0
        %2423 = vmatprep.subr.mxu0 0.0
        %2424 = vmatpush1.msra.mxu0 0.0
        %2425 = vmatprep.subr.mxu0 0.0
        %2426 = vmatpush1.msra.mxu0 0.0
        %2427 = vmatprep.subr.mxu0 0.0
        %2428 = vmatpush1.msra.mxu0 0.0
        %2429 = vmatprep.subr.mxu0 0.0
        %2430 = vmatpush1.msra.mxu0 0.0
        %2431 = vmatprep.subr.mxu0 0.0
        %2432 = vmatpush1.msra.mxu0 0.0
        %2433 = vmatprep.subr.mxu0 0.0
        %2434 = vmatpush1.msra.mxu0 0.0
        %2435 = vmatprep.subr.mxu0 0.0
        %2436 = vmatpush1.msra.mxu0 0.0
        %2437 = vmatprep.subr.mxu0 0.0
        %2438 = vmatpush1.msra.mxu0 0.0
        %2439 = vmatprep.subr.mxu0 0.0
        %2440 = vmatpush1.msra.mxu0 0.0
        %2441 = vmatprep.subr.mxu0 0.0
        %2442 = vmatpush1.msra.mxu0 0.0
        %2443 = vmatprep.subr.mxu0 0.0
        %2444 = vmatpush1.msra.mxu0 0.0
        %2445 = vmatprep.subr.mxu0 0.0
        %2446 = vmatpush1.msra.mxu0 0.0
        %2447 = vmatprep.subr.mxu0 0.0
        %2448 = vmatpush1.msra.mxu0 0.0
        %2449 = vmatprep.subr.mxu0 0.0
        %2450 = vmatpush1.msra.mxu0 0.0
        %2451 = vmatprep.mubr.f32.mxu0 0.0
        %2452 = vmatmul.mubr.f32.gmra.mrb[0].mxu0 %v2358
        %v2453 = vpop.f32.mrb[0].mxu0
        %v2454 = vadd.f32 0.0, %v2453
        %v2455 = vpop.f32.mrb[0].mxu0
        %2456 = vmatprep.mubr.f32.mxu0 0.0
        %2457 = vmatmul.mubr.f32.gmra.mrb[0].mxu0 %v2361
        %v2458 = vpop.f32.mrb[0].mxu0
        %v2459 = vadd.f32 0.0, %v2458
        %v2460 = vpop.f32.mrb[0].mxu0
        %2461 = vmatprep.mubr.f32.mxu0 0.0
        %2462 = vmatmul.mubr.f32.gmra.mrb[0].mxu0 %v2364
        %v2463 = vpop.f32.mrb[0].mxu0
        %v2464 = vadd.f32 0.0, %v2463
        %v2465 = vpop.f32.mrb[0].mxu0
        %2466 = vmatprep.mubr.f32.mxu0 0.0
        %2467 = vmatmul.mubr.f32.gmra.mrb[0].mxu0 %v2367
        %v2468 = vpop.f32.mrb[0].mxu0
        %v2469 = vadd.f32 0.0, %v2468
        %v2470 = vpop.f32.mrb[0].mxu0
        %2471 = vmatprep.mubr.f32.mxu0 0.0
        %2472 = vmatmul.mubr.f32.gmra.mrb[0].mxu0 %v2370
        %v2473 = vpop.f32.mrb[0].mxu0
        %v2474 = vadd.f32 0.0, %v2473
        %v2475 = vpop.f32.mrb[0].mxu0
        %2476 = vmatprep.mubr.f32.mxu0 0.0
        %2477 = vmatmul.mubr.f32.gmra.mrb[0].mxu0 %v2373
        %v2478 = vpop.f32.mrb[0].mxu0
        %v2479 = vadd.f32 0.0, %v2478
        %v2480 = vpop.f32.mrb[0].mxu0
        %2481 = vmatprep.mubr.f32.mxu0 0.0
        %2482 = vmatmul.mubr.f32.gmra.mrb[0].mxu0 %v2376
        %v2483 = vpop.f32.mrb[0].mxu0
        %v2484 = vadd.f32 0.0, %v2483
        %v2485 = vpop.f32.mrb[0].mxu0
        %2486 = vmatprep.mubr.f32.mxu0 0.0
        %2487 = vmatmul.mubr.f32.gmra.mrb[0].mxu0 %v2379
        %v2488 = vpop.f32.mrb[0].mxu0
        %v2489 = vadd.f32 0.0, %v2488
        %v2490 = vpop.f32.mrb[0].mxu0
        %2491 = vmatprep.mubr.f32.mxu0 0.0
        %2492 = vmatmul.mubr.f32.gmra.mrb[0].mxu0 %v2382
        %v2493 = vpop.f32.mrb[0].mxu0
        %v2494 = vadd.f32 0.0, %v2493
        %v2495 = vpop.f32.mrb[0].mxu0
        %2496 = vmatprep.mubr.f32.mxu0 0.0
        %2497 = vmatmul.mubr.f32.gmra.mrb[0].mxu0 %v2385
        %v2498 = vpop.f32.mrb[0].mxu0
        %v2499 = vadd.f32 0.0, %v2498
        %v2500 = vpop.f32.mrb[0].mxu0
        %2501 = vdwg.mxu0
        %s2502 = scalar_lea.vmem %s7, 80
        %v2503 = vld [vmem:[%s2502] sm:$0xff]
        %v2504 = vld [vmem:[%s2502 + $0x8] sm:$0xff]
        %v2505 = vld [vmem:[%s2502 + $0x10] sm:$0xff]
        %v2506 = vld [vmem:[%s2502 + $0x18] sm:$0xff]
        %v2507 = vld [vmem:[%s2502 + $0x20] sm:$0xff]
        %v2508 = vld [vmem:[%s2502 + $0x28] sm:$0xff]
        %v2509 = vld [vmem:[%s2502 + $0x30] sm:$0xff]
        %v2510 = vld [vmem:[%s2502 + $0x38] sm:$0xff]
        %v2511 = vld [vmem:[%s2502 + $0x40] sm:$0xff]
        %v2512 = vld [vmem:[%s2502 + $0x48] sm:$0xff]
        %v2514 = vsel %vm2356, %v2503, 0
        %v2517 = vsel %vm2356, %v2504, 0
        %v2520 = vsel %vm2356, %v2505, 0
        %v2523 = vsel %vm2356, %v2506, 0
        %v2526 = vsel %vm2356, %v2507, 0
        %v2529 = vsel %vm2356, %v2508, 0
        %v2532 = vsel %vm2356, %v2509, 0
        %v2535 = vsel %vm2356, %v2510, 0
        %v2538 = vsel %vm2356, %v2511, 0
        %v2541 = vsel %vm2356, %v2512, 0
        %2543 = vmatprep.subr.mxu0 0.0
        %2544 = vmatpush1.msra.mxu0 %v2332
        %2545 = vmatprep.subr.mxu0 0.0
        %2546 = vmatpush1.msra.mxu0 %v2333
        %2547 = vmatprep.subr.mxu0 0.0
        %2548 = vmatpush1.msra.mxu0 %v2334
        %2549 = vmatprep.subr.mxu0 0.0
        %2550 = vmatpush1.msra.mxu0 %v2335
        %2551 = vmatprep.subr.mxu0 0.0
        %2552 = vmatpush1.msra.mxu0 %v2336
        %2553 = vmatprep.subr.mxu0 0.0
        %2554 = vmatpush1.msra.mxu0 %v2337
        %2555 = vmatprep.subr.mxu0 0.0
        %2556 = vmatpush1.msra.mxu0 %v2338
        %2557 = vmatprep.subr.mxu0 0.0
        %2558 = vmatpush1.msra.mxu0 %v2339
        %2559 = vmatprep.subr.mxu0 0.0
        %2560 = vmatpush1.msra.mxu0 %v2340
        %2561 = vmatprep.subr.mxu0 0.0
        %2562 = vmatpush1.msra.mxu0 %v2341
        %2563 = vmatprep.subr.mxu0 0.0
        %2564 = vmatpush1.msra.mxu0 %v2342
        %2565 = vmatprep.subr.mxu0 0.0
        %2566 = vmatpush1.msra.mxu0 %v2343
        %2567 = vmatprep.subr.mxu0 0.0
        %2568 = vmatpush1.msra.mxu0 %v2344
        %2569 = vmatprep.subr.mxu0 0.0
        %2570 = vmatpush1.msra.mxu0 %v2345
        %2571 = vmatprep.subr.mxu0 0.0
        %2572 = vmatpush1.msra.mxu0 0.0
        %2573 = vmatprep.subr.mxu0 0.0
        %2574 = vmatpush1.msra.mxu0 0.0
        %2575 = vmatprep.subr.mxu0 0.0
        %2576 = vmatpush1.msra.mxu0 0.0
        %2577 = vmatprep.subr.mxu0 0.0
        %2578 = vmatpush1.msra.mxu0 0.0
        %2579 = vmatprep.subr.mxu0 0.0
        %2580 = vmatpush1.msra.mxu0 0.0
        %2581 = vmatprep.subr.mxu0 0.0
        %2582 = vmatpush1.msra.mxu0 0.0
        %2583 = vmatprep.subr.mxu0 0.0
        %2584 = vmatpush1.msra.mxu0 0.0
        %2585 = vmatprep.subr.mxu0 0.0
        %2586 = vmatpush1.msra.mxu0 0.0
        %2587 = vmatprep.subr.mxu0 0.0
        %2588 = vmatpush1.msra.mxu0 0.0
        %2589 = vmatprep.subr.mxu0 0.0
        %2590 = vmatpush1.msra.mxu0 0.0
        %2591 = vmatprep.subr.mxu0 0.0
        %2592 = vmatpush1.msra.mxu0 0.0
        %2593 = vmatprep.subr.mxu0 0.0
        %2594 = vmatpush1.msra.mxu0 0.0
        %2595 = vmatprep.subr.mxu0 0.0
        %2596 = vmatpush1.msra.mxu0 0.0
        %2597 = vmatprep.subr.mxu0 0.0
        %2598 = vmatpush1.msra.mxu0 0.0
        %2599 = vmatprep.subr.mxu0 0.0
        %2600 = vmatpush1.msra.mxu0 0.0
        %2601 = vmatprep.subr.mxu0 0.0
        %2602 = vmatpush1.msra.mxu0 0.0
        %2603 = vmatprep.subr.mxu0 0.0
        %2604 = vmatpush1.msra.mxu0 0.0
        %2605 = vmatprep.subr.mxu0 0.0
        %2606 = vmatpush1.msra.mxu0 0.0
        %2607 = vmatprep.mubr.f32.mxu0 0.0
        %2608 = vmatmul.mubr.f32.gmra.mrb[0].mxu0 %v2514
        %v2609 = vpop.f32.mrb[0].mxu0
        %v2610 = vadd.f32 0.0, %v2609
        %v2611 = vpop.f32.mrb[0].mxu0
        %2612 = vmatprep.mubr.f32.mxu0 0.0
        %2613 = vmatmul.mubr.f32.gmra.mrb[0].mxu0 %v2517
        %v2614 = vpop.f32.mrb[0].mxu0
        %v2615 = vadd.f32 0.0, %v2614
        %v2616 = vpop.f32.mrb[0].mxu0
        %2617 = vmatprep.mubr.f32.mxu0 0.0
        %2618 = vmatmul.mubr.f32.gmra.mrb[0].mxu0 %v2520
        %v2619 = vpop.f32.mrb[0].mxu0
        %v2620 = vadd.f32 0.0, %v2619
        %v2621 = vpop.f32.mrb[0].mxu0
        %2622 = vmatprep.mubr.f32.mxu0 0.0
        %2623 = vmatmul.mubr.f32.gmra.mrb[0].mxu0 %v2523
        %v2624 = vpop.f32.mrb[0].mxu0
        %v2625 = vadd.f32 0.0, %v2624
        %v2626 = vpop.f32.mrb[0].mxu0
        %2627 = vmatprep.mubr.f32.mxu0 0.0
        %2628 = vmatmul.mubr.f32.gmra.mrb[0].mxu0 %v2526
        %v2629 = vpop.f32.mrb[0].mxu0
        %v2630 = vadd.f32 0.0, %v2629
        %v2631 = vpop.f32.mrb[0].mxu0
        %2632 = vmatprep.mubr.f32.mxu0 0.0
        %2633 = vmatmul.mubr.f32.gmra.mrb[0].mxu0 %v2529
        %v2634 = vpop.f32.mrb[0].mxu0
        %v2635 = vadd.f32 0.0, %v2634
        %v2636 = vpop.f32.mrb[0].mxu0
        %2637 = vmatprep.mubr.f32.mxu0 0.0
        %2638 = vmatmul.mubr.f32.gmra.mrb[0].mxu0 %v2532
        %v2639 = vpop.f32.mrb[0].mxu0
        %v2640 = vadd.f32 0.0, %v2639
        %v2641 = vpop.f32.mrb[0].mxu0
        %2642 = vmatprep.mubr.f32.mxu0 0.0
        %2643 = vmatmul.mubr.f32.gmra.mrb[0].mxu0 %v2535
        %v2644 = vpop.f32.mrb[0].mxu0
        %v2645 = vadd.f32 0.0, %v2644
        %v2646 = vpop.f32.mrb[0].mxu0
        %2647 = vmatprep.mubr.f32.mxu0 0.0
        %2648 = vmatmul.mubr.f32.gmra.mrb[0].mxu0 %v2538
        %v2649 = vpop.f32.mrb[0].mxu0
        %v2650 = vadd.f32 0.0, %v2649
        %v2651 = vpop.f32.mrb[0].mxu0
        %2652 = vmatprep.mubr.f32.mxu0 0.0
        %2653 = vmatmul.mubr.f32.gmra.mrb[0].mxu0 %v2541
        %v2654 = vpop.f32.mrb[0].mxu0
        %v2655 = vadd.f32 0.0, %v2654
        %v2656 = vpop.f32.mrb[0].mxu0
        %2657 = vdwg.mxu0
        %s2658 = scalar_lea.vmem %s7, 160
        %v2659 = vld [vmem:[%s2658] sm:$0xff]
        %v2660 = vld [vmem:[%s2658 + $0x8] sm:$0xff]
        %v2661 = vld [vmem:[%s2658 + $0x10] sm:$0xff]
        %v2662 = vld [vmem:[%s2658 + $0x18] sm:$0xff]
        %v2663 = vld [vmem:[%s2658 + $0x20] sm:$0xff]
        %v2664 = vld [vmem:[%s2658 + $0x28] sm:$0xff]
        %v2665 = vld [vmem:[%s2658 + $0x30] sm:$0xff]
        %v2666 = vld [vmem:[%s2658 + $0x38] sm:$0xff]
        %v2667 = vld [vmem:[%s2658 + $0x40] sm:$0xff]
        %v2668 = vld [vmem:[%s2658 + $0x48] sm:$0xff]
        %v2670 = vsel %vm2356, %v2659, 0
        %v2673 = vsel %vm2356, %v2660, 0
        %v2676 = vsel %vm2356, %v2661, 0
        %v2679 = vsel %vm2356, %v2662, 0
        %v2682 = vsel %vm2356, %v2663, 0
        %v2685 = vsel %vm2356, %v2664, 0
        %v2688 = vsel %vm2356, %v2665, 0
        %v2691 = vsel %vm2356, %v2666, 0
        %v2694 = vsel %vm2356, %v2667, 0
        %v2697 = vsel %vm2356, %v2668, 0
        %2699 = vmatprep.subr.mxu0 0.0
        %2700 = vmatpush1.msra.mxu0 %v2332
        %2701 = vmatprep.subr.mxu0 0.0
        %2702 = vmatpush1.msra.mxu0 %v2333
        %2703 = vmatprep.subr.mxu0 0.0
        %2704 = vmatpush1.msra.mxu0 %v2334
        %2705 = vmatprep.subr.mxu0 0.0
        %2706 = vmatpush1.msra.mxu0 %v2335
        %2707 = vmatprep.subr.mxu0 0.0
        %2708 = vmatpush1.msra.mxu0 %v2336
        %2709 = vmatprep.subr.mxu0 0.0
        %2710 = vmatpush1.msra.mxu0 %v2337
        %2711 = vmatprep.subr.mxu0 0.0
        %2712 = vmatpush1.msra.mxu0 %v2338
        %2713 = vmatprep.subr.mxu0 0.0
        %2714 = vmatpush1.msra.mxu0 %v2339
        %2715 = vmatprep.subr.mxu0 0.0
        %2716 = vmatpush1.msra.mxu0 %v2340
        %2717 = vmatprep.subr.mxu0 0.0
        %2718 = vmatpush1.msra.mxu0 %v2341
        %2719 = vmatprep.subr.mxu0 0.0
        %2720 = vmatpush1.msra.mxu0 %v2342
        %2721 = vmatprep.subr.mxu0 0.0
        %2722 = vmatpush1.msra.mxu0 %v2343
        %2723 = vmatprep.subr.mxu0 0.0
        %2724 = vmatpush1.msra.mxu0 %v2344
        %2725 = vmatprep.subr.mxu0 0.0
        %2726 = vmatpush1.msra.mxu0 %v2345
        %2727 = vmatprep.subr.mxu0 0.0
        %2728 = vmatpush1.msra.mxu0 0.0
        %2729 = vmatprep.subr.mxu0 0.0
        %2730 = vmatpush1.msra.mxu0 0.0
        %2731 = vmatprep.subr.mxu0 0.0
        %2732 = vmatpush1.msra.mxu0 0.0
        %2733 = vmatprep.subr.mxu0 0.0
        %2734 = vmatpush1.msra.mxu0 0.0
        %2735 = vmatprep.subr.mxu0 0.0
        %2736 = vmatpush1.msra.mxu0 0.0
        %2737 = vmatprep.subr.mxu0 0.0
        %2738 = vmatpush1.msra.mxu0 0.0
        %2739 = vmatprep.subr.mxu0 0.0
        %2740 = vmatpush1.msra.mxu0 0.0
        %2741 = vmatprep.subr.mxu0 0.0
        %2742 = vmatpush1.msra.mxu0 0.0
        %2743 = vmatprep.subr.mxu0 0.0
        %2744 = vmatpush1.msra.mxu0 0.0
        %2745 = vmatprep.subr.mxu0 0.0
        %2746 = vmatpush1.msra.mxu0 0.0
        %2747 = vmatprep.subr.mxu0 0.0
        %2748 = vmatpush1.msra.mxu0 0.0
        %2749 = vmatprep.subr.mxu0 0.0
        %2750 = vmatpush1.msra.mxu0 0.0
        %2751 = vmatprep.subr.mxu0 0.0
        %2752 = vmatpush1.msra.mxu0 0.0
        %2753 = vmatprep.subr.mxu0 0.0
        %2754 = vmatpush1.msra.mxu0 0.0
        %2755 = vmatprep.subr.mxu0 0.0
        %2756 = vmatpush1.msra.mxu0 0.0
        %2757 = vmatprep.subr.mxu0 0.0
        %2758 = vmatpush1.msra.mxu0 0.0
        %2759 = vmatprep.subr.mxu0 0.0
        %2760 = vmatpush1.msra.mxu0 0.0
        %2761 = vmatprep.subr.mxu0 0.0
        %2762 = vmatpush1.msra.mxu0 0.0
        %2763 = vmatprep.mubr.f32.mxu0 0.0
        %2764 = vmatmul.mubr.f32.gmra.mrb[0].mxu0 %v2670
        %v2765 = vpop.f32.mrb[0].mxu0
        %v2766 = vadd.f32 0.0, %v2765
        %v2767 = vpop.f32.mrb[0].mxu0
        %2768 = vmatprep.mubr.f32.mxu0 0.0
        %2769 = vmatmul.mubr.f32.gmra.mrb[0].mxu0 %v2673
        %v2770 = vpop.f32.mrb[0].mxu0
        %v2771 = vadd.f32 0.0, %v2770
        %v2772 = vpop.f32.mrb[0].mxu0
        %2773 = vmatprep.mubr.f32.mxu0 0.0
        %2774 = vmatmul.mubr.f32.gmra.mrb[0].mxu0 %v2676
        %v2775 = vpop.f32.mrb[0].mxu0
        %v2776 = vadd.f32 0.0, %v2775
        %v2777 = vpop.f32.mrb[0].mxu0
        %2778 = vmatprep.mubr.f32.mxu0 0.0
        %2779 = vmatmul.mubr.f32.gmra.mrb[0].mxu0 %v2679
        %v2780 = vpop.f32.mrb[0].mxu0
        %v2781 = vadd.f32 0.0, %v2780
        %v2782 = vpop.f32.mrb[0].mxu0
        %2783 = vmatprep.mubr.f32.mxu0 0.0
        %2784 = vmatmul.mubr.f32.gmra.mrb[0].mxu0 %v2682
        %v2785 = vpop.f32.mrb[0].mxu0
        %v2786 = vadd.f32 0.0, %v2785
        %v2787 = vpop.f32.mrb[0].mxu0
        %2788 = vmatprep.mubr.f32.mxu0 0.0
        %2789 = vmatmul.mubr.f32.gmra.mrb[0].mxu0 %v2685
        %v2790 = vpop.f32.mrb[0].mxu0
        %v2791 = vadd.f32 0.0, %v2790
        %v2792 = vpop.f32.mrb[0].mxu0
        %2793 = vmatprep.mubr.f32.mxu0 0.0
        %2794 = vmatmul.mubr.f32.gmra.mrb[0].mxu0 %v2688
        %v2795 = vpop.f32.mrb[0].mxu0
        %v2796 = vadd.f32 0.0, %v2795
        %v2797 = vpop.f32.mrb[0].mxu0
        %2798 = vmatprep.mubr.f32.mxu0 0.0
        %2799 = vmatmul.mubr.f32.gmra.mrb[0].mxu0 %v2691
        %v2800 = vpop.f32.mrb[0].mxu0
        %v2801 = vadd.f32 0.0, %v2800
        %v2802 = vpop.f32.mrb[0].mxu0
        %2803 = vmatprep.mubr.f32.mxu0 0.0
        %2804 = vmatmul.mubr.f32.gmra.mrb[0].mxu0 %v2694
        %v2805 = vpop.f32.mrb[0].mxu0
        %v2806 = vadd.f32 0.0, %v2805
        %v2807 = vpop.f32.mrb[0].mxu0
        %2808 = vmatprep.mubr.f32.mxu0 0.0
        %2809 = vmatmul.mubr.f32.gmra.mrb[0].mxu0 %v2697
        %v2810 = vpop.f32.mrb[0].mxu0
        %v2811 = vadd.f32 0.0, %v2810
        %v2812 = vpop.f32.mrb[0].mxu0
        %2813 = vdwg.mxu0
        %s2814 = scalar_lea.vmem %s7, 240
        %v2815 = vld [vmem:[%s2814] sm:$0xff]
        %v2816 = vld [vmem:[%s2814 + $0x8] sm:$0xff]
        %v2817 = vld [vmem:[%s2814 + $0x10] sm:$0xff]
        %v2818 = vld [vmem:[%s2814 + $0x18] sm:$0xff]
        %v2819 = vld [vmem:[%s2814 + $0x20] sm:$0xff]
        %v2820 = vld [vmem:[%s2814 + $0x28] sm:$0xff]
        %v2821 = vld [vmem:[%s2814 + $0x30] sm:$0xff]
        %v2822 = vld [vmem:[%s2814 + $0x38] sm:$0xff]
        %v2823 = vld [vmem:[%s2814 + $0x40] sm:$0xff]
        %v2824 = vld [vmem:[%s2814 + $0x48] sm:$0xff]
        %v2826 = vsel %vm2356, %v2815, 0
        %v2829 = vsel %vm2356, %v2816, 0
        %v2832 = vsel %vm2356, %v2817, 0
        %v2835 = vsel %vm2356, %v2818, 0
        %v2838 = vsel %vm2356, %v2819, 0
        %v2841 = vsel %vm2356, %v2820, 0
        %v2844 = vsel %vm2356, %v2821, 0
        %v2847 = vsel %vm2356, %v2822, 0
        %v2850 = vsel %vm2356, %v2823, 0
        %v2853 = vsel %vm2356, %v2824, 0
        %2855 = vmatprep.subr.mxu0 0.0
        %2856 = vmatpush1.msra.mxu0 %v2332
        %2857 = vmatprep.subr.mxu0 0.0
        %2858 = vmatpush1.msra.mxu0 %v2333
        %2859 = vmatprep.subr.mxu0 0.0
        %2860 = vmatpush1.msra.mxu0 %v2334
        %2861 = vmatprep.subr.mxu0 0.0
        %2862 = vmatpush1.msra.mxu0 %v2335
        %2863 = vmatprep.subr.mxu0 0.0
        %2864 = vmatpush1.msra.mxu0 %v2336
        %2865 = vmatprep.subr.mxu0 0.0
        %2866 = vmatpush1.msra.mxu0 %v2337
        %2867 = vmatprep.subr.mxu0 0.0
        %2868 = vmatpush1.msra.mxu0 %v2338
        %2869 = vmatprep.subr.mxu0 0.0
        %2870 = vmatpush1.msra.mxu0 %v2339
        %2871 = vmatprep.subr.mxu0 0.0
        %2872 = vmatpush1.msra.mxu0 %v2340
        %2873 = vmatprep.subr.mxu0 0.0
        %2874 = vmatpush1.msra.mxu0 %v2341
        %2875 = vmatprep.subr.mxu0 0.0
        %2876 = vmatpush1.msra.mxu0 %v2342
        %2877 = vmatprep.subr.mxu0 0.0
        %2878 = vmatpush1.msra.mxu0 %v2343
        %2879 = vmatprep.subr.mxu0 0.0
        %2880 = vmatpush1.msra.mxu0 %v2344
        %2881 = vmatprep.subr.mxu0 0.0
        %2882 = vmatpush1.msra.mxu0 %v2345
        %2883 = vmatprep.subr.mxu0 0.0
        %2884 = vmatpush1.msra.mxu0 0.0
        %2885 = vmatprep.subr.mxu0 0.0
        %2886 = vmatpush1.msra.mxu0 0.0
        %2887 = vmatprep.subr.mxu0 0.0
        %2888 = vmatpush1.msra.mxu0 0.0
        %2889 = vmatprep.subr.mxu0 0.0
        %2890 = vmatpush1.msra.mxu0 0.0
        %2891 = vmatprep.subr.mxu0 0.0
        %2892 = vmatpush1.msra.mxu0 0.0
        %2893 = vmatprep.subr.mxu0 0.0
        %2894 = vmatpush1.msra.mxu0 0.0
        %2895 = vmatprep.subr.mxu0 0.0
        %2896 = vmatpush1.msra.mxu0 0.0
        %2897 = vmatprep.subr.mxu0 0.0
        %2898 = vmatpush1.msra.mxu0 0.0
        %2899 = vmatprep.subr.mxu0 0.0
        %2900 = vmatpush1.msra.mxu0 0.0
        %2901 = vmatprep.subr.mxu0 0.0
        %2902 = vmatpush1.msra.mxu0 0.0
        %2903 = vmatprep.subr.mxu0 0.0
        %2904 = vmatpush1.msra.mxu0 0.0
        %2905 = vmatprep.subr.mxu0 0.0
        %2906 = vmatpush1.msra.mxu0 0.0
        %2907 = vmatprep.subr.mxu0 0.0
        %2908 = vmatpush1.msra.mxu0 0.0
        %2909 = vmatprep.subr.mxu0 0.0
        %2910 = vmatpush1.msra.mxu0 0.0
        %2911 = vmatprep.subr.mxu0 0.0
        %2912 = vmatpush1.msra.mxu0 0.0
        %2913 = vmatprep.subr.mxu0 0.0
        %2914 = vmatpush1.msra.mxu0 0.0
        %2915 = vmatprep.subr.mxu0 0.0
        %2916 = vmatpush1.msra.mxu0 0.0
        %2917 = vmatprep.subr.mxu0 0.0
        %2918 = vmatpush1.msra.mxu0 0.0
        %2919 = vmatprep.mubr.f32.mxu0 0.0
        %2920 = vmatmul.mubr.f32.gmra.mrb[0].mxu0 %v2826
        %v2921 = vpop.f32.mrb[0].mxu0
        %v2922 = vadd.f32 0.0, %v2921
        %v2923 = vpop.f32.mrb[0].mxu0
        %2924 = vmatprep.mubr.f32.mxu0 0.0
        %2925 = vmatmul.mubr.f32.gmra.mrb[0].mxu0 %v2829
        %v2926 = vpop.f32.mrb[0].mxu0
        %v2927 = vadd.f32 0.0, %v2926
        %v2928 = vpop.f32.mrb[0].mxu0
        %2929 = vmatprep.mubr.f32.mxu0 0.0
        %2930 = vmatmul.mubr.f32.gmra.mrb[0].mxu0 %v2832
        %v2931 = vpop.f32.mrb[0].mxu0
        %v2932 = vadd.f32 0.0, %v2931
        %v2933 = vpop.f32.mrb[0].mxu0
        %2934 = vmatprep.mubr.f32.mxu0 0.0
        %2935 = vmatmul.mubr.f32.gmra.mrb[0].mxu0 %v2835
        %v2936 = vpop.f32.mrb[0].mxu0
        %v2937 = vadd.f32 0.0, %v2936
        %v2938 = vpop.f32.mrb[0].mxu0
        %2939 = vmatprep.mubr.f32.mxu0 0.0
        %2940 = vmatmul.mubr.f32.gmra.mrb[0].mxu0 %v2838
        %v2941 = vpop.f32.mrb[0].mxu0
        %v2942 = vadd.f32 0.0, %v2941
        %v2943 = vpop.f32.mrb[0].mxu0
        %2944 = vmatprep.mubr.f32.mxu0 0.0
        %2945 = vmatmul.mubr.f32.gmra.mrb[0].mxu0 %v2841
        %v2946 = vpop.f32.mrb[0].mxu0
        %v2947 = vadd.f32 0.0, %v2946
        %v2948 = vpop.f32.mrb[0].mxu0
        %2949 = vmatprep.mubr.f32.mxu0 0.0
        %2950 = vmatmul.mubr.f32.gmra.mrb[0].mxu0 %v2844
        %v2951 = vpop.f32.mrb[0].mxu0
        %v2952 = vadd.f32 0.0, %v2951
        %v2953 = vpop.f32.mrb[0].mxu0
        %2954 = vmatprep.mubr.f32.mxu0 0.0
        %2955 = vmatmul.mubr.f32.gmra.mrb[0].mxu0 %v2847
        %v2956 = vpop.f32.mrb[0].mxu0
        %v2957 = vadd.f32 0.0, %v2956
        %v2958 = vpop.f32.mrb[0].mxu0
        %2959 = vmatprep.mubr.f32.mxu0 0.0
        %2960 = vmatmul.mubr.f32.gmra.mrb[0].mxu0 %v2850
        %v2961 = vpop.f32.mrb[0].mxu0
        %v2962 = vadd.f32 0.0, %v2961
        %v2963 = vpop.f32.mrb[0].mxu0
        %2964 = vmatprep.mubr.f32.mxu0 0.0
        %2965 = vmatmul.mubr.f32.gmra.mrb[0].mxu0 %v2853
        %v2966 = vpop.f32.mrb[0].mxu0
        %v2967 = vadd.f32 0.0, %v2966
        %v2968 = vpop.f32.mrb[0].mxu0
        %2969 = vdwg.mxu0
        %s2970 = scalar_lea.vmem %s7, 320
        %v2971 = vld [vmem:[%s2970] sm:$0xff]
        %v2972 = vld [vmem:[%s2970 + $0x8] sm:$0xff]
        %v2973 = vld [vmem:[%s2970 + $0x10] sm:$0xff]
        %v2974 = vld [vmem:[%s2970 + $0x18] sm:$0xff]
        %v2975 = vld [vmem:[%s2970 + $0x20] sm:$0xff]
        %v2976 = vld [vmem:[%s2970 + $0x28] sm:$0xff]
        %v2977 = vld [vmem:[%s2970 + $0x30] sm:$0xff]
        %v2978 = vld [vmem:[%s2970 + $0x38] sm:$0xff]
        %v2979 = vld [vmem:[%s2970 + $0x40] sm:$0xff]
        %v2980 = vld [vmem:[%s2970 + $0x48] sm:$0xff]
        %v2982 = vsel %vm2356, %v2971, 0
        %v2985 = vsel %vm2356, %v2972, 0
        %v2988 = vsel %vm2356, %v2973, 0
        %v2991 = vsel %vm2356, %v2974, 0
        %v2994 = vsel %vm2356, %v2975, 0
        %v2997 = vsel %vm2356, %v2976, 0
        %v3000 = vsel %vm2356, %v2977, 0
        %v3003 = vsel %vm2356, %v2978, 0
        %v3006 = vsel %vm2356, %v2979, 0
        %v3009 = vsel %vm2356, %v2980, 0
        %3011 = vmatprep.subr.mxu0 0.0
        %3012 = vmatpush1.msra.mxu0 %v2332
        %3013 = vmatprep.subr.mxu0 0.0
        %3014 = vmatpush1.msra.mxu0 %v2333
        %3015 = vmatprep.subr.mxu0 0.0
        %3016 = vmatpush1.msra.mxu0 %v2334
        %3017 = vmatprep.subr.mxu0 0.0
        %3018 = vmatpush1.msra.mxu0 %v2335
        %3019 = vmatprep.subr.mxu0 0.0
        %3020 = vmatpush1.msra.mxu0 %v2336
        %3021 = vmatprep.subr.mxu0 0.0
        %3022 = vmatpush1.msra.mxu0 %v2337
        %3023 = vmatprep.subr.mxu0 0.0
        %3024 = vmatpush1.msra.mxu0 %v2338
        %3025 = vmatprep.subr.mxu0 0.0
        %3026 = vmatpush1.msra.mxu0 %v2339
        %3027 = vmatprep.subr.mxu0 0.0
        %3028 = vmatpush1.msra.mxu0 %v2340
        %3029 = vmatprep.subr.mxu0 0.0
        %3030 = vmatpush1.msra.mxu0 %v2341
        %3031 = vmatprep.subr.mxu0 0.0
        %3032 = vmatpush1.msra.mxu0 %v2342
        %3033 = vmatprep.subr.mxu0 0.0
        %3034 = vmatpush1.msra.mxu0 %v2343
        %3035 = vmatprep.subr.mxu0 0.0
        %3036 = vmatpush1.msra.mxu0 %v2344
        %3037 = vmatprep.subr.mxu0 0.0
        %3038 = vmatpush1.msra.mxu0 %v2345
        %3039 = vmatprep.subr.mxu0 0.0
        %3040 = vmatpush1.msra.mxu0 0.0
        %3041 = vmatprep.subr.mxu0 0.0
        %3042 = vmatpush1.msra.mxu0 0.0
        %3043 = vmatprep.subr.mxu0 0.0
        %3044 = vmatpush1.msra.mxu0 0.0
        %3045 = vmatprep.subr.mxu0 0.0
        %3046 = vmatpush1.msra.mxu0 0.0
        %3047 = vmatprep.subr.mxu0 0.0
        %3048 = vmatpush1.msra.mxu0 0.0
        %3049 = vmatprep.subr.mxu0 0.0
        %3050 = vmatpush1.msra.mxu0 0.0
        %3051 = vmatprep.subr.mxu0 0.0
        %3052 = vmatpush1.msra.mxu0 0.0
        %3053 = vmatprep.subr.mxu0 0.0
        %3054 = vmatpush1.msra.mxu0 0.0
        %3055 = vmatprep.subr.mxu0 0.0
        %3056 = vmatpush1.msra.mxu0 0.0
        %3057 = vmatprep.subr.mxu0 0.0
        %3058 = vmatpush1.msra.mxu0 0.0
        %3059 = vmatprep.subr.mxu0 0.0
        %3060 = vmatpush1.msra.mxu0 0.0
        %3061 = vmatprep.subr.mxu0 0.0
        %3062 = vmatpush1.msra.mxu0 0.0
        %3063 = vmatprep.subr.mxu0 0.0
        %3064 = vmatpush1.msra.mxu0 0.0
        %3065 = vmatprep.subr.mxu0 0.0
        %3066 = vmatpush1.msra.mxu0 0.0
        %3067 = vmatprep.subr.mxu0 0.0
        %3068 = vmatpush1.msra.mxu0 0.0
        %3069 = vmatprep.subr.mxu0 0.0
        %3070 = vmatpush1.msra.mxu0 0.0
        %3071 = vmatprep.subr.mxu0 0.0
        %3072 = vmatpush1.msra.mxu0 0.0
        %3073 = vmatprep.subr.mxu0 0.0
        %3074 = vmatpush1.msra.mxu0 0.0
        %3075 = vmatprep.mubr.f32.mxu0 0.0
        %3076 = vmatmul.mubr.f32.gmra.mrb[0].mxu0 %v2982
        %v3077 = vpop.f32.mrb[0].mxu0
        %v3078 = vadd.f32 0.0, %v3077
        %v3079 = vpop.f32.mrb[0].mxu0
        %3080 = vmatprep.mubr.f32.mxu0 0.0
        %3081 = vmatmul.mubr.f32.gmra.mrb[0].mxu0 %v2985
        %v3082 = vpop.f32.mrb[0].mxu0
        %v3083 = vadd.f32 0.0, %v3082
        %v3084 = vpop.f32.mrb[0].mxu0
        %3085 = vmatprep.mubr.f32.mxu0 0.0
        %3086 = vmatmul.mubr.f32.gmra.mrb[0].mxu0 %v2988
        %v3087 = vpop.f32.mrb[0].mxu0
        %v3088 = vadd.f32 0.0, %v3087
        %v3089 = vpop.f32.mrb[0].mxu0
        %3090 = vmatprep.mubr.f32.mxu0 0.0
        %3091 = vmatmul.mubr.f32.gmra.mrb[0].mxu0 %v2991
        %v3092 = vpop.f32.mrb[0].mxu0
        %v3093 = vadd.f32 0.0, %v3092
        %v3094 = vpop.f32.mrb[0].mxu0
        %3095 = vmatprep.mubr.f32.mxu0 0.0
        %3096 = vmatmul.mubr.f32.gmra.mrb[0].mxu0 %v2994
        %v3097 = vpop.f32.mrb[0].mxu0
        %v3098 = vadd.f32 0.0, %v3097
        %v3099 = vpop.f32.mrb[0].mxu0
        %3100 = vmatprep.mubr.f32.mxu0 0.0
        %3101 = vmatmul.mubr.f32.gmra.mrb[0].mxu0 %v2997
        %v3102 = vpop.f32.mrb[0].mxu0
        %v3103 = vadd.f32 0.0, %v3102
        %v3104 = vpop.f32.mrb[0].mxu0
        %3105 = vmatprep.mubr.f32.mxu0 0.0
        %3106 = vmatmul.mubr.f32.gmra.mrb[0].mxu0 %v3000
        %v3107 = vpop.f32.mrb[0].mxu0
        %v3108 = vadd.f32 0.0, %v3107
        %v3109 = vpop.f32.mrb[0].mxu0
        %3110 = vmatprep.mubr.f32.mxu0 0.0
        %3111 = vmatmul.mubr.f32.gmra.mrb[0].mxu0 %v3003
        %v3112 = vpop.f32.mrb[0].mxu0
        %v3113 = vadd.f32 0.0, %v3112
        %v3114 = vpop.f32.mrb[0].mxu0
        %3115 = vmatprep.mubr.f32.mxu0 0.0
        %3116 = vmatmul.mubr.f32.gmra.mrb[0].mxu0 %v3006
        %v3117 = vpop.f32.mrb[0].mxu0
        %v3118 = vadd.f32 0.0, %v3117
        %v3119 = vpop.f32.mrb[0].mxu0
        %3120 = vmatprep.mubr.f32.mxu0 0.0
        %3121 = vmatmul.mubr.f32.gmra.mrb[0].mxu0 %v3009
        %v3122 = vpop.f32.mrb[0].mxu0
        %v3123 = vadd.f32 0.0, %v3122
        %v3124 = vpop.f32.mrb[0].mxu0
        %3125 = vdwg.mxu0
        %3136 = vrot.lane.b32.xlu0 %v2610, 84
        %v3137 = vpop.permute.xlu0 %3136
        %3138 = vrot.lane.b32.xlu0 %v2615, 84
        %v3139 = vpop.permute.xlu0 %3138
        %3140 = vrot.lane.b32.xlu0 %v2620, 84
        %v3141 = vpop.permute.xlu0 %3140
        %3142 = vrot.lane.b32.xlu0 %v2625, 84
        %v3143 = vpop.permute.xlu0 %3142
        %3144 = vrot.lane.b32.xlu0 %v2630, 84
        %v3145 = vpop.permute.xlu0 %3144
        %3146 = vrot.lane.b32.xlu0 %v2635, 84
        %v3147 = vpop.permute.xlu0 %3146
        %3148 = vrot.lane.b32.xlu0 %v2640, 84
        %v3149 = vpop.permute.xlu0 %3148
        %3150 = vrot.lane.b32.xlu0 %v2645, 84
        %v3151 = vpop.permute.xlu0 %3150
        %3152 = vrot.lane.b32.xlu0 %v2650, 84
        %v3153 = vpop.permute.xlu0 %3152
        %3154 = vrot.lane.b32.xlu0 %v2655, 84
        %v3155 = vpop.permute.xlu0 %3154
        %3176 = vrot.lane.b32.xlu0 %v2766, 40
        %v3177 = vpop.permute.xlu0 %3176
        %3178 = vrot.lane.b32.xlu0 %v2771, 40
        %v3179 = vpop.permute.xlu0 %3178
        %3180 = vrot.lane.b32.xlu0 %v2776, 40
        %v3181 = vpop.permute.xlu0 %3180
        %3182 = vrot.lane.b32.xlu0 %v2781, 40
        %v3183 = vpop.permute.xlu0 %3182
        %3184 = vrot.lane.b32.xlu0 %v2786, 40
        %v3185 = vpop.permute.xlu0 %3184
        %3186 = vrot.lane.b32.xlu0 %v2791, 40
        %v3187 = vpop.permute.xlu0 %3186
        %3188 = vrot.lane.b32.xlu0 %v2796, 40
        %v3189 = vpop.permute.xlu0 %3188
        %3190 = vrot.lane.b32.xlu0 %v2801, 40
        %v3191 = vpop.permute.xlu0 %3190
        %3192 = vrot.lane.b32.xlu0 %v2806, 40
        %v3193 = vpop.permute.xlu0 %3192
        %3194 = vrot.lane.b32.xlu0 %v2811, 40
        %v3195 = vpop.permute.xlu0 %3194
        %3216 = vrot.lane.b32.xlu0 %v2922, 124
        %v3217 = vpop.permute.xlu0 %3216
        %3218 = vrot.lane.b32.xlu0 %v2927, 124
        %v3219 = vpop.permute.xlu0 %3218
        %3220 = vrot.lane.b32.xlu0 %v2932, 124
        %v3221 = vpop.permute.xlu0 %3220
        %3222 = vrot.lane.b32.xlu0 %v2937, 124
        %v3223 = vpop.permute.xlu0 %3222
        %3224 = vrot.lane.b32.xlu0 %v2942, 124
        %v3225 = vpop.permute.xlu0 %3224
        %3226 = vrot.lane.b32.xlu0 %v2947, 124
        %v3227 = vpop.permute.xlu0 %3226
        %3228 = vrot.lane.b32.xlu0 %v2952, 124
        %v3229 = vpop.permute.xlu0 %3228
        %3230 = vrot.lane.b32.xlu0 %v2957, 124
        %v3231 = vpop.permute.xlu0 %3230
        %3232 = vrot.lane.b32.xlu0 %v2962, 124
        %v3233 = vpop.permute.xlu0 %3232
        %3234 = vrot.lane.b32.xlu0 %v2967, 124
        %v3235 = vpop.permute.xlu0 %3234
        %3256 = vrot.lane.b32.xlu0 %v3078, 80
        %v3257 = vpop.permute.xlu0 %3256
        %3258 = vrot.lane.b32.xlu0 %v3083, 80
        %v3259 = vpop.permute.xlu0 %3258
        %3260 = vrot.lane.b32.xlu0 %v3088, 80
        %v3261 = vpop.permute.xlu0 %3260
        %3262 = vrot.lane.b32.xlu0 %v3093, 80
        %v3263 = vpop.permute.xlu0 %3262
        %3264 = vrot.lane.b32.xlu0 %v3098, 80
        %v3265 = vpop.permute.xlu0 %3264
        %3266 = vrot.lane.b32.xlu0 %v3103, 80
        %v3267 = vpop.permute.xlu0 %3266
        %3268 = vrot.lane.b32.xlu0 %v3108, 80
        %v3269 = vpop.permute.xlu0 %3268
        %3270 = vrot.lane.b32.xlu0 %v3113, 80
        %v3271 = vpop.permute.xlu0 %3270
        %3272 = vrot.lane.b32.xlu0 %v3118, 80
        %v3273 = vpop.permute.xlu0 %3272
        %3274 = vrot.lane.b32.xlu0 %v3123, 80
        %v3275 = vpop.permute.xlu0 %3274
        %vm3286 = vcmask 687104
        %v3287 = vsel %vm3286, %v2454, %v3137
        %v3288 = vsel %vm3286, %v2459, %v3139
        %v3289 = vsel %vm3286, %v2464, %v3141
        %v3290 = vsel %vm3286, %v2469, %v3143
        %v3291 = vsel %vm3286, %v2474, %v3145
        %v3292 = vsel %vm3286, %v2479, %v3147
        %v3293 = vsel %vm3286, %v2484, %v3149
        %v3294 = vsel %vm3286, %v2489, %v3151
        %v3295 = vsel %vm3286, %v2494, %v3153
        %v3296 = vsel %vm3286, %v2499, %v3155
        %v3297 = vsel %vm1998, %v3137, %v3177
        %v3298 = vsel %vm1998, %v3139, %v3179
        %v3299 = vsel %vm1998, %v3141, %v3181
        %v3300 = vsel %vm1998, %v3143, %v3183
        %v3301 = vsel %vm1998, %v3145, %v3185
        %v3302 = vsel %vm1998, %v3147, %v3187
        %v3303 = vsel %vm1998, %v3149, %v3189
        %v3304 = vsel %vm1998, %v3151, %v3191
        %v3305 = vsel %vm1998, %v3153, %v3193
        %v3306 = vsel %vm1998, %v3155, %v3195
        %vm3307 = vcmask 1014784
        %v3308 = vsel %vm3307, %v3297, %v3217
        %v3309 = vsel %vm3307, %v3298, %v3219
        %v3310 = vsel %vm3307, %v3299, %v3221
        %v3311 = vsel %vm3307, %v3300, %v3223
        %v3312 = vsel %vm3307, %v3301, %v3225
        %v3313 = vsel %vm3307, %v3302, %v3227
        %v3314 = vsel %vm3307, %v3303, %v3229
        %v3315 = vsel %vm3307, %v3304, %v3231
        %v3316 = vsel %vm3307, %v3305, %v3233
        %v3317 = vsel %vm3307, %v3306, %v3235
        %vm3318 = vcmask 654336
        %v3319 = vsel %vm3318, %v3217, %v3257
        %v3320 = vsel %vm3318, %v3219, %v3259
        %v3321 = vsel %vm3318, %v3221, %v3261
        %v3322 = vsel %vm3318, %v3223, %v3263
        %v3323 = vsel %vm3318, %v3225, %v3265
        %v3324 = vsel %vm3318, %v3227, %v3267
        %v3325 = vsel %vm3318, %v3229, %v3269
        %v3326 = vsel %vm3318, %v3231, %v3271
        %v3327 = vsel %vm3318, %v3233, %v3273
        %v3328 = vsel %vm3318, %v3235, %v3275
        %v3329 = vld [vmem:[%s8] sm:$0xff]
        %v3330 = vld [vmem:[%s8 + $0x8] sm:$0xff]
        %v3331 = vld [vmem:[%s8 + $0x10] sm:$0xff]
        %v3332 = vld [vmem:[%s8 + $0x18] sm:$0xff]
        %v3333 = vld [vmem:[%s8 + $0x20] sm:$0xff]
        %v3334 = vld [vmem:[%s8 + $0x28] sm:$0xff]
        %v3335 = vld [vmem:[%s8 + $0x30] sm:$0xff]
        %v3336 = vld [vmem:[%s8 + $0x38] sm:$0xff]
        %v3337 = vld [vmem:[%s8 + $0x40] sm:$0xff]
        %v3338 = vld [vmem:[%s8 + $0x48] sm:$0xff]
        %v3339 = vld [vmem:[%s8 + $0x50] sm:$0xff]
        %v3340 = vld [vmem:[%s8 + $0x58] sm:$0xff]
        %v3341 = vld [vmem:[%s8 + $0x60] sm:$0xff]
        %v3342 = vld [vmem:[%s8 + $0x68] sm:$0xff]
        %v3343 = vld [vmem:[%s8 + $0x70] sm:$0xff]
        %v3344 = vld [vmem:[%s8 + $0x78] sm:$0xff]
        %v3345 = vld [vmem:[%s8 + $0x80] sm:$0xff]
        %v3346 = vld [vmem:[%s8 + $0x88] sm:$0xff]
        %v3347 = vld [vmem:[%s8 + $0x90] sm:$0xff]
        %v3348 = vld [vmem:[%s8 + $0x98] sm:$0xff]
        %v3349 = vld [vmem:[%s8 + $0xa0] sm:$0xff]
        %v3350 = vld [vmem:[%s8 + $0xa8] sm:$0xff]
        %v3351 = vld [vmem:[%s8 + $0xb0] sm:$0xff]
        %v3352 = vld [vmem:[%s8 + $0xb8] sm:$0xff]
        %v3353 = vld [vmem:[%s8 + $0xc0] sm:$0xff]
        %v3354 = vld [vmem:[%s8 + $0xc8] sm:$0xff]
        %v3355 = vld [vmem:[%s8 + $0xd0] sm:$0xff]
        %v3356 = vld [vmem:[%s8 + $0xd8] sm:$0xff]
        %v3357 = vld [vmem:[%s8 + $0xe0] sm:$0xff]
        %v3358 = vld [vmem:[%s8 + $0xe8] sm:$0xff]
        %v3359 = vld [vmem:[%s8 + $0xf0] sm:$0xff]
        %v3360 = vld [vmem:[%s8 + $0xf8] sm:$0xff]
        %v3361 = vld [vmem:[%s8 + $0x100] sm:$0xff]
        %v3362 = vld [vmem:[%s8 + $0x108] sm:$0xff]
        %v3363 = vld [vmem:[%s8 + $0x110] sm:$0xff]
        %v3364 = vld [vmem:[%s8 + $0x118] sm:$0xff]
        %v3365 = vld [vmem:[%s8 + $0x120] sm:$0xff]
        %v3366 = vld [vmem:[%s8 + $0x128] sm:$0xff]
        %v3367 = vld [vmem:[%s8 + $0x130] sm:$0xff]
        %v3368 = vld [vmem:[%s8 + $0x138] sm:$0xff]
        %v3369 = vld [vmem:[%s8 + $0x140] sm:$0xff]
        %v3370 = vld [vmem:[%s8 + $0x148] sm:$0xff]
        %v3371 = vld [vmem:[%s8 + $0x150] sm:$0xff]
        %v3372 = vld [vmem:[%s8 + $0x158] sm:$0xff]
        %v3373 = vld [vmem:[%s8 + $0x160] sm:$0xff]
        %v3374 = vld [vmem:[%s8 + $0x168] sm:$0xff]
        %v3375 = vld [vmem:[%s8 + $0x170] sm:$0xff]
        %v3376 = vld [vmem:[%s8 + $0x178] sm:$0xff]
        %v3377 = vld [vmem:[%s8 + $0x180] sm:$0xff]
        %v3378 = vld [vmem:[%s8 + $0x188] sm:$0xff]
        %v3379 = vld [vmem:[%s8 + $0x190] sm:$0xff]
        %v3380 = vld [vmem:[%s8 + $0x198] sm:$0xff]
        %v3381 = vld [vmem:[%s8 + $0x1a0] sm:$0xff]
        %v3382 = vld [vmem:[%s8 + $0x1a8] sm:$0xff]
        %v3383 = vld [vmem:[%s8 + $0x1b0] sm:$0xff]
        %v3384 = vld [vmem:[%s8 + $0x1b8] sm:$0xff]
        %v3385 = vld [vmem:[%s8 + $0x1c0] sm:$0xff]
        %v3386 = vld [vmem:[%s8 + $0x1c8] sm:$0xff]
        %v3387 = vld [vmem:[%s8 + $0x1d0] sm:$0xff]
        %v3388 = vld [vmem:[%s8 + $0x1d8] sm:$0xff]
        %v3389 = vld [vmem:[%s8 + $0x1e0] sm:$0xff]
        %v3390 = vld [vmem:[%s8 + $0x1e8] sm:$0xff]
        %v3391 = vld [vmem:[%s8 + $0x1f0] sm:$0xff]
        %v3392 = vld [vmem:[%s8 + $0x1f8] sm:$0xff]
        %v3393 = vld [vmem:[%s8 + $0x200] sm:$0xff]
        %v3394 = vld [vmem:[%s8 + $0x208] sm:$0xff]
        %v3395 = vld [vmem:[%s8 + $0x210] sm:$0xff]
        %v3396 = vld [vmem:[%s8 + $0x218] sm:$0xff]
        %v3397 = vld [vmem:[%s8 + $0x220] sm:$0xff]
        %v3398 = vld [vmem:[%s8 + $0x228] sm:$0xff]
        %v3399 = vld [vmem:[%s8 + $0x230] sm:$0xff]
        %v3400 = vld [vmem:[%s8 + $0x238] sm:$0xff]
        %v3401 = vld [vmem:[%s8 + $0x240] sm:$0xff]
        %v3402 = vld [vmem:[%s8 + $0x248] sm:$0xff]
        %v3403 = vld [vmem:[%s8 + $0x250] sm:$0xff]
        %v3404 = vld [vmem:[%s8 + $0x258] sm:$0xff]
        %v3405 = vld [vmem:[%s8 + $0x260] sm:$0xff]
        %v3406 = vld [vmem:[%s8 + $0x268] sm:$0xff]
        %v3407 = vld [vmem:[%s8 + $0x270] sm:$0xff]
        %v3408 = vld [vmem:[%s8 + $0x278] sm:$0xff]
        %v3409 = vld [vmem:[%s8 + $0x280] sm:$0xff]
        %v3410 = vld [vmem:[%s8 + $0x288] sm:$0xff]
        %v3411 = vld [vmem:[%s8 + $0x290] sm:$0xff]
        %v3412 = vld [vmem:[%s8 + $0x298] sm:$0xff]
        %v3413 = vld [vmem:[%s8 + $0x2a0] sm:$0xff]
        %v3414 = vld [vmem:[%s8 + $0x2a8] sm:$0xff]
        %v3415 = vld [vmem:[%s8 + $0x2b0] sm:$0xff]
        %v3416 = vld [vmem:[%s8 + $0x2b8] sm:$0xff]
        %v3417 = vld [vmem:[%s8 + $0x2c0] sm:$0xff]
        %v3418 = vld [vmem:[%s8 + $0x2c8] sm:$0xff]
        %v3419 = vld [vmem:[%s8 + $0x2d0] sm:$0xff]
        %v3420 = vld [vmem:[%s8 + $0x2d8] sm:$0xff]
        %v3421 = vld [vmem:[%s8 + $0x2e0] sm:$0xff]
        %v3422 = vld [vmem:[%s8 + $0x2e8] sm:$0xff]
        %v3423 = vld [vmem:[%s8 + $0x2f0] sm:$0xff]
        %v3424 = vld [vmem:[%s8 + $0x2f8] sm:$0xff]
        %v3425 = vld [vmem:[%s8 + $0x300] sm:$0xff]
        %v3426 = vld [vmem:[%s8 + $0x308] sm:$0xff]
        %v3427 = vld [vmem:[%s8 + $0x310] sm:$0xff]
        %v3428 = vld [vmem:[%s8 + $0x318] sm:$0xff]
        %v3429 = vld [vmem:[%s8 + $0x320] sm:$0xff]
        %v3430 = vld [vmem:[%s8 + $0x328] sm:$0xff]
        %v3431 = vld [vmem:[%s8 + $0x330] sm:$0xff]
        %v3432 = vld [vmem:[%s8 + $0x338] sm:$0xff]
        %v3433 = vld [vmem:[%s8 + $0x340] sm:$0xf]
        %v3434 = vld [vmem:[%s8 + $0x348] sm:$0xf]
        %v3435 = vld [vmem:[%s9] sm:$0x3]
        %v3437 = vlaneseq
        %v3438 = vshrl.u32 %v3437, 7
        %v3439 = vsub.s32 0, %v3438
        %v3440 = vrot.slane %v3435, %v3439
        %v3441 = vlaneseq
        %v3442 = vshrl.u32 %v3441, 7
        %v3443 = vsub.s32 1, %v3442
        %v3444 = vrot.slane %v3435, %v3443
        %vm3447 = vcmask 293888
        %v3448 = vsel %vm3447, %v3257, 0
        %v3450 = vsel %vm3447, %v3259, 0
        %v3452 = vsel %vm3447, %v3261, 0
        %v3454 = vsel %vm3447, %v3263, 0
        %v3456 = vsel %vm3447, %v3265, 0
        %v3458 = vsel %vm3447, %v3267, 0
        %v3460 = vsel %vm3447, %v3269, 0
        %v3462 = vsel %vm3447, %v3271, 0
        %v3464 = vsel %vm3447, %v3273, 0
        %v3466 = vsel %vm3447, %v3275, 0
        %vm3468 = vcmask 1043456
        %v3470 = vsel %vm3468, %v3433, 0
        %v3473 = vsel %vm3468, %v3434, 0
        %3475 = vmatprep.subr.mxu0 %v3330
        %3476 = vmatpush1.msra.mxu0 %v3329
        %3477 = vmatprep.subr.mxu0 %v3332
        %3478 = vmatpush1.msra.mxu0 %v3331
        %3479 = vmatprep.subr.mxu0 %v3334
        %3480 = vmatpush1.msra.mxu0 %v3333
        %3481 = vmatprep.subr.mxu0 %v3336
        %3482 = vmatpush1.msra.mxu0 %v3335
        %3483 = vmatprep.subr.mxu0 %v3338
        %3484 = vmatpush1.msra.mxu0 %v3337
        %3485 = vmatprep.subr.mxu0 %v3340
        %3486 = vmatpush1.msra.mxu0 %v3339
        %3487 = vmatprep.subr.mxu0 %v3342
        %3488 = vmatpush1.msra.mxu0 %v3341
        %3489 = vmatprep.subr.mxu0 %v3344
        %3490 = vmatpush1.msra.mxu0 %v3343
        %3491 = vmatprep.subr.mxu0 %v3346
        %3492 = vmatpush1.msra.mxu0 %v3345
        %3493 = vmatprep.subr.mxu0 %v3348
        %3494 = vmatpush1.msra.mxu0 %v3347
        %3495 = vmatprep.subr.mxu0 %v3350
        %3496 = vmatpush1.msra.mxu0 %v3349
        %3497 = vmatprep.subr.mxu0 %v3352
        %3498 = vmatpush1.msra.mxu0 %v3351
        %3499 = vmatprep.subr.mxu0 %v3354
        %3500 = vmatpush1.msra.mxu0 %v3353
        %3501 = vmatprep.subr.mxu0 %v3356
        %3502 = vmatpush1.msra.mxu0 %v3355
        %3503 = vmatprep.subr.mxu0 %v3358
        %3504 = vmatpush1.msra.mxu0 %v3357
        %3505 = vmatprep.subr.mxu0 %v3360
        %3506 = vmatpush1.msra.mxu0 %v3359
        %3507 = vmatprep.subr.mxu0 %v3362
        %3508 = vmatpush1.msra.mxu0 %v3361
        %3509 = vmatprep.subr.mxu0 %v3364
        %3510 = vmatpush1.msra.mxu0 %v3363
        %3511 = vmatprep.subr.mxu0 %v3366
        %3512 = vmatpush1.msra.mxu0 %v3365
        %3513 = vmatprep.subr.mxu0 %v3368
        %3514 = vmatpush1.msra.mxu0 %v3367
        %3515 = vmatprep.subr.mxu0 %v3370
        %3516 = vmatpush1.msra.mxu0 %v3369
        %3517 = vmatprep.subr.mxu0 %v3372
        %3518 = vmatpush1.msra.mxu0 %v3371
        %3519 = vmatprep.subr.mxu0 %v3374
        %3520 = vmatpush1.msra.mxu0 %v3373
        %3521 = vmatprep.subr.mxu0 %v3376
        %3522 = vmatpush1.msra.mxu0 %v3375
        %3523 = vmatprep.subr.mxu0 %v3378
        %3524 = vmatpush1.msra.mxu0 %v3377
        %3525 = vmatprep.subr.mxu0 %v3380
        %3526 = vmatpush1.msra.mxu0 %v3379
        %3527 = vmatprep.subr.mxu0 %v3382
        %3528 = vmatpush1.msra.mxu0 %v3381
        %3529 = vmatprep.subr.mxu0 %v3384
        %3530 = vmatpush1.msra.mxu0 %v3383
        %3531 = vmatprep.subr.mxu0 %v3386
        %3532 = vmatpush1.msra.mxu0 %v3385
        %3533 = vmatprep.subr.mxu0 %v3388
        %3534 = vmatpush1.msra.mxu0 %v3387
        %3535 = vmatprep.subr.mxu0 %v3390
        %3536 = vmatpush1.msra.mxu0 %v3389
        %3537 = vmatprep.subr.mxu0 %v3392
        %3538 = vmatpush1.msra.mxu0 %v3391
        %3539 = vmatprep.mubr.f32.mxu0 %v3308
        %3540 = vmatmul.mubr.f32.gmra.mrb[0].mxu0 %v3287
        %v3541 = vpop.f32.mrb[0].mxu0
        %v3542 = vadd.f32 %v3440, %v3541
        %v3543 = vpop.f32.mrb[0].mxu0
        %v3544 = vadd.f32 %v3444, %v3543
        %3545 = vmatprep.mubr.f32.mxu0 %v3309
        %3546 = vmatmul.mubr.f32.gmra.mrb[0].mxu0 %v3288
        %v3547 = vpop.f32.mrb[0].mxu0
        %v3548 = vadd.f32 %v3440, %v3547
        %v3549 = vpop.f32.mrb[0].mxu0
        %v3550 = vadd.f32 %v3444, %v3549
        %3551 = vmatprep.mubr.f32.mxu0 %v3310
        %3552 = vmatmul.mubr.f32.gmra.mrb[0].mxu0 %v3289
        %v3553 = vpop.f32.mrb[0].mxu0
        %v3554 = vadd.f32 %v3440, %v3553
        %v3555 = vpop.f32.mrb[0].mxu0
        %v3556 = vadd.f32 %v3444, %v3555
        %3557 = vmatprep.mubr.f32.mxu0 %v3311
        %3558 = vmatmul.mubr.f32.gmra.mrb[0].mxu0 %v3290
        %v3559 = vpop.f32.mrb[0].mxu0
        %v3560 = vadd.f32 %v3440, %v3559
        %v3561 = vpop.f32.mrb[0].mxu0
        %v3562 = vadd.f32 %v3444, %v3561
        %3563 = vmatprep.mubr.f32.mxu0 %v3312
        %3564 = vmatmul.mubr.f32.gmra.mrb[0].mxu0 %v3291
        %v3565 = vpop.f32.mrb[0].mxu0
        %v3566 = vadd.f32 %v3440, %v3565
        %v3567 = vpop.f32.mrb[0].mxu0
        %v3568 = vadd.f32 %v3444, %v3567
        %3569 = vmatprep.mubr.f32.mxu0 %v3313
        %3570 = vmatmul.mubr.f32.gmra.mrb[0].mxu0 %v3292
        %v3571 = vpop.f32.mrb[0].mxu0
        %v3572 = vadd.f32 %v3440, %v3571
        %v3573 = vpop.f32.mrb[0].mxu0
        %v3574 = vadd.f32 %v3444, %v3573
        %3575 = vmatprep.mubr.f32.mxu0 %v3314
        %3576 = vmatmul.mubr.f32.gmra.mrb[0].mxu0 %v3293
        %v3577 = vpop.f32.mrb[0].mxu0
        %v3578 = vadd.f32 %v3440, %v3577
        %v3579 = vpop.f32.mrb[0].mxu0
        %v3580 = vadd.f32 %v3444, %v3579
        %3581 = vmatprep.mubr.f32.mxu0 %v3315
        %3582 = vmatmul.mubr.f32.gmra.mrb[0].mxu0 %v3294
        %v3583 = vpop.f32.mrb[0].mxu0
        %v3584 = vadd.f32 %v3440, %v3583
        %v3585 = vpop.f32.mrb[0].mxu0
        %v3586 = vadd.f32 %v3444, %v3585
        %3587 = vmatprep.mubr.f32.mxu0 %v3316
        %3588 = vmatmul.mubr.f32.gmra.mrb[0].mxu0 %v3295
        %v3589 = vpop.f32.mrb[0].mxu0
        %v3590 = vadd.f32 %v3440, %v3589
        %v3591 = vpop.f32.mrb[0].mxu0
        %v3592 = vadd.f32 %v3444, %v3591
        %3593 = vmatprep.mubr.f32.mxu0 %v3317
        %3594 = vmatmul.mubr.f32.gmra.mrb[0].mxu0 %v3296
        %v3595 = vpop.f32.mrb[0].mxu0
        %v3596 = vadd.f32 %v3440, %v3595
        %v3597 = vpop.f32.mrb[0].mxu0
        %v3598 = vadd.f32 %v3444, %v3597
        %3599 = vdwg.mxu0
        %3600 = vmatprep.subr.mxu0 %v3394
        %3601 = vmatpush1.msra.mxu0 %v3393
        %3602 = vmatprep.subr.mxu0 %v3396
        %3603 = vmatpush1.msra.mxu0 %v3395
        %3604 = vmatprep.subr.mxu0 %v3398
        %3605 = vmatpush1.msra.mxu0 %v3397
        %3606 = vmatprep.subr.mxu0 %v3400
        %3607 = vmatpush1.msra.mxu0 %v3399
        %3608 = vmatprep.subr.mxu0 %v3402
        %3609 = vmatpush1.msra.mxu0 %v3401
        %3610 = vmatprep.subr.mxu0 %v3404
        %3611 = vmatpush1.msra.mxu0 %v3403
        %3612 = vmatprep.subr.mxu0 %v3406
        %3613 = vmatpush1.msra.mxu0 %v3405
        %3614 = vmatprep.subr.mxu0 %v3408
        %3615 = vmatpush1.msra.mxu0 %v3407
        %3616 = vmatprep.subr.mxu0 %v3410
        %3617 = vmatpush1.msra.mxu0 %v3409
        %3618 = vmatprep.subr.mxu0 %v3412
        %3619 = vmatpush1.msra.mxu0 %v3411
        %3620 = vmatprep.subr.mxu0 %v3414
        %3621 = vmatpush1.msra.mxu0 %v3413
        %3622 = vmatprep.subr.mxu0 %v3416
        %3623 = vmatpush1.msra.mxu0 %v3415
        %3624 = vmatprep.subr.mxu0 %v3418
        %3625 = vmatpush1.msra.mxu0 %v3417
        %3626 = vmatprep.subr.mxu0 %v3420
        %3627 = vmatpush1.msra.mxu0 %v3419
        %3628 = vmatprep.subr.mxu0 %v3422
        %3629 = vmatpush1.msra.mxu0 %v3421
        %3630 = vmatprep.subr.mxu0 %v3424
        %3631 = vmatpush1.msra.mxu0 %v3423
        %3632 = vmatprep.subr.mxu0 %v3426
        %3633 = vmatpush1.msra.mxu0 %v3425
        %3634 = vmatprep.subr.mxu0 %v3428
        %3635 = vmatpush1.msra.mxu0 %v3427
        %3636 = vmatprep.subr.mxu0 %v3430
        %3637 = vmatpush1.msra.mxu0 %v3429
        %3638 = vmatprep.subr.mxu0 %v3432
        %3639 = vmatpush1.msra.mxu0 %v3431
        %3640 = vmatprep.subr.mxu0 %v3473
        %3641 = vmatpush1.msra.mxu0 %v3470
        %3642 = vmatprep.subr.mxu0 0.0
        %3643 = vmatpush1.msra.mxu0 0.0
        %3644 = vmatprep.subr.mxu0 0.0
        %3645 = vmatpush1.msra.mxu0 0.0
        %3646 = vmatprep.subr.mxu0 0.0
        %3647 = vmatpush1.msra.mxu0 0.0
        %3648 = vmatprep.subr.mxu0 0.0
        %3649 = vmatpush1.msra.mxu0 0.0
        %3650 = vmatprep.subr.mxu0 0.0
        %3651 = vmatpush1.msra.mxu0 0.0
        %3652 = vmatprep.subr.mxu0 0.0
        %3653 = vmatpush1.msra.mxu0 0.0
        %3654 = vmatprep.subr.mxu0 0.0
        %3655 = vmatpush1.msra.mxu0 0.0
        %3656 = vmatprep.subr.mxu0 0.0
        %3657 = vmatpush1.msra.mxu0 0.0
        %3658 = vmatprep.subr.mxu0 0.0
        %3659 = vmatpush1.msra.mxu0 0.0
        %3660 = vmatprep.subr.mxu0 0.0
        %3661 = vmatpush1.msra.mxu0 0.0
        %3662 = vmatprep.subr.mxu0 0.0
        %3663 = vmatpush1.msra.mxu0 0.0
        %3664 = vmatprep.mubr.f32.mxu0 %v3448
        %3665 = vmatmul.mubr.f32.gmra.mrb[0].mxu0 %v3319
        %v3666 = vpop.f32.mrb[0].mxu0
        %v3667 = vadd.f32 %v3542, %v3666
        %v3668 = vpop.f32.mrb[0].mxu0
        %v3669 = vadd.f32 %v3544, %v3668
        %3670 = vmatprep.mubr.f32.mxu0 %v3450
        %3671 = vmatmul.mubr.f32.gmra.mrb[0].mxu0 %v3320
        %v3672 = vpop.f32.mrb[0].mxu0
        %v3673 = vadd.f32 %v3548, %v3672
        %v3674 = vpop.f32.mrb[0].mxu0
        %v3675 = vadd.f32 %v3550, %v3674
        %3676 = vmatprep.mubr.f32.mxu0 %v3452
        %3677 = vmatmul.mubr.f32.gmra.mrb[0].mxu0 %v3321
        %v3678 = vpop.f32.mrb[0].mxu0
        %v3679 = vadd.f32 %v3554, %v3678
        %v3680 = vpop.f32.mrb[0].mxu0
        %v3681 = vadd.f32 %v3556, %v3680
        %3682 = vmatprep.mubr.f32.mxu0 %v3454
        %3683 = vmatmul.mubr.f32.gmra.mrb[0].mxu0 %v3322
        %v3684 = vpop.f32.mrb[0].mxu0
        %v3685 = vadd.f32 %v3560, %v3684
        %v3686 = vpop.f32.mrb[0].mxu0
        %v3687 = vadd.f32 %v3562, %v3686
        %3688 = vmatprep.mubr.f32.mxu0 %v3456
        %3689 = vmatmul.mubr.f32.gmra.mrb[0].mxu0 %v3323
        %v3690 = vpop.f32.mrb[0].mxu0
        %v3691 = vadd.f32 %v3566, %v3690
        %v3692 = vpop.f32.mrb[0].mxu0
        %v3693 = vadd.f32 %v3568, %v3692
        %3694 = vmatprep.mubr.f32.mxu0 %v3458
        %3695 = vmatmul.mubr.f32.gmra.mrb[0].mxu0 %v3324
        %v3696 = vpop.f32.mrb[0].mxu0
        %v3697 = vadd.f32 %v3572, %v3696
        %v3698 = vpop.f32.mrb[0].mxu0
        %v3699 = vadd.f32 %v3574, %v3698
        %3700 = vmatprep.mubr.f32.mxu0 %v3460
        %3701 = vmatmul.mubr.f32.gmra.mrb[0].mxu0 %v3325
        %v3702 = vpop.f32.mrb[0].mxu0
        %v3703 = vadd.f32 %v3578, %v3702
        %v3704 = vpop.f32.mrb[0].mxu0
        %v3705 = vadd.f32 %v3580, %v3704
        %3706 = vmatprep.mubr.f32.mxu0 %v3462
        %3707 = vmatmul.mubr.f32.gmra.mrb[0].mxu0 %v3326
        %v3708 = vpop.f32.mrb[0].mxu0
        %v3709 = vadd.f32 %v3584, %v3708
        %v3710 = vpop.f32.mrb[0].mxu0
        %v3711 = vadd.f32 %v3586, %v3710
        %3712 = vmatprep.mubr.f32.mxu0 %v3464
        %3713 = vmatmul.mubr.f32.gmra.mrb[0].mxu0 %v3327
        %v3714 = vpop.f32.mrb[0].mxu0
        %v3715 = vadd.f32 %v3590, %v3714
        %v3716 = vpop.f32.mrb[0].mxu0
        %v3717 = vadd.f32 %v3592, %v3716
        %3718 = vmatprep.mubr.f32.mxu0 %v3466
        %3719 = vmatmul.mubr.f32.gmra.mrb[0].mxu0 %v3328
        %v3720 = vpop.f32.mrb[0].mxu0
        %v3721 = vadd.f32 %v3596, %v3720
        %v3722 = vpop.f32.mrb[0].mxu0
        %v3723 = vadd.f32 %v3598, %v3722
        %3724 = vdwg.mxu0
        %v3725 = vmax.f32 %v3667, 0.0
        %v3726 = vmax.f32 %v3669, 0.0
        %v3727 = vmax.f32 %v3673, 0.0
        %v3728 = vmax.f32 %v3675, 0.0
        %v3729 = vmax.f32 %v3679, 0.0
        %v3730 = vmax.f32 %v3681, 0.0
        %v3731 = vmax.f32 %v3685, 0.0
        %v3732 = vmax.f32 %v3687, 0.0
        %v3733 = vmax.f32 %v3691, 0.0
        %v3734 = vmax.f32 %v3693, 0.0
        %v3735 = vmax.f32 %v3697, 0.0
        %v3736 = vmax.f32 %v3699, 0.0
        %v3737 = vmax.f32 %v3703, 0.0
        %v3738 = vmax.f32 %v3705, 0.0
        %v3739 = vmax.f32 %v3709, 0.0
        %v3740 = vmax.f32 %v3711, 0.0
        %v3741 = vmax.f32 %v3715, 0.0
        %v3742 = vmax.f32 %v3717, 0.0
        %v3743 = vmax.f32 %v3721, 0.0
        %v3744 = vmax.f32 %v3723, 0.0
        %v3745 = vld [vmem:[%s10] sm:$0xff]
        %v3746 = vld [vmem:[%s10 + $0x8] sm:$0xff]
        %v3747 = vld [vmem:[%s10 + $0x10] sm:$0xff]
        %v3748 = vld [vmem:[%s10 + $0x18] sm:$0xff]
        %v3749 = vld [vmem:[%s10 + $0x20] sm:$0xff]
        %v3751 = vsel %vm3318, %v3745, 0
        %v3754 = vsel %vm3318, %v3746, 0
        %v3757 = vsel %vm3318, %v3747, 0
        %v3760 = vsel %vm3318, %v3748, 0
        %v3763 = vsel %vm3318, %v3749, 0
        %3765 = vmatprep.subr.mxu0 %v3726
        %3766 = vmatpush1.msra.mxu0 %v3725
        %3767 = vmatprep.subr.mxu0 %v3728
        %3768 = vmatpush1.msra.mxu0 %v3727
        %3769 = vmatprep.subr.mxu0 %v3730
        %3770 = vmatpush1.msra.mxu0 %v3729
        %3771 = vmatprep.subr.mxu0 %v3732
        %3772 = vmatpush1.msra.mxu0 %v3731
        %3773 = vmatprep.subr.mxu0 %v3734
        %3774 = vmatpush1.msra.mxu0 %v3733
        %3775 = vmatprep.subr.mxu0 %v3736
        %3776 = vmatpush1.msra.mxu0 %v3735
        %3777 = vmatprep.subr.mxu0 %v3738
        %3778 = vmatpush1.msra.mxu0 %v3737
        %3779 = vmatprep.subr.mxu0 %v3740
        %3780 = vmatpush1.msra.mxu0 %v3739
        %3781 = vmatprep.subr.mxu0 %v3742
        %3782 = vmatpush1.msra.mxu0 %v3741
        %3783 = vmatprep.subr.mxu0 %v3744
        %3784 = vmatpush1.msra.mxu0 %v3743
        %3785 = vmatprep.subr.mxu0 0.0
        %3786 = vmatpush1.msra.mxu0 0.0
        %3787 = vmatprep.subr.mxu0 0.0
        %3788 = vmatpush1.msra.mxu0 0.0
        %3789 = vmatprep.subr.mxu0 0.0
        %3790 = vmatpush1.msra.mxu0 0.0
        %3791 = vmatprep.subr.mxu0 0.0
        %3792 = vmatpush1.msra.mxu0 0.0
        %3793 = vmatprep.subr.mxu0 0.0
        %3794 = vmatpush1.msra.mxu0 0.0
        %3795 = vmatprep.subr.mxu0 0.0
        %3796 = vmatpush1.msra.mxu0 0.0
        %3797 = vmatprep.subr.mxu0 0.0
        %3798 = vmatpush1.msra.mxu0 0.0
        %3799 = vmatprep.subr.mxu0 0.0
        %3800 = vmatpush1.msra.mxu0 0.0
        %3801 = vmatprep.subr.mxu0 0.0
        %3802 = vmatpush1.msra.mxu0 0.0
        %3803 = vmatprep.subr.mxu0 0.0
        %3804 = vmatpush1.msra.mxu0 0.0
        %3805 = vmatprep.subr.mxu0 0.0
        %3806 = vmatpush1.msra.mxu0 0.0
        %3807 = vmatprep.subr.mxu0 0.0
        %3808 = vmatpush1.msra.mxu0 0.0
        %3809 = vmatprep.subr.mxu0 0.0
        %3810 = vmatpush1.msra.mxu0 0.0
        %3811 = vmatprep.subr.mxu0 0.0
        %3812 = vmatpush1.msra.mxu0 0.0
        %3813 = vmatprep.subr.mxu0 0.0
        %3814 = vmatpush1.msra.mxu0 0.0
        %3815 = vmatprep.subr.mxu0 0.0
        %3816 = vmatpush1.msra.mxu0 0.0
        %3817 = vmatprep.subr.mxu0 0.0
        %3818 = vmatpush1.msra.mxu0 0.0
        %3819 = vmatprep.subr.mxu0 0.0
        %3820 = vmatpush1.msra.mxu0 0.0
        %3821 = vmatprep.subr.mxu0 0.0
        %3822 = vmatpush1.msra.mxu0 0.0
        %3823 = vmatprep.subr.mxu0 0.0
        %3824 = vmatpush1.msra.mxu0 0.0
        %3825 = vmatprep.subr.mxu0 0.0
        %3826 = vmatpush1.msra.mxu0 0.0
        %3827 = vmatprep.subr.mxu0 0.0
        %3828 = vmatpush1.msra.mxu0 0.0
        %3829 = vmatprep.mubr.f32.mxu0 0.0
        %3830 = vmatmul.mubr.f32.gmra.mrb[0].mxu0 %v3751
        %v3831 = vpop.f32.mrb[0].mxu0
        %v3832 = vadd.f32 0.0, %v3831
        %v3833 = vpop.f32.mrb[0].mxu0
        %v3834 = vadd.f32 0.0, %v3833
        %3835 = vmatprep.mubr.f32.mxu0 0.0
        %3836 = vmatmul.mubr.f32.gmra.mrb[0].mxu0 %v3754
        %v3837 = vpop.f32.mrb[0].mxu0
        %v3838 = vadd.f32 0.0, %v3837
        %v3839 = vpop.f32.mrb[0].mxu0
        %v3840 = vadd.f32 0.0, %v3839
        %3841 = vmatprep.mubr.f32.mxu0 0.0
        %3842 = vmatmul.mubr.f32.gmra.mrb[0].mxu0 %v3757
        %v3843 = vpop.f32.mrb[0].mxu0
        %v3844 = vadd.f32 0.0, %v3843
        %v3845 = vpop.f32.mrb[0].mxu0
        %v3846 = vadd.f32 0.0, %v3845
        %3847 = vmatprep.mubr.f32.mxu0 0.0
        %3848 = vmatmul.mubr.f32.gmra.mrb[0].mxu0 %v3760
        %v3849 = vpop.f32.mrb[0].mxu0
        %v3850 = vadd.f32 0.0, %v3849
        %v3851 = vpop.f32.mrb[0].mxu0
        %v3852 = vadd.f32 0.0, %v3851
        %3853 = vmatprep.mubr.f32.mxu0 0.0
        %3854 = vmatmul.mubr.f32.gmra.mrb[0].mxu0 %v3763
        %v3855 = vpop.f32.mrb[0].mxu0
        %v3856 = vadd.f32 0.0, %v3855
        %v3857 = vpop.f32.mrb[0].mxu0
        %v3858 = vadd.f32 0.0, %v3857
        %3859 = vdwg.mxu0
        %v3860 = vld [vmem:[%s11] sm:$0xff]
        %v3861 = vld [vmem:[%s11 + $0x8] sm:$0xff]
        %v3862 = vld [vmem:[%s11 + $0x10] sm:$0xff]
        %v3863 = vld [vmem:[%s11 + $0x18] sm:$0xff]
        %v3864 = vld [vmem:[%s11 + $0x20] sm:$0xff]
        %v3866 = vsel %vm3318, %v3860, 0
        %v3869 = vsel %vm3318, %v3861, 0
        %v3872 = vsel %vm3318, %v3862, 0
        %v3875 = vsel %vm3318, %v3863, 0
        %v3878 = vsel %vm3318, %v3864, 0
        %3880 = vmatprep.subr.mxu0 %v3726
        %3881 = vmatpush1.msra.mxu0 %v3725
        %3882 = vmatprep.subr.mxu0 %v3728
        %3883 = vmatpush1.msra.mxu0 %v3727
        %3884 = vmatprep.subr.mxu0 %v3730
        %3885 = vmatpush1.msra.mxu0 %v3729
        %3886 = vmatprep.subr.mxu0 %v3732
        %3887 = vmatpush1.msra.mxu0 %v3731
        %3888 = vmatprep.subr.mxu0 %v3734
        %3889 = vmatpush1.msra.mxu0 %v3733
        %3890 = vmatprep.subr.mxu0 %v3736
        %3891 = vmatpush1.msra.mxu0 %v3735
        %3892 = vmatprep.subr.mxu0 %v3738
        %3893 = vmatpush1.msra.mxu0 %v3737
        %3894 = vmatprep.subr.mxu0 %v3740
        %3895 = vmatpush1.msra.mxu0 %v3739
        %3896 = vmatprep.subr.mxu0 %v3742
        %3897 = vmatpush1.msra.mxu0 %v3741
        %3898 = vmatprep.subr.mxu0 %v3744
        %3899 = vmatpush1.msra.mxu0 %v3743
        %3900 = vmatprep.subr.mxu0 0.0
        %3901 = vmatpush1.msra.mxu0 0.0
        %3902 = vmatprep.subr.mxu0 0.0
        %3903 = vmatpush1.msra.mxu0 0.0
        %3904 = vmatprep.subr.mxu0 0.0
        %3905 = vmatpush1.msra.mxu0 0.0
        %3906 = vmatprep.subr.mxu0 0.0
        %3907 = vmatpush1.msra.mxu0 0.0
        %3908 = vmatprep.subr.mxu0 0.0
        %3909 = vmatpush1.msra.mxu0 0.0
        %3910 = vmatprep.subr.mxu0 0.0
        %3911 = vmatpush1.msra.mxu0 0.0
        %3912 = vmatprep.subr.mxu0 0.0
        %3913 = vmatpush1.msra.mxu0 0.0
        %3914 = vmatprep.subr.mxu0 0.0
        %3915 = vmatpush1.msra.mxu0 0.0
        %3916 = vmatprep.subr.mxu0 0.0
        %3917 = vmatpush1.msra.mxu0 0.0
        %3918 = vmatprep.subr.mxu0 0.0
        %3919 = vmatpush1.msra.mxu0 0.0
        %3920 = vmatprep.subr.mxu0 0.0
        %3921 = vmatpush1.msra.mxu0 0.0
        %3922 = vmatprep.subr.mxu0 0.0
        %3923 = vmatpush1.msra.mxu0 0.0
        %3924 = vmatprep.subr.mxu0 0.0
        %3925 = vmatpush1.msra.mxu0 0.0
        %3926 = vmatprep.subr.mxu0 0.0
        %3927 = vmatpush1.msra.mxu0 0.0
        %3928 = vmatprep.subr.mxu0 0.0
        %3929 = vmatpush1.msra.mxu0 0.0
        %3930 = vmatprep.subr.mxu0 0.0
        %3931 = vmatpush1.msra.mxu0 0.0
        %3932 = vmatprep.subr.mxu0 0.0
        %3933 = vmatpush1.msra.mxu0 0.0
        %3934 = vmatprep.subr.mxu0 0.0
        %3935 = vmatpush1.msra.mxu0 0.0
        %3936 = vmatprep.subr.mxu0 0.0
        %3937 = vmatpush1.msra.mxu0 0.0
        %3938 = vmatprep.subr.mxu0 0.0
        %3939 = vmatpush1.msra.mxu0 0.0
        %3940 = vmatprep.subr.mxu0 0.0
        %3941 = vmatpush1.msra.mxu0 0.0
        %3942 = vmatprep.subr.mxu0 0.0
        %3943 = vmatpush1.msra.mxu0 0.0
        %3944 = vmatprep.mubr.f32.mxu0 0.0
        %3945 = vmatmul.mubr.f32.gmra.mrb[0].mxu0 %v3866
        %v3946 = vpop.f32.mrb[0].mxu0
        %v3947 = vadd.f32 0.0, %v3946
        %v3948 = vpop.f32.mrb[0].mxu0
        %v3949 = vadd.f32 0.0, %v3948
        %3950 = vmatprep.mubr.f32.mxu0 0.0
        %3951 = vmatmul.mubr.f32.gmra.mrb[0].mxu0 %v3869
        %v3952 = vpop.f32.mrb[0].mxu0
        %v3953 = vadd.f32 0.0, %v3952
        %v3954 = vpop.f32.mrb[0].mxu0
        %v3955 = vadd.f32 0.0, %v3954
        %3956 = vmatprep.mubr.f32.mxu0 0.0
        %3957 = vmatmul.mubr.f32.gmra.mrb[0].mxu0 %v3872
        %v3958 = vpop.f32.mrb[0].mxu0
        %v3959 = vadd.f32 0.0, %v3958
        %v3960 = vpop.f32.mrb[0].mxu0
        %v3961 = vadd.f32 0.0, %v3960
        %3962 = vmatprep.mubr.f32.mxu0 0.0
        %3963 = vmatmul.mubr.f32.gmra.mrb[0].mxu0 %v3875
        %v3964 = vpop.f32.mrb[0].mxu0
        %v3965 = vadd.f32 0.0, %v3964
        %v3966 = vpop.f32.mrb[0].mxu0
        %v3967 = vadd.f32 0.0, %v3966
        %3968 = vmatprep.mubr.f32.mxu0 0.0
        %3969 = vmatmul.mubr.f32.gmra.mrb[0].mxu0 %v3878
        %v3970 = vpop.f32.mrb[0].mxu0
        %v3971 = vadd.f32 0.0, %v3970
        %v3972 = vpop.f32.mrb[0].mxu0
        %v3973 = vadd.f32 0.0, %v3972
        %3974 = vdwg.mxu0
        %v3975 = vmax.f32 %v3832, %v3947
        %v3976 = vmax.f32 %v3834, %v3949
        %v3977 = vmax.f32 %v3838, %v3953
        %v3978 = vmax.f32 %v3840, %v3955
        %v3979 = vmax.f32 %v3844, %v3959
        %v3980 = vmax.f32 %v3846, %v3961
        %v3981 = vmax.f32 %v3850, %v3965
        %v3982 = vmax.f32 %v3852, %v3967
        %v3983 = vmax.f32 %v3856, %v3971
        %v3984 = vmax.f32 %v3858, %v3973
        %v3985 = vld [vmem:[%s12] sm:$0xff]
        %v3986 = vld [vmem:[%s12 + $0x8] sm:$0xff]
        %v3987 = vld [vmem:[%s12 + $0x10] sm:$0xff]
        %v3988 = vld [vmem:[%s12 + $0x18] sm:$0xff]
        %v3989 = vld [vmem:[%s12 + $0x20] sm:$0xff]
        %v3990 = vld [vmem:[%s12 + $0x28] sm:$0xff]
        %v3991 = vld [vmem:[%s12 + $0x30] sm:$0xff]
        %v3992 = vld [vmem:[%s12 + $0x38] sm:$0xff]
        %v3993 = vld [vmem:[%s12 + $0x40] sm:$0xff]
        %v3994 = vld [vmem:[%s12 + $0x48] sm:$0xff]
        %v3995 = vld [vmem:[%s12 + $0x50] sm:$0xff]
        %v3996 = vld [vmem:[%s12 + $0x58] sm:$0xff]
        %v3997 = vld [vmem:[%s12 + $0x60] sm:$0xff]
        %v3998 = vld [vmem:[%s12 + $0x68] sm:$0xff]
        %v3999 = vld [vmem:[%s12 + $0x70] sm:$0xff]
        %v4000 = vld [vmem:[%s12 + $0x78] sm:$0xff]
        %v4001 = vld [vmem:[%s12 + $0x80] sm:$0xff]
        %v4002 = vld [vmem:[%s12 + $0x88] sm:$0xff]
        %v4003 = vld [vmem:[%s12 + $0x90] sm:$0xff]
        %v4004 = vld [vmem:[%s12 + $0x98] sm:$0xff]
        %vm4005 = vcmask 261120
        %v4007 = vsel %vm4005, %v3976, 0
        %v4010 = vsel %vm4005, %v3978, 0
        %v4013 = vsel %vm4005, %v3980, 0
        %v4016 = vsel %vm4005, %v3982, 0
        %v4019 = vsel %vm4005, %v3984, 0
        %4021 = vmatprep.subr.mxu0 0.0
        %4022 = vmatpush1.msra.mxu0 %v3985
        %4023 = vmatprep.subr.mxu0 0.0
        %4024 = vmatpush1.msra.mxu0 %v3986
        %4025 = vmatprep.subr.mxu0 0.0
        %4026 = vmatpush1.msra.mxu0 %v3987
        %4027 = vmatprep.subr.mxu0 0.0
        %4028 = vmatpush1.msra.mxu0 %v3988
        %4029 = vmatprep.subr.mxu0 0.0
        %4030 = vmatpush1.msra.mxu0 %v3989
        %4031 = vmatprep.subr.mxu0 0.0
        %4032 = vmatpush1.msra.mxu0 %v3990
        %4033 = vmatprep.subr.mxu0 0.0
        %4034 = vmatpush1.msra.mxu0 %v3991
        %4035 = vmatprep.subr.mxu0 0.0
        %4036 = vmatpush1.msra.mxu0 %v3992
        %4037 = vmatprep.subr.mxu0 0.0
        %4038 = vmatpush1.msra.mxu0 %v3993
        %4039 = vmatprep.subr.mxu0 0.0
        %4040 = vmatpush1.msra.mxu0 %v3994
        %4041 = vmatprep.subr.mxu0 0.0
        %4042 = vmatpush1.msra.mxu0 %v3995
        %4043 = vmatprep.subr.mxu0 0.0
        %4044 = vmatpush1.msra.mxu0 %v3996
        %4045 = vmatprep.subr.mxu0 0.0
        %4046 = vmatpush1.msra.mxu0 %v3997
        %4047 = vmatprep.subr.mxu0 0.0
        %4048 = vmatpush1.msra.mxu0 %v3998
        %4049 = vmatprep.subr.mxu0 0.0
        %4050 = vmatpush1.msra.mxu0 %v3999
        %4051 = vmatprep.subr.mxu0 0.0
        %4052 = vmatpush1.msra.mxu0 %v4000
        %4053 = vmatprep.subr.mxu0 0.0
        %4054 = vmatpush1.msra.mxu0 %v4001
        %4055 = vmatprep.subr.mxu0 0.0
        %4056 = vmatpush1.msra.mxu0 %v4002
        %4057 = vmatprep.subr.mxu0 0.0
        %4058 = vmatpush1.msra.mxu0 %v4003
        %4059 = vmatprep.subr.mxu0 0.0
        %4060 = vmatpush1.msra.mxu0 %v4004
        %4061 = vmatprep.subr.mxu0 0.0
        %4062 = vmatpush1.msra.mxu0 0.0
        %4063 = vmatprep.subr.mxu0 0.0
        %4064 = vmatpush1.msra.mxu0 0.0
        %4065 = vmatprep.subr.mxu0 0.0
        %4066 = vmatpush1.msra.mxu0 0.0
        %4067 = vmatprep.subr.mxu0 0.0
        %4068 = vmatpush1.msra.mxu0 0.0
        %4069 = vmatprep.subr.mxu0 0.0
        %4070 = vmatpush1.msra.mxu0 0.0
        %4071 = vmatprep.subr.mxu0 0.0
        %4072 = vmatpush1.msra.mxu0 0.0
        %4073 = vmatprep.subr.mxu0 0.0
        %4074 = vmatpush1.msra.mxu0 0.0
        %4075 = vmatprep.subr.mxu0 0.0
        %4076 = vmatpush1.msra.mxu0 0.0
        %4077 = vmatprep.subr.mxu0 0.0
        %4078 = vmatpush1.msra.mxu0 0.0
        %4079 = vmatprep.subr.mxu0 0.0
        %4080 = vmatpush1.msra.mxu0 0.0
        %4081 = vmatprep.subr.mxu0 0.0
        %4082 = vmatpush1.msra.mxu0 0.0
        %4083 = vmatprep.subr.mxu0 0.0
        %4084 = vmatpush1.msra.mxu0 0.0
        %4085 = vmatprep.mubr.f32.mxu0 %v4007
        %4086 = vmatmul.mubr.f32.gmra.mrb[0].mxu0 %v3975
        %v4087 = vpop.f32.mrb[0].mxu0
        %v4088 = vadd.f32 0.0, %v4087
        %v4089 = vpop.f32.mrb[0].mxu0
        %4090 = vmatprep.mubr.f32.mxu0 %v4010
        %4091 = vmatmul.mubr.f32.gmra.mrb[0].mxu0 %v3977
        %v4092 = vpop.f32.mrb[0].mxu0
        %v4093 = vadd.f32 0.0, %v4092
        %v4094 = vpop.f32.mrb[0].mxu0
        %4095 = vmatprep.mubr.f32.mxu0 %v4013
        %4096 = vmatmul.mubr.f32.gmra.mrb[0].mxu0 %v3979
        %v4097 = vpop.f32.mrb[0].mxu0
        %v4098 = vadd.f32 0.0, %v4097
        %v4099 = vpop.f32.mrb[0].mxu0
        %4100 = vmatprep.mubr.f32.mxu0 %v4016
        %4101 = vmatmul.mubr.f32.gmra.mrb[0].mxu0 %v3981
        %v4102 = vpop.f32.mrb[0].mxu0
        %v4103 = vadd.f32 0.0, %v4102
        %v4104 = vpop.f32.mrb[0].mxu0
        %4105 = vmatprep.mubr.f32.mxu0 %v4019
        %4106 = vmatmul.mubr.f32.gmra.mrb[0].mxu0 %v3983
        %v4107 = vpop.f32.mrb[0].mxu0
        %v4108 = vadd.f32 0.0, %v4107
        %v4109 = vpop.f32.mrb[0].mxu0
        %4110 = vdwg.mxu0
        %v4111 = vld [vmem:[%s13] sm:$0xff]
        %v4112 = vld [vmem:[%s13 + $0x8] sm:$0xff]
        %v4113 = vld [vmem:[%s13 + $0x10] sm:$0xff]
        %v4114 = vld [vmem:[%s13 + $0x18] sm:$0xff]
        %v4115 = vld [vmem:[%s13 + $0x20] sm:$0xff]
        %v4116 = vld [vmem:[%s13 + $0x28] sm:$0xff]
        %v4117 = vld [vmem:[%s13 + $0x30] sm:$0xff]
        %v4118 = vld [vmem:[%s13 + $0x38] sm:$0xff]
        %v4119 = vld [vmem:[%s13 + $0x40] sm:$0xff]
        %v4120 = vld [vmem:[%s13 + $0x48] sm:$0xff]
        %v4121 = vld [vmem:[%s13 + $0x50] sm:$0xff]
        %v4122 = vld [vmem:[%s13 + $0x58] sm:$0xff]
        %v4123 = vld [vmem:[%s13 + $0x60] sm:$0xff]
        %v4124 = vld [vmem:[%s13 + $0x68] sm:$0xff]
        %v4125 = vld [vmem:[%s13 + $0x70] sm:$0xff]
        %v4126 = vld [vmem:[%s13 + $0x78] sm:$0xff]
        %v4127 = vld [vmem:[%s13 + $0x80] sm:$0xff]
        %v4128 = vld [vmem:[%s13 + $0x88] sm:$0xff]
        %v4129 = vld [vmem:[%s13 + $0x90] sm:$0xff]
        %v4130 = vld [vmem:[%s13 + $0x98] sm:$0xff]
        %4131 = vmatprep.subr.mxu0 0.0
        %4132 = vmatpush1.msra.mxu0 %v4111
        %4133 = vmatprep.subr.mxu0 0.0
        %4134 = vmatpush1.msra.mxu0 %v4112
        %4135 = vmatprep.subr.mxu0 0.0
        %4136 = vmatpush1.msra.mxu0 %v4113
        %4137 = vmatprep.subr.mxu0 0.0
        %4138 = vmatpush1.msra.mxu0 %v4114
        %4139 = vmatprep.subr.mxu0 0.0
        %4140 = vmatpush1.msra.mxu0 %v4115
        %4141 = vmatprep.subr.mxu0 0.0
        %4142 = vmatpush1.msra.mxu0 %v4116
        %4143 = vmatprep.subr.mxu0 0.0
        %4144 = vmatpush1.msra.mxu0 %v4117
        %4145 = vmatprep.subr.mxu0 0.0
        %4146 = vmatpush1.msra.mxu0 %v4118
        %4147 = vmatprep.subr.mxu0 0.0
        %4148 = vmatpush1.msra.mxu0 %v4119
        %4149 = vmatprep.subr.mxu0 0.0
        %4150 = vmatpush1.msra.mxu0 %v4120
        %4151 = vmatprep.subr.mxu0 0.0
        %4152 = vmatpush1.msra.mxu0 %v4121
        %4153 = vmatprep.subr.mxu0 0.0
        %4154 = vmatpush1.msra.mxu0 %v4122
        %4155 = vmatprep.subr.mxu0 0.0
        %4156 = vmatpush1.msra.mxu0 %v4123
        %4157 = vmatprep.subr.mxu0 0.0
        %4158 = vmatpush1.msra.mxu0 %v4124
        %4159 = vmatprep.subr.mxu0 0.0
        %4160 = vmatpush1.msra.mxu0 %v4125
        %4161 = vmatprep.subr.mxu0 0.0
        %4162 = vmatpush1.msra.mxu0 %v4126
        %4163 = vmatprep.subr.mxu0 0.0
        %4164 = vmatpush1.msra.mxu0 %v4127
        %4165 = vmatprep.subr.mxu0 0.0
        %4166 = vmatpush1.msra.mxu0 %v4128
        %4167 = vmatprep.subr.mxu0 0.0
        %4168 = vmatpush1.msra.mxu0 %v4129
        %4169 = vmatprep.subr.mxu0 0.0
        %4170 = vmatpush1.msra.mxu0 %v4130
        %4171 = vmatprep.subr.mxu0 0.0
        %4172 = vmatpush1.msra.mxu0 0.0
        %4173 = vmatprep.subr.mxu0 0.0
        %4174 = vmatpush1.msra.mxu0 0.0
        %4175 = vmatprep.subr.mxu0 0.0
        %4176 = vmatpush1.msra.mxu0 0.0
        %4177 = vmatprep.subr.mxu0 0.0
        %4178 = vmatpush1.msra.mxu0 0.0
        %4179 = vmatprep.subr.mxu0 0.0
        %4180 = vmatpush1.msra.mxu0 0.0
        %4181 = vmatprep.subr.mxu0 0.0
        %4182 = vmatpush1.msra.mxu0 0.0
        %4183 = vmatprep.subr.mxu0 0.0
        %4184 = vmatpush1.msra.mxu0 0.0
        %4185 = vmatprep.subr.mxu0 0.0
        %4186 = vmatpush1.msra.mxu0 0.0
        %4187 = vmatprep.subr.mxu0 0.0
        %4188 = vmatpush1.msra.mxu0 0.0
        %4189 = vmatprep.subr.mxu0 0.0
        %4190 = vmatpush1.msra.mxu0 0.0
        %4191 = vmatprep.subr.mxu0 0.0
        %4192 = vmatpush1.msra.mxu0 0.0
        %4193 = vmatprep.subr.mxu0 0.0
        %4194 = vmatpush1.msra.mxu0 0.0
        %4195 = vmatprep.mubr.f32.mxu0 %v4007
        %4196 = vmatmul.mubr.f32.gmra.mrb[0].mxu0 %v3975
        %v4197 = vpop.f32.mrb[0].mxu0
        %v4198 = vadd.f32 0.0, %v4197
        %v4199 = vpop.f32.mrb[0].mxu0
        %4200 = vmatprep.mubr.f32.mxu0 %v4010
        %4201 = vmatmul.mubr.f32.gmra.mrb[0].mxu0 %v3977
        %v4202 = vpop.f32.mrb[0].mxu0
        %v4203 = vadd.f32 0.0, %v4202
        %v4204 = vpop.f32.mrb[0].mxu0
        %4205 = vmatprep.mubr.f32.mxu0 %v4013
        %4206 = vmatmul.mubr.f32.gmra.mrb[0].mxu0 %v3979
        %v4207 = vpop.f32.mrb[0].mxu0
        %v4208 = vadd.f32 0.0, %v4207
        %v4209 = vpop.f32.mrb[0].mxu0
        %4210 = vmatprep.mubr.f32.mxu0 %v4016
        %4211 = vmatmul.mubr.f32.gmra.mrb[0].mxu0 %v3981
        %v4212 = vpop.f32.mrb[0].mxu0
        %v4213 = vadd.f32 0.0, %v4212
        %v4214 = vpop.f32.mrb[0].mxu0
        %4215 = vmatprep.mubr.f32.mxu0 %v4019
        %4216 = vmatmul.mubr.f32.gmra.mrb[0].mxu0 %v3983
        %v4217 = vpop.f32.mrb[0].mxu0
        %v4218 = vadd.f32 0.0, %v4217
        %v4219 = vpop.f32.mrb[0].mxu0
        %4220 = vdwg.mxu0
        %v4221 = vmax.f32 %v4088, %v4198
        %v4222 = vmax.f32 %v4093, %v4203
        %v4223 = vmax.f32 %v4098, %v4208
        %v4224 = vmax.f32 %v4103, %v4213
        %v4225 = vmax.f32 %v4108, %v4218
        %v4226 = vld [vmem:[%s14] sm:$0xff]
        %v4228 = vsel %vm1998, %v4226, 0
        %4230 = vmatprep.subr.mxu0 0.0
        %4231 = vmatpush1.msra.mxu0 %v4221
        %4232 = vmatprep.subr.mxu0 0.0
        %4233 = vmatpush1.msra.mxu0 %v4222
        %4234 = vmatprep.subr.mxu0 0.0
        %4235 = vmatpush1.msra.mxu0 %v4223
        %4236 = vmatprep.subr.mxu0 0.0
        %4237 = vmatpush1.msra.mxu0 %v4224
        %4238 = vmatprep.subr.mxu0 0.0
        %4239 = vmatpush1.msra.mxu0 %v4225
        %4240 = vmatprep.subr.mxu0 0.0
        %4241 = vmatpush1.msra.mxu0 0.0
        %4242 = vmatprep.subr.mxu0 0.0
        %4243 = vmatpush1.msra.mxu0 0.0
        %4244 = vmatprep.subr.mxu0 0.0
        %4245 = vmatpush1.msra.mxu0 0.0
        %4246 = vmatprep.subr.mxu0 0.0
        %4247 = vmatpush1.msra.mxu0 0.0
        %4248 = vmatprep.subr.mxu0 0.0
        %4249 = vmatpush1.msra.mxu0 0.0
        %4250 = vmatprep.subr.mxu0 0.0
        %4251 = vmatpush1.msra.mxu0 0.0
        %4252 = vmatprep.subr.mxu0 0.0
        %4253 = vmatpush1.msra.mxu0 0.0
        %4254 = vmatprep.subr.mxu0 0.0
        %4255 = vmatpush1.msra.mxu0 0.0
        %4256 = vmatprep.subr.mxu0 0.0
        %4257 = vmatpush1.msra.mxu0 0.0
        %4258 = vmatprep.subr.mxu0 0.0
        %4259 = vmatpush1.msra.mxu0 0.0
        %4260 = vmatprep.subr.mxu0 0.0
        %4261 = vmatpush1.msra.mxu0 0.0
        %4262 = vmatprep.subr.mxu0 0.0
        %4263 = vmatpush1.msra.mxu0 0.0
        %4264 = vmatprep.subr.mxu0 0.0
        %4265 = vmatpush1.msra.mxu0 0.0
        %4266 = vmatprep.subr.mxu0 0.0
        %4267 = vmatpush1.msra.mxu0 0.0
        %4268 = vmatprep.subr.mxu0 0.0
        %4269 = vmatpush1.msra.mxu0 0.0
        %4270 = vmatprep.subr.mxu0 0.0
        %4271 = vmatpush1.msra.mxu0 0.0
        %4272 = vmatprep.subr.mxu0 0.0
        %4273 = vmatpush1.msra.mxu0 0.0
        %4274 = vmatprep.subr.mxu0 0.0
        %4275 = vmatpush1.msra.mxu0 0.0
        %4276 = vmatprep.subr.mxu0 0.0
        %4277 = vmatpush1.msra.mxu0 0.0
        %4278 = vmatprep.subr.mxu0 0.0
        %4279 = vmatpush1.msra.mxu0 0.0
        %4280 = vmatprep.subr.mxu0 0.0
        %4281 = vmatpush1.msra.mxu0 0.0
        %4282 = vmatprep.subr.mxu0 0.0
        %4283 = vmatpush1.msra.mxu0 0.0
        %4284 = vmatprep.subr.mxu0 0.0
        %4285 = vmatpush1.msra.mxu0 0.0
        %4286 = vmatprep.subr.mxu0 0.0
        %4287 = vmatpush1.msra.mxu0 0.0
        %4288 = vmatprep.subr.mxu0 0.0
        %4289 = vmatpush1.msra.mxu0 0.0
        %4290 = vmatprep.subr.mxu0 0.0
        %4291 = vmatpush1.msra.mxu0 0.0
        %4292 = vmatprep.subr.mxu0 0.0
        %4293 = vmatpush1.msra.mxu0 0.0
        %4294 = vmatprep.mubr.f32.mxu0 0.0
        %4295 = vmatmul.mubr.f32.gmra.mrb[0].mxu0 %v4228
        %v4296 = vpop.f32.mrb[0].mxu0
        %v4297 = vadd.f32 0.0, %v4296
        %v4298 = vpop.f32.mrb[0].mxu0
        %4299 = vdwg.mxu0
        %s4300 = scalar_lea.vmem %s14, 8
        %v4301 = vld [vmem:[%s4300] sm:$0xff]
        %v4303 = vsel %vm1998, %v4301, 0
        %4305 = vmatprep.subr.mxu0 0.0
        %4306 = vmatpush1.msra.mxu0 %v4221
        %4307 = vmatprep.subr.mxu0 0.0
        %4308 = vmatpush1.msra.mxu0 %v4222
        %4309 = vmatprep.subr.mxu0 0.0
        %4310 = vmatpush1.msra.mxu0 %v4223
        %4311 = vmatprep.subr.mxu0 0.0
        %4312 = vmatpush1.msra.mxu0 %v4224
        %4313 = vmatprep.subr.mxu0 0.0
        %4314 = vmatpush1.msra.mxu0 %v4225
        %4315 = vmatprep.subr.mxu0 0.0
        %4316 = vmatpush1.msra.mxu0 0.0
        %4317 = vmatprep.subr.mxu0 0.0
        %4318 = vmatpush1.msra.mxu0 0.0
        %4319 = vmatprep.subr.mxu0 0.0
        %4320 = vmatpush1.msra.mxu0 0.0
        %4321 = vmatprep.subr.mxu0 0.0
        %4322 = vmatpush1.msra.mxu0 0.0
        %4323 = vmatprep.subr.mxu0 0.0
        %4324 = vmatpush1.msra.mxu0 0.0
        %4325 = vmatprep.subr.mxu0 0.0
        %4326 = vmatpush1.msra.mxu0 0.0
        %4327 = vmatprep.subr.mxu0 0.0
        %4328 = vmatpush1.msra.mxu0 0.0
        %4329 = vmatprep.subr.mxu0 0.0
        %4330 = vmatpush1.msra.mxu0 0.0
        %4331 = vmatprep.subr.mxu0 0.0
        %4332 = vmatpush1.msra.mxu0 0.0
        %4333 = vmatprep.subr.mxu0 0.0
        %4334 = vmatpush1.msra.mxu0 0.0
        %4335 = vmatprep.subr.mxu0 0.0
        %4336 = vmatpush1.msra.mxu0 0.0
        %4337 = vmatprep.subr.mxu0 0.0
        %4338 = vmatpush1.msra.mxu0 0.0
        %4339 = vmatprep.subr.mxu0 0.0
        %4340 = vmatpush1.msra.mxu0 0.0
        %4341 = vmatprep.subr.mxu0 0.0
        %4342 = vmatpush1.msra.mxu0 0.0
        %4343 = vmatprep.subr.mxu0 0.0
        %4344 = vmatpush1.msra.mxu0 0.0
        %4345 = vmatprep.subr.mxu0 0.0
        %4346 = vmatpush1.msra.mxu0 0.0
        %4347 = vmatprep.subr.mxu0 0.0
        %4348 = vmatpush1.msra.mxu0 0.0
        %4349 = vmatprep.subr.mxu0 0.0
        %4350 = vmatpush1.msra.mxu0 0.0
        %4351 = vmatprep.subr.mxu0 0.0
        %4352 = vmatpush1.msra.mxu0 0.0
        %4353 = vmatprep.subr.mxu0 0.0
        %4354 = vmatpush1.msra.mxu0 0.0
        %4355 = vmatprep.subr.mxu0 0.0
        %4356 = vmatpush1.msra.mxu0 0.0
        %4357 = vmatprep.subr.mxu0 0.0
        %4358 = vmatpush1.msra.mxu0 0.0
        %4359 = vmatprep.subr.mxu0 0.0
        %4360 = vmatpush1.msra.mxu0 0.0
        %4361 = vmatprep.subr.mxu0 0.0
        %4362 = vmatpush1.msra.mxu0 0.0
        %4363 = vmatprep.subr.mxu0 0.0
        %4364 = vmatpush1.msra.mxu0 0.0
        %4365 = vmatprep.subr.mxu0 0.0
        %4366 = vmatpush1.msra.mxu0 0.0
        %4367 = vmatprep.subr.mxu0 0.0
        %4368 = vmatpush1.msra.mxu0 0.0
        %4369 = vmatprep.mubr.f32.mxu0 0.0
        %4370 = vmatmul.mubr.f32.gmra.mrb[0].mxu0 %v4303
        %v4371 = vpop.f32.mrb[0].mxu0
        %v4372 = vadd.f32 0.0, %v4371
        %v4373 = vpop.f32.mrb[0].mxu0
        %4374 = vdwg.mxu0
        %s4375 = scalar_lea.vmem %s14, 16
        %v4376 = vld [vmem:[%s4375] sm:$0xff]
        %v4378 = vsel %vm1998, %v4376, 0
        %4380 = vmatprep.subr.mxu0 0.0
        %4381 = vmatpush1.msra.mxu0 %v4221
        %4382 = vmatprep.subr.mxu0 0.0
        %4383 = vmatpush1.msra.mxu0 %v4222
        %4384 = vmatprep.subr.mxu0 0.0
        %4385 = vmatpush1.msra.mxu0 %v4223
        %4386 = vmatprep.subr.mxu0 0.0
        %4387 = vmatpush1.msra.mxu0 %v4224
        %4388 = vmatprep.subr.mxu0 0.0
        %4389 = vmatpush1.msra.mxu0 %v4225
        %4390 = vmatprep.subr.mxu0 0.0
        %4391 = vmatpush1.msra.mxu0 0.0
        %4392 = vmatprep.subr.mxu0 0.0
        %4393 = vmatpush1.msra.mxu0 0.0
        %4394 = vmatprep.subr.mxu0 0.0
        %4395 = vmatpush1.msra.mxu0 0.0
        %4396 = vmatprep.subr.mxu0 0.0
        %4397 = vmatpush1.msra.mxu0 0.0
        %4398 = vmatprep.subr.mxu0 0.0
        %4399 = vmatpush1.msra.mxu0 0.0
        %4400 = vmatprep.subr.mxu0 0.0
        %4401 = vmatpush1.msra.mxu0 0.0
        %4402 = vmatprep.subr.mxu0 0.0
        %4403 = vmatpush1.msra.mxu0 0.0
        %4404 = vmatprep.subr.mxu0 0.0
        %4405 = vmatpush1.msra.mxu0 0.0
        %4406 = vmatprep.subr.mxu0 0.0
        %4407 = vmatpush1.msra.mxu0 0.0
        %4408 = vmatprep.subr.mxu0 0.0
        %4409 = vmatpush1.msra.mxu0 0.0
        %4410 = vmatprep.subr.mxu0 0.0
        %4411 = vmatpush1.msra.mxu0 0.0
        %4412 = vmatprep.subr.mxu0 0.0
        %4413 = vmatpush1.msra.mxu0 0.0
        %4414 = vmatprep.subr.mxu0 0.0
        %4415 = vmatpush1.msra.mxu0 0.0
        %4416 = vmatprep.subr.mxu0 0.0
        %4417 = vmatpush1.msra.mxu0 0.0
        %4418 = vmatprep.subr.mxu0 0.0
        %4419 = vmatpush1.msra.mxu0 0.0
        %4420 = vmatprep.subr.mxu0 0.0
        %4421 = vmatpush1.msra.mxu0 0.0
        %4422 = vmatprep.subr.mxu0 0.0
        %4423 = vmatpush1.msra.mxu0 0.0
        %4424 = vmatprep.subr.mxu0 0.0
        %4425 = vmatpush1.msra.mxu0 0.0
        %4426 = vmatprep.subr.mxu0 0.0
        %4427 = vmatpush1.msra.mxu0 0.0
        %4428 = vmatprep.subr.mxu0 0.0
        %4429 = vmatpush1.msra.mxu0 0.0
        %4430 = vmatprep.subr.mxu0 0.0
        %4431 = vmatpush1.msra.mxu0 0.0
        %4432 = vmatprep.subr.mxu0 0.0
        %4433 = vmatpush1.msra.mxu0 0.0
        %4434 = vmatprep.subr.mxu0 0.0
        %4435 = vmatpush1.msra.mxu0 0.0
        %4436 = vmatprep.subr.mxu0 0.0
        %4437 = vmatpush1.msra.mxu0 0.0
        %4438 = vmatprep.subr.mxu0 0.0
        %4439 = vmatpush1.msra.mxu0 0.0
        %4440 = vmatprep.subr.mxu0 0.0
        %4441 = vmatpush1.msra.mxu0 0.0
        %4442 = vmatprep.subr.mxu0 0.0
        %4443 = vmatpush1.msra.mxu0 0.0
        %4444 = vmatprep.mubr.f32.mxu0 0.0
        %4445 = vmatmul.mubr.f32.gmra.mrb[0].mxu0 %v4378
        %v4446 = vpop.f32.mrb[0].mxu0
        %v4447 = vadd.f32 0.0, %v4446
        %v4448 = vpop.f32.mrb[0].mxu0
        %4449 = vdwg.mxu0
        %s4450 = scalar_lea.vmem %s14, 24
        %v4451 = vld [vmem:[%s4450] sm:$0xff]
        %v4453 = vsel %vm1998, %v4451, 0
        %4455 = vmatprep.subr.mxu0 0.0
        %4456 = vmatpush1.msra.mxu0 %v4221
        %4457 = vmatprep.subr.mxu0 0.0
        %4458 = vmatpush1.msra.mxu0 %v4222
        %4459 = vmatprep.subr.mxu0 0.0
        %4460 = vmatpush1.msra.mxu0 %v4223
        %4461 = vmatprep.subr.mxu0 0.0
        %4462 = vmatpush1.msra.mxu0 %v4224
        %4463 = vmatprep.subr.mxu0 0.0
        %4464 = vmatpush1.msra.mxu0 %v4225
        %4465 = vmatprep.subr.mxu0 0.0
        %4466 = vmatpush1.msra.mxu0 0.0
        %4467 = vmatprep.subr.mxu0 0.0
        %4468 = vmatpush1.msra.mxu0 0.0
        %4469 = vmatprep.subr.mxu0 0.0
        %4470 = vmatpush1.msra.mxu0 0.0
        %4471 = vmatprep.subr.mxu0 0.0
        %4472 = vmatpush1.msra.mxu0 0.0
        %4473 = vmatprep.subr.mxu0 0.0
        %4474 = vmatpush1.msra.mxu0 0.0
        %4475 = vmatprep.subr.mxu0 0.0
        %4476 = vmatpush1.msra.mxu0 0.0
        %4477 = vmatprep.subr.mxu0 0.0
        %4478 = vmatpush1.msra.mxu0 0.0
        %4479 = vmatprep.subr.mxu0 0.0
        %4480 = vmatpush1.msra.mxu0 0.0
        %4481 = vmatprep.subr.mxu0 0.0
        %4482 = vmatpush1.msra.mxu0 0.0
        %4483 = vmatprep.subr.mxu0 0.0
        %4484 = vmatpush1.msra.mxu0 0.0
        %4485 = vmatprep.subr.mxu0 0.0
        %4486 = vmatpush1.msra.mxu0 0.0
        %4487 = vmatprep.subr.mxu0 0.0
        %4488 = vmatpush1.msra.mxu0 0.0
        %4489 = vmatprep.subr.mxu0 0.0
        %4490 = vmatpush1.msra.mxu0 0.0
        %4491 = vmatprep.subr.mxu0 0.0
        %4492 = vmatpush1.msra.mxu0 0.0
        %4493 = vmatprep.subr.mxu0 0.0
        %4494 = vmatpush1.msra.mxu0 0.0
        %4495 = vmatprep.subr.mxu0 0.0
        %4496 = vmatpush1.msra.mxu0 0.0
        %4497 = vmatprep.subr.mxu0 0.0
        %4498 = vmatpush1.msra.mxu0 0.0
        %4499 = vmatprep.subr.mxu0 0.0
        %4500 = vmatpush1.msra.mxu0 0.0
        %4501 = vmatprep.subr.mxu0 0.0
        %4502 = vmatpush1.msra.mxu0 0.0
        %4503 = vmatprep.subr.mxu0 0.0
        %4504 = vmatpush1.msra.mxu0 0.0
        %4505 = vmatprep.subr.mxu0 0.0
        %4506 = vmatpush1.msra.mxu0 0.0
        %4507 = vmatprep.subr.mxu0 0.0
        %4508 = vmatpush1.msra.mxu0 0.0
        %4509 = vmatprep.subr.mxu0 0.0
        %4510 = vmatpush1.msra.mxu0 0.0
        %4511 = vmatprep.subr.mxu0 0.0
        %4512 = vmatpush1.msra.mxu0 0.0
        %4513 = vmatprep.subr.mxu0 0.0
        %4514 = vmatpush1.msra.mxu0 0.0
        %4515 = vmatprep.subr.mxu0 0.0
        %4516 = vmatpush1.msra.mxu0 0.0
        %4517 = vmatprep.subr.mxu0 0.0
        %4518 = vmatpush1.msra.mxu0 0.0
        %4519 = vmatprep.mubr.f32.mxu0 0.0
        %4520 = vmatmul.mubr.f32.gmra.mrb[0].mxu0 %v4453
        %v4521 = vpop.f32.mrb[0].mxu0
        %v4522 = vadd.f32 0.0, %v4521
        %v4523 = vpop.f32.mrb[0].mxu0
        %4524 = vdwg.mxu0
        %s4525 = scalar_lea.vmem %s14, 32
        %v4526 = vld [vmem:[%s4525] sm:$0xff]
        %v4528 = vsel %vm1998, %v4526, 0
        %4530 = vmatprep.subr.mxu0 0.0
        %4531 = vmatpush1.msra.mxu0 %v4221
        %4532 = vmatprep.subr.mxu0 0.0
        %4533 = vmatpush1.msra.mxu0 %v4222
        %4534 = vmatprep.subr.mxu0 0.0
        %4535 = vmatpush1.msra.mxu0 %v4223
        %4536 = vmatprep.subr.mxu0 0.0
        %4537 = vmatpush1.msra.mxu0 %v4224
        %4538 = vmatprep.subr.mxu0 0.0
        %4539 = vmatpush1.msra.mxu0 %v4225
        %4540 = vmatprep.subr.mxu0 0.0
        %4541 = vmatpush1.msra.mxu0 0.0
        %4542 = vmatprep.subr.mxu0 0.0
        %4543 = vmatpush1.msra.mxu0 0.0
        %4544 = vmatprep.subr.mxu0 0.0
        %4545 = vmatpush1.msra.mxu0 0.0
        %4546 = vmatprep.subr.mxu0 0.0
        %4547 = vmatpush1.msra.mxu0 0.0
        %4548 = vmatprep.subr.mxu0 0.0
        %4549 = vmatpush1.msra.mxu0 0.0
        %4550 = vmatprep.subr.mxu0 0.0
        %4551 = vmatpush1.msra.mxu0 0.0
        %4552 = vmatprep.subr.mxu0 0.0
        %4553 = vmatpush1.msra.mxu0 0.0
        %4554 = vmatprep.subr.mxu0 0.0
        %4555 = vmatpush1.msra.mxu0 0.0
        %4556 = vmatprep.subr.mxu0 0.0
        %4557 = vmatpush1.msra.mxu0 0.0
        %4558 = vmatprep.subr.mxu0 0.0
        %4559 = vmatpush1.msra.mxu0 0.0
        %4560 = vmatprep.subr.mxu0 0.0
        %4561 = vmatpush1.msra.mxu0 0.0
        %4562 = vmatprep.subr.mxu0 0.0
        %4563 = vmatpush1.msra.mxu0 0.0
        %4564 = vmatprep.subr.mxu0 0.0
        %4565 = vmatpush1.msra.mxu0 0.0
        %4566 = vmatprep.subr.mxu0 0.0
        %4567 = vmatpush1.msra.mxu0 0.0
        %4568 = vmatprep.subr.mxu0 0.0
        %4569 = vmatpush1.msra.mxu0 0.0
        %4570 = vmatprep.subr.mxu0 0.0
        %4571 = vmatpush1.msra.mxu0 0.0
        %4572 = vmatprep.subr.mxu0 0.0
        %4573 = vmatpush1.msra.mxu0 0.0
        %4574 = vmatprep.subr.mxu0 0.0
        %4575 = vmatpush1.msra.mxu0 0.0
        %4576 = vmatprep.subr.mxu0 0.0
        %4577 = vmatpush1.msra.mxu0 0.0
        %4578 = vmatprep.subr.mxu0 0.0
        %4579 = vmatpush1.msra.mxu0 0.0
        %4580 = vmatprep.subr.mxu0 0.0
        %4581 = vmatpush1.msra.mxu0 0.0
        %4582 = vmatprep.subr.mxu0 0.0
        %4583 = vmatpush1.msra.mxu0 0.0
        %4584 = vmatprep.subr.mxu0 0.0
        %4585 = vmatpush1.msra.mxu0 0.0
        %4586 = vmatprep.subr.mxu0 0.0
        %4587 = vmatpush1.msra.mxu0 0.0
        %4588 = vmatprep.subr.mxu0 0.0
        %4589 = vmatpush1.msra.mxu0 0.0
        %4590 = vmatprep.subr.mxu0 0.0
        %4591 = vmatpush1.msra.mxu0 0.0
        %4592 = vmatprep.subr.mxu0 0.0
        %4593 = vmatpush1.msra.mxu0 0.0
        %4594 = vmatprep.mubr.f32.mxu0 0.0
        %4595 = vmatmul.mubr.f32.gmra.mrb[0].mxu0 %v4528
        %v4596 = vpop.f32.mrb[0].mxu0
        %v4597 = vadd.f32 0.0, %v4596
        %v4598 = vpop.f32.mrb[0].mxu0
        %4599 = vdwg.mxu0
        %4601 = vrot.lane.b32.xlu0 %v4372, 80
        %v4602 = vpop.permute.xlu0 %4601
        %4605 = vrot.lane.b32.xlu0 %v4447, 32
        %v4606 = vpop.permute.xlu0 %4605
        %4609 = vrot.lane.b32.xlu0 %v4522, 112
        %v4610 = vpop.permute.xlu0 %4609
        %4613 = vrot.lane.b32.xlu0 %v4597, 64
        %v4614 = vpop.permute.xlu0 %4613
        %v4616 = vsel %vm3318, %v4297, %v4602
        %v4617 = vsel %vm4005, %v4602, %v4606
        %v4618 = vsel %vm2356, %v4617, %v4610
        %vm4619 = vcmask 523264
        %v4620 = vsel %vm4619, %v4610, %v4614
        %v4621 = vld [vmem:[%s15] sm:$0xff]
        %v4622 = vld [vmem:[%s15 + $0x8] sm:$0xff]
        %v4623 = vld [vmem:[%s15 + $0x10] sm:$0xff]
        %v4624 = vld [vmem:[%s15 + $0x18] sm:$0xff]
        %v4625 = vld [vmem:[%s15 + $0x20] sm:$0xff]
        %v4626 = vld [vmem:[%s15 + $0x28] sm:$0xff]
        %v4627 = vld [vmem:[%s15 + $0x30] sm:$0xff]
        %v4628 = vld [vmem:[%s15 + $0x38] sm:$0xff]
        %v4629 = vld [vmem:[%s15 + $0x40] sm:$0xff]
        %v4630 = vld [vmem:[%s15 + $0x48] sm:$0xff]
        %v4631 = vld [vmem:[%s15 + $0x50] sm:$0xff]
        %v4632 = vld [vmem:[%s15 + $0x58] sm:$0xff]
        %v4633 = vld [vmem:[%s15 + $0x60] sm:$0xff]
        %v4634 = vld [vmem:[%s15 + $0x68] sm:$0xff]
        %v4635 = vld [vmem:[%s15 + $0x70] sm:$0xff]
        %v4636 = vld [vmem:[%s15 + $0x78] sm:$0xff]
        %v4637 = vld [vmem:[%s15 + $0x80] sm:$0xff]
        %v4638 = vld [vmem:[%s15 + $0x88] sm:$0xff]
        %v4639 = vld [vmem:[%s15 + $0x90] sm:$0xff]
        %v4640 = vld [vmem:[%s15 + $0x98] sm:$0xff]
        %v4641 = vld [vmem:[%s15 + $0xa0] sm:$0xff]
        %v4642 = vld [vmem:[%s15 + $0xa8] sm:$0xff]
        %v4643 = vld [vmem:[%s15 + $0xb0] sm:$0xff]
        %v4644 = vld [vmem:[%s15 + $0xb8] sm:$0xff]
        %v4645 = vld [vmem:[%s15 + $0xc0] sm:$0xff]
        %v4646 = vld [vmem:[%s15 + $0xc8] sm:$0xff]
        %v4647 = vld [vmem:[%s15 + $0xd0] sm:$0xff]
        %v4648 = vld [vmem:[%s15 + $0xd8] sm:$0xff]
        %v4649 = vld [vmem:[%s15 + $0xe0] sm:$0xff]
        %v4650 = vld [vmem:[%s15 + $0xe8] sm:$0xff]
        %v4651 = vld [vmem:[%s15 + $0xf0] sm:$0xff]
        %v4652 = vld [vmem:[%s15 + $0xf8] sm:$0xff]
        %v4653 = vld [vmem:[%s15 + $0x100] sm:$0xff]
        %v4654 = vld [vmem:[%s15 + $0x108] sm:$0xff]
        %v4655 = vld [vmem:[%s15 + $0x110] sm:$0xff]
        %v4656 = vld [vmem:[%s15 + $0x118] sm:$0xff]
        %v4657 = vld [vmem:[%s15 + $0x120] sm:$0xff]
        %v4658 = vld [vmem:[%s15 + $0x128] sm:$0xff]
        %v4659 = vld [vmem:[%s15 + $0x130] sm:$0xff]
        %v4660 = vld [vmem:[%s15 + $0x138] sm:$0xff]
        %v4661 = vld [vmem:[%s15 + $0x140] sm:$0xff]
        %v4662 = vld [vmem:[%s15 + $0x148] sm:$0xff]
        %v4663 = vld [vmem:[%s15 + $0x150] sm:$0xff]
        %v4664 = vld [vmem:[%s15 + $0x158] sm:$0xff]
        %v4665 = vld [vmem:[%s15 + $0x160] sm:$0xff]
        %v4666 = vld [vmem:[%s15 + $0x168] sm:$0xff]
        %v4667 = vld [vmem:[%s15 + $0x170] sm:$0xff]
        %v4668 = vld [vmem:[%s15 + $0x178] sm:$0xff]
        %v4669 = vld [vmem:[%s15 + $0x180] sm:$0xff]
        %v4670 = vld [vmem:[%s15 + $0x188] sm:$0xff]
        %v4671 = vld [vmem:[%s16] sm:$0x1]
        %v4673 = vlaneseq
        %v4674 = vshrl.u32 %v4673, 7
        %v4675 = vsub.s32 0, %v4674
        %v4676 = vrot.slane %v4671, %v4675
        %vm4678 = vcmask 130048
        %v4679 = vsel %vm4678, %v4614, 0
        %4681 = vmatprep.subr.mxu0 0.0
        %4682 = vmatpush1.msra.mxu0 %v4621
        %4683 = vmatprep.subr.mxu0 0.0
        %4684 = vmatpush1.msra.mxu0 %v4622
        %4685 = vmatprep.subr.mxu0 0.0
        %4686 = vmatpush1.msra.mxu0 %v4623
        %4687 = vmatprep.subr.mxu0 0.0
        %4688 = vmatpush1.msra.mxu0 %v4624
        %4689 = vmatprep.subr.mxu0 0.0
        %4690 = vmatpush1.msra.mxu0 %v4625
        %4691 = vmatprep.subr.mxu0 0.0
        %4692 = vmatpush1.msra.mxu0 %v4626
        %4693 = vmatprep.subr.mxu0 0.0
        %4694 = vmatpush1.msra.mxu0 %v4627
        %4695 = vmatprep.subr.mxu0 0.0
        %4696 = vmatpush1.msra.mxu0 %v4628
        %4697 = vmatprep.subr.mxu0 0.0
        %4698 = vmatpush1.msra.mxu0 %v4629
        %4699 = vmatprep.subr.mxu0 0.0
        %4700 = vmatpush1.msra.mxu0 %v4630
        %4701 = vmatprep.subr.mxu0 0.0
        %4702 = vmatpush1.msra.mxu0 %v4631
        %4703 = vmatprep.subr.mxu0 0.0
        %4704 = vmatpush1.msra.mxu0 %v4632
        %4705 = vmatprep.subr.mxu0 0.0
        %4706 = vmatpush1.msra.mxu0 %v4633
        %4707 = vmatprep.subr.mxu0 0.0
        %4708 = vmatpush1.msra.mxu0 %v4634
        %4709 = vmatprep.subr.mxu0 0.0
        %4710 = vmatpush1.msra.mxu0 %v4635
        %4711 = vmatprep.subr.mxu0 0.0
        %4712 = vmatpush1.msra.mxu0 %v4636
        %4713 = vmatprep.subr.mxu0 0.0
        %4714 = vmatpush1.msra.mxu0 %v4637
        %4715 = vmatprep.subr.mxu0 0.0
        %4716 = vmatpush1.msra.mxu0 %v4638
        %4717 = vmatprep.subr.mxu0 0.0
        %4718 = vmatpush1.msra.mxu0 %v4639
        %4719 = vmatprep.subr.mxu0 0.0
        %4720 = vmatpush1.msra.mxu0 %v4640
        %4721 = vmatprep.subr.mxu0 0.0
        %4722 = vmatpush1.msra.mxu0 %v4641
        %4723 = vmatprep.subr.mxu0 0.0
        %4724 = vmatpush1.msra.mxu0 %v4642
        %4725 = vmatprep.subr.mxu0 0.0
        %4726 = vmatpush1.msra.mxu0 %v4643
        %4727 = vmatprep.subr.mxu0 0.0
        %4728 = vmatpush1.msra.mxu0 %v4644
        %4729 = vmatprep.subr.mxu0 0.0
        %4730 = vmatpush1.msra.mxu0 %v4645
        %4731 = vmatprep.subr.mxu0 0.0
        %4732 = vmatpush1.msra.mxu0 %v4646
        %4733 = vmatprep.subr.mxu0 0.0
        %4734 = vmatpush1.msra.mxu0 %v4647
        %4735 = vmatprep.subr.mxu0 0.0
        %4736 = vmatpush1.msra.mxu0 %v4648
        %4737 = vmatprep.subr.mxu0 0.0
        %4738 = vmatpush1.msra.mxu0 %v4649
        %4739 = vmatprep.subr.mxu0 0.0
        %4740 = vmatpush1.msra.mxu0 %v4650
        %4741 = vmatprep.subr.mxu0 0.0
        %4742 = vmatpush1.msra.mxu0 %v4651
        %4743 = vmatprep.subr.mxu0 0.0
        %4744 = vmatpush1.msra.mxu0 %v4652
        %4745 = vmatprep.mubr.f32.mxu0 %v4618
        %4746 = vmatmul.mubr.f32.gmra.mrb[0].mxu0 %v4616
        %v4747 = vpop.f32.mrb[0].mxu0
        %v4748 = vadd.f32 %v4676, %v4747
        %v4749 = vpop.f32.mrb[0].mxu0
        %4750 = vdwg.mxu0
        %4751 = vmatprep.subr.mxu0 0.0
        %4752 = vmatpush1.msra.mxu0 %v4653
        %4753 = vmatprep.subr.mxu0 0.0
        %4754 = vmatpush1.msra.mxu0 %v4654
        %4755 = vmatprep.subr.mxu0 0.0
        %4756 = vmatpush1.msra.mxu0 %v4655
        %4757 = vmatprep.subr.mxu0 0.0
        %4758 = vmatpush1.msra.mxu0 %v4656
        %4759 = vmatprep.subr.mxu0 0.0
        %4760 = vmatpush1.msra.mxu0 %v4657
        %4761 = vmatprep.subr.mxu0 0.0
        %4762 = vmatpush1.msra.mxu0 %v4658
        %4763 = vmatprep.subr.mxu0 0.0
        %4764 = vmatpush1.msra.mxu0 %v4659
        %4765 = vmatprep.subr.mxu0 0.0
        %4766 = vmatpush1.msra.mxu0 %v4660
        %4767 = vmatprep.subr.mxu0 0.0
        %4768 = vmatpush1.msra.mxu0 %v4661
        %4769 = vmatprep.subr.mxu0 0.0
        %4770 = vmatpush1.msra.mxu0 %v4662
        %4771 = vmatprep.subr.mxu0 0.0
        %4772 = vmatpush1.msra.mxu0 %v4663
        %4773 = vmatprep.subr.mxu0 0.0
        %4774 = vmatpush1.msra.mxu0 %v4664
        %4775 = vmatprep.subr.mxu0 0.0
        %4776 = vmatpush1.msra.mxu0 %v4665
        %4777 = vmatprep.subr.mxu0 0.0
        %4778 = vmatpush1.msra.mxu0 %v4666
        %4779 = vmatprep.subr.mxu0 0.0
        %4780 = vmatpush1.msra.mxu0 %v4667
        %4781 = vmatprep.subr.mxu0 0.0
        %4782 = vmatpush1.msra.mxu0 %v4668
        %4783 = vmatprep.subr.mxu0 0.0
        %4784 = vmatpush1.msra.mxu0 %v4669
        %4785 = vmatprep.subr.mxu0 0.0
        %4786 = vmatpush1.msra.mxu0 %v4670
        %4787 = vmatprep.subr.mxu0 0.0
        %4788 = vmatpush1.msra.mxu0 0.0
        %4789 = vmatprep.subr.mxu0 0.0
        %4790 = vmatpush1.msra.mxu0 0.0
        %4791 = vmatprep.subr.mxu0 0.0
        %4792 = vmatpush1.msra.mxu0 0.0
        %4793 = vmatprep.subr.mxu0 0.0
        %4794 = vmatpush1.msra.mxu0 0.0
        %4795 = vmatprep.subr.mxu0 0.0
        %4796 = vmatpush1.msra.mxu0 0.0
        %4797 = vmatprep.subr.mxu0 0.0
        %4798 = vmatpush1.msra.mxu0 0.0
        %4799 = vmatprep.subr.mxu0 0.0
        %4800 = vmatpush1.msra.mxu0 0.0
        %4801 = vmatprep.subr.mxu0 0.0
        %4802 = vmatpush1.msra.mxu0 0.0
        %4803 = vmatprep.subr.mxu0 0.0
        %4804 = vmatpush1.msra.mxu0 0.0
        %4805 = vmatprep.subr.mxu0 0.0
        %4806 = vmatpush1.msra.mxu0 0.0
        %4807 = vmatprep.subr.mxu0 0.0
        %4808 = vmatpush1.msra.mxu0 0.0
        %4809 = vmatprep.subr.mxu0 0.0
        %4810 = vmatpush1.msra.mxu0 0.0
        %4811 = vmatprep.subr.mxu0 0.0
        %4812 = vmatpush1.msra.mxu0 0.0
        %4813 = vmatprep.subr.mxu0 0.0
        %4814 = vmatpush1.msra.mxu0 0.0
        %4815 = vmatprep.mubr.f32.mxu0 %v4679
        %4816 = vmatmul.mubr.f32.gmra.mrb[0].mxu0 %v4620
        %v4817 = vpop.f32.mrb[0].mxu0
        %v4818 = vadd.f32 %v4748, %v4817
        %v4819 = vpop.f32.mrb[0].mxu0
        %4820 = vdwg.mxu0
        %v4821 = vmax.f32 %v4818, 0.0
        %v4822 = vld [vmem:[%s17] sm:$0xff]
        %v4823 = vld [vmem:[%s17 + $0x8] sm:$0xff]
        %v4824 = vld [vmem:[%s17 + $0x10] sm:$0xff]
        %v4825 = vld [vmem:[%s17 + $0x18] sm:$0xff]
        %v4826 = vld [vmem:[%s17 + $0x20] sm:$0xff]
        %v4827 = vld [vmem:[%s17 + $0x28] sm:$0xff]
        %v4828 = vld [vmem:[%s17 + $0x30] sm:$0xff]
        %v4829 = vld [vmem:[%s17 + $0x38] sm:$0xff]
        %v4830 = vld [vmem:[%s17 + $0x40] sm:$0xff]
        %v4831 = vld [vmem:[%s17 + $0x48] sm:$0xff]
        %v4832 = vld [vmem:[%s17 + $0x50] sm:$0xff]
        %v4833 = vld [vmem:[%s17 + $0x58] sm:$0xff]
        %v4834 = vld [vmem:[%s17 + $0x60] sm:$0xff]
        %v4835 = vld [vmem:[%s17 + $0x68] sm:$0xff]
        %v4836 = vld [vmem:[%s17 + $0x70] sm:$0xff]
        %v4837 = vld [vmem:[%s17 + $0x78] sm:$0xff]
        %v4838 = vld [vmem:[%s18] sm:$0x1]
        %v4840 = vlaneseq
        %v4841 = vshrl.u32 %v4840, 7
        %v4842 = vsub.s32 0, %v4841
        %v4843 = vrot.slane %v4838, %v4842
        %4845 = vmatprep.subr.mxu0 0.0
        %4846 = vmatpush1.msra.mxu0 %v4822
        %4847 = vmatprep.subr.mxu0 0.0
        %4848 = vmatpush1.msra.mxu0 %v4823
        %4849 = vmatprep.subr.mxu0 0.0
        %4850 = vmatpush1.msra.mxu0 %v4824
        %4851 = vmatprep.subr.mxu0 0.0
        %4852 = vmatpush1.msra.mxu0 %v4825
        %4853 = vmatprep.subr.mxu0 0.0
        %4854 = vmatpush1.msra.mxu0 %v4826
        %4855 = vmatprep.subr.mxu0 0.0
        %4856 = vmatpush1.msra.mxu0 %v4827
        %4857 = vmatprep.subr.mxu0 0.0
        %4858 = vmatpush1.msra.mxu0 %v4828
        %4859 = vmatprep.subr.mxu0 0.0
        %4860 = vmatpush1.msra.mxu0 %v4829
        %4861 = vmatprep.subr.mxu0 0.0
        %4862 = vmatpush1.msra.mxu0 %v4830
        %4863 = vmatprep.subr.mxu0 0.0
        %4864 = vmatpush1.msra.mxu0 %v4831
        %4865 = vmatprep.subr.mxu0 0.0
        %4866 = vmatpush1.msra.mxu0 %v4832
        %4867 = vmatprep.subr.mxu0 0.0
        %4868 = vmatpush1.msra.mxu0 %v4833
        %4869 = vmatprep.subr.mxu0 0.0
        %4870 = vmatpush1.msra.mxu0 %v4834
        %4871 = vmatprep.subr.mxu0 0.0
        %4872 = vmatpush1.msra.mxu0 %v4835
        %4873 = vmatprep.subr.mxu0 0.0
        %4874 = vmatpush1.msra.mxu0 %v4836
        %4875 = vmatprep.subr.mxu0 0.0
        %4876 = vmatpush1.msra.mxu0 %v4837
        %4877 = vmatprep.subr.mxu0 0.0
        %4878 = vmatpush1.msra.mxu0 0.0
        %4879 = vmatprep.subr.mxu0 0.0
        %4880 = vmatpush1.msra.mxu0 0.0
        %4881 = vmatprep.subr.mxu0 0.0
        %4882 = vmatpush1.msra.mxu0 0.0
        %4883 = vmatprep.subr.mxu0 0.0
        %4884 = vmatpush1.msra.mxu0 0.0
        %4885 = vmatprep.subr.mxu0 0.0
        %4886 = vmatpush1.msra.mxu0 0.0
        %4887 = vmatprep.subr.mxu0 0.0
        %4888 = vmatpush1.msra.mxu0 0.0
        %4889 = vmatprep.subr.mxu0 0.0
        %4890 = vmatpush1.msra.mxu0 0.0
        %4891 = vmatprep.subr.mxu0 0.0
        %4892 = vmatpush1.msra.mxu0 0.0
        %4893 = vmatprep.subr.mxu0 0.0
        %4894 = vmatpush1.msra.mxu0 0.0
        %4895 = vmatprep.subr.mxu0 0.0
        %4896 = vmatpush1.msra.mxu0 0.0
        %4897 = vmatprep.subr.mxu0 0.0
        %4898 = vmatpush1.msra.mxu0 0.0
        %4899 = vmatprep.subr.mxu0 0.0
        %4900 = vmatpush1.msra.mxu0 0.0
        %4901 = vmatprep.subr.mxu0 0.0
        %4902 = vmatpush1.msra.mxu0 0.0
        %4903 = vmatprep.subr.mxu0 0.0
        %4904 = vmatpush1.msra.mxu0 0.0
        %4905 = vmatprep.subr.mxu0 0.0
        %4906 = vmatpush1.msra.mxu0 0.0
        %4907 = vmatprep.subr.mxu0 0.0
        %4908 = vmatpush1.msra.mxu0 0.0
        %4909 = vmatprep.mubr.f32.mxu0 0.0
        %4910 = vmatmul.mubr.f32.gmra.mrb[0].mxu0 %v4821
        %v4911 = vpop.f32.mrb[0].mxu0
        %v4912 = vadd.f32 %v4843, %v4911
        %v4913 = vpop.f32.mrb[0].mxu0
        %4914 = vdwg.mxu0
        %v4915 = vmax.f32 %v4912, 0.0
        %v4916 = vld [vmem:[%s19] sm:$0xff]
        %v4917 = vld [vmem:[%s19 + $0x8] sm:$0xff]
        %v4918 = vld [vmem:[%s19 + $0x10] sm:$0xff]
        %v4919 = vld [vmem:[%s19 + $0x18] sm:$0xff]
        %v4920 = vld [vmem:[%s19 + $0x20] sm:$0xff]
        %v4921 = vld [vmem:[%s19 + $0x28] sm:$0xff]
        %v4922 = vld [vmem:[%s19 + $0x30] sm:$0xff]
        %v4923 = vld [vmem:[%s19 + $0x38] sm:$0xff]
        %v4924 = vld [vmem:[%s19 + $0x40] sm:$0xff]
        %v4925 = vld [vmem:[%s19 + $0x48] sm:$0xff]
        %v4926 = vld [vmem:[%s19 + $0x50] sm:$0xff]
        %v4927 = vld [vmem:[%s19 + $0x58] sm:$0xff]
        %v4928 = vld [vmem:[%s19 + $0x60] sm:$0xff]
        %v4929 = vld [vmem:[%s19 + $0x68] sm:$0xff]
        %v4930 = vld [vmem:[%s19 + $0x70] sm:$0xff]
        %v4931 = vld [vmem:[%s19 + $0x78] sm:$0xff]
        %v4932 = vld [vmem:[%s20] sm:$0x1]
        %v4934 = vlaneseq
        %v4935 = vshrl.u32 %v4934, 7
        %v4936 = vsub.s32 0, %v4935
        %v4937 = vrot.slane %v4932, %v4936
        %4939 = vmatprep.subr.mxu0 0.0
        %4940 = vmatpush1.msra.mxu0 %v4916
        %4941 = vmatprep.subr.mxu0 0.0
        %4942 = vmatpush1.msra.mxu0 %v4917
        %4943 = vmatprep.subr.mxu0 0.0
        %4944 = vmatpush1.msra.mxu0 %v4918
        %4945 = vmatprep.subr.mxu0 0.0
        %4946 = vmatpush1.msra.mxu0 %v4919
        %4947 = vmatprep.subr.mxu0 0.0
        %4948 = vmatpush1.msra.mxu0 %v4920
        %4949 = vmatprep.subr.mxu0 0.0
        %4950 = vmatpush1.msra.mxu0 %v4921
        %4951 = vmatprep.subr.mxu0 0.0
        %4952 = vmatpush1.msra.mxu0 %v4922
        %4953 = vmatprep.subr.mxu0 0.0
        %4954 = vmatpush1.msra.mxu0 %v4923
        %4955 = vmatprep.subr.mxu0 0.0
        %4956 = vmatpush1.msra.mxu0 %v4924
        %4957 = vmatprep.subr.mxu0 0.0
        %4958 = vmatpush1.msra.mxu0 %v4925
        %4959 = vmatprep.subr.mxu0 0.0
        %4960 = vmatpush1.msra.mxu0 %v4926
        %4961 = vmatprep.subr.mxu0 0.0
        %4962 = vmatpush1.msra.mxu0 %v4927
        %4963 = vmatprep.subr.mxu0 0.0
        %4964 = vmatpush1.msra.mxu0 %v4928
        %4965 = vmatprep.subr.mxu0 0.0
        %4966 = vmatpush1.msra.mxu0 %v4929
        %4967 = vmatprep.subr.mxu0 0.0
        %4968 = vmatpush1.msra.mxu0 %v4930
        %4969 = vmatprep.subr.mxu0 0.0
        %4970 = vmatpush1.msra.mxu0 %v4931
        %4971 = vmatprep.subr.mxu0 0.0
        %4972 = vmatpush1.msra.mxu0 0.0
        %4973 = vmatprep.subr.mxu0 0.0
        %4974 = vmatpush1.msra.mxu0 0.0
        %4975 = vmatprep.subr.mxu0 0.0
        %4976 = vmatpush1.msra.mxu0 0.0
        %4977 = vmatprep.subr.mxu0 0.0
        %4978 = vmatpush1.msra.mxu0 0.0
        %4979 = vmatprep.subr.mxu0 0.0
        %4980 = vmatpush1.msra.mxu0 0.0
        %4981 = vmatprep.subr.mxu0 0.0
        %4982 = vmatpush1.msra.mxu0 0.0
        %4983 = vmatprep.subr.mxu0 0.0
        %4984 = vmatpush1.msra.mxu0 0.0
        %4985 = vmatprep.subr.mxu0 0.0
        %4986 = vmatpush1.msra.mxu0 0.0
        %4987 = vmatprep.subr.mxu0 0.0
        %4988 = vmatpush1.msra.mxu0 0.0
        %4989 = vmatprep.subr.mxu0 0.0
        %4990 = vmatpush1.msra.mxu0 0.0
        %4991 = vmatprep.subr.mxu0 0.0
        %4992 = vmatpush1.msra.mxu0 0.0
        %4993 = vmatprep.subr.mxu0 0.0
        %4994 = vmatpush1.msra.mxu0 0.0
        %4995 = vmatprep.subr.mxu0 0.0
        %4996 = vmatpush1.msra.mxu0 0.0
        %4997 = vmatprep.subr.mxu0 0.0
        %4998 = vmatpush1.msra.mxu0 0.0
        %4999 = vmatprep.subr.mxu0 0.0
        %5000 = vmatpush1.msra.mxu0 0.0
        %5001 = vmatprep.subr.mxu0 0.0
        %5002 = vmatpush1.msra.mxu0 0.0
        %5003 = vmatprep.mubr.f32.mxu0 0.0
        %5004 = vmatmul.mubr.f32.gmra.mrb[0].mxu0 %v4915
        %v5005 = vpop.f32.mrb[0].mxu0
        %v5006 = vadd.f32 %v4937, %v5005
        %v5007 = vpop.f32.mrb[0].mxu0
        %5008 = vdwg.mxu0
        %5009 = vst [vmem:[%s652] sm:$0xff] %v5006
        %s5010 = sand.u32 %s489, 1
        %s5011 = scalar_lea.sflag [#allocation3], %s5010
        %s5012 = sand.u32 %s489, 1
        %s5013 = smul.addr %s5012, 8
        %s5014 = scalar_lea.vmem [#allocation2], %s5013
        // Predicated region
        $region105: #{tpu_custom_call.1} parent=103 // pred_check
          %p5015 = pneg %p499
        $region106: #{tpu_custom_call.1} parent=103 // pred_check_branch
          %5017 = sbr.rel (%p5015) target = $region108
        $region107: #{tpu_custom_call.1} parent=103 // pred_region
          %s5019 = ssub.s32 128, 128
          %5020 = vsyncadd %s5011, %s5019
          %s5021 = smul.addr %s35, 128
          %s5022 = scalar_lea.hbm %s21, %s5021
          %s5024 = sshll.u32 %s5014, 4
          %s5025 = int_to_ptr.vmem [resolvable:$true] %s5024
          %5027 = dma.vmem_to_hbm [thread:$0]  %s5025, 128, %s5022, %s5011
        $region108: #{tpu_custom_call.1} parent=103 // pred_fallthru
          _
      $region104: #{tpu_custom_call.1} parent=5 // pred_fallthru
        _
      %p5028 = scmp.le.s32.totalorder 2, %s30
      // Predicated region
      $region109: #{tpu_custom_call.1} parent=5 // pred_check
        %p5029 = pneg %p5028
      $region110: #{tpu_custom_call.1} parent=5 // pred_check_branch
        %5031 = sbr.rel (%p5029) target = $region112
      $region111: #{tpu_custom_call.1} parent=5 // pred_region
        %s5032 = ssub.s32 %s30, 2
        // Predicated region
        $region113: #{tpu_custom_call.1} parent=111 // pred_check
          %p5033 = pneg %p505
        $region114: #{tpu_custom_call.1} parent=111 // pred_check_branch
          %5035 = sbr.rel (%p5033) target = $region116
        $region115: #{tpu_custom_call.1} parent=111 // pred_region
          %s5036 = sand.u32 %s490, 1
          %s5037 = scalar_lea.sflag [#allocation3], %s5036
          %s5038 = sand.u32 %s490, 1
          %s5039 = smul.addr %s5038, 8
          %s5040 = scalar_lea.vmem [#allocation2], %s5039
          %5041 = dma.done %s5037, 128
        $region116: #{tpu_custom_call.1} parent=111 // pred_fallthru
          _
      $region112: #{tpu_custom_call.1} parent=5 // pred_fallthru
        _
    $region6: #{tpu_custom_call.1} parent=1 // loop_footer
      %s34 = sadd.s32 1, %s30
    $region7: #{tpu_custom_call.1} parent=1 // loop_footer_branch
      %29 = sbr.rel target = $region3
    $region8: #{tpu_custom_call.1} parent=1 // loop_exit
      _
    %5042 = vsyncpa [#allocation3], 1
    %s5043 = scalar_lea.sflag [#allocation3], 1
    %5044 = vsyncpa %s5043, 1

</llo_original>
